<compile_context>
chip_gen: v7x
topology: tpu7x:2x2x1
jax: 0.10.0
libtpu: 0.0.40
codegen_flags: <defaults>
</compile_context>

<pallas_src>
import functools
import math

import jax
import jax.numpy as jnp
from jax.experimental import pallas as pl
from jax.experimental.pallas import tpu as pltpu


# --------------------------------------------------------------------------- #
# In-kernel helpers
# --------------------------------------------------------------------------- #
def _layernorm(v, g, b, eps):
    mu = jnp.mean(v, axis=-1, keepdims=True)
    var = jnp.mean(jnp.square(v - mu), axis=-1, keepdims=True)
    return (v - mu) * jax.lax.rsqrt(var + eps) * g + b


# --------------------------------------------------------------------------- #
# Single fused kernel: embeddings + all encoder layers + heads.
#   x_pad rows: [0]=zeros (CLS slot), [1..S]=inputs, [S+1..]=zero padding.
#   extra rows: [0]=cls_token+pos0+tok0, [i>=1]=proj_b+pos_i+tok0, so
#   x_pad@W + extra reproduces BertEmbeddings exactly for the used rows.
#   Padded sequence rows are masked as keys (bias=-1e9) and sliced off outside.
# --------------------------------------------------------------------------- #
def _fused_forward_kernel(x_ref, bias_ref, pw_ref, extra_ref, eg_ref, eb_ref,
                          qkvw_ref, qkvb_ref, aow_ref, aob_ref, g1_ref, b1_ref,
                          iw_ref, ib_ref, ow_ref, ob_ref, g2_ref, b2_ref,
                          hw_ref, hb_ref,
                          o_ref,
                          ctx_ref,
                          *, num_layers, num_heads, eps):
    x = x_ref[0]                                  # (S_pad, Din) f32
    s_pad = x.shape[0]
    hidden = pw_ref.shape[1]
    dh = hidden // num_heads
    scale = 1.0 / math.sqrt(dh)

    # Hoist the mask-bias broadcast out of the head/layer loops (no CSE in JAX).
    bias_b = jnp.broadcast_to(bias_ref[0], (s_pad, s_pad))          # (S_pad, S_pad)

    # ---- embeddings: input projection + cls/pos/token extras + LayerNorm ----
    h = jnp.dot(x, pw_ref[...], preferred_element_type=jnp.float32) + extra_ref[0]
    h = _layernorm(h, eg_ref[...], eb_ref[...], eps)                 # (S_pad, H)

    # ---- encoder layers (static unroll; weights stacked over layer axis) ----
    for l in range(num_layers):
        # fused QKV projection: one wide (S_pad,H)@(H,3H) MXU matmul
        qkv = jnp.dot(h, qkvw_ref[l],
                      preferred_element_type=jnp.float32) + qkvb_ref[l]

        for hd in range(num_heads):
            q = qkv[:, hd * dh:(hd + 1) * dh]
            k = qkv[:, hidden + hd * dh:hidden + (hd + 1) * dh]
            v = qkv[:, 2 * hidden + hd * dh:2 * hidden + (hd + 1) * dh]
            s = jax.lax.dot_general(q, k, (((1,), (1,)), ((), ())),
                                    preferred_element_type=jnp.float32)
            s = s * scale + bias_b
            s = s - jnp.max(s, axis=-1, keepdims=True)
            p = jnp.exp(s)
            p = p * pl.reciprocal(jnp.sum(p, axis=-1, keepdims=True), approx=True)
            # write this head's context into its lane range of the VMEM scratch
            ctx_ref[:, hd * dh:(hd + 1) * dh] = jnp.dot(
                p, v, preferred_element_type=jnp.float32)

        # single full-K output projection with the unsplit Wo
        attn = jnp.dot(ctx_ref[...], aow_ref[l],
                       preferred_element_type=jnp.float32) + aob_ref[l]
        h1 = _layernorm(attn + h, g1_ref[l], b1_ref[l], eps)

        # ---- feed-forward ----
        inter = jnp.dot(h1, iw_ref[l], preferred_element_type=jnp.float32) + ib_ref[l]
        # TODO(synk): HF BERT uses exact erf-GELU; tanh-approx GELU used here for
        # guaranteed Mosaic lowering (~1e-3 rel. error).
        inter = jax.nn.gelu(inter, approximate=True)
        ffn = jnp.dot(inter, ow_ref[l], preferred_element_type=jnp.float32) + ob_ref[l]
        h = _layernorm(ffn + h1, g2_ref[l], b2_ref[l], eps)

    # ---- fused classifier + generator heads: lane-dense padded output ----
    out = jnp.dot(h, hw_ref[...], preferred_element_type=jnp.float32) + hb_ref[...]
    o_ref[0] = out.astype(o_ref.dtype)


# --------------------------------------------------------------------------- #
# Parameter initialization (deterministic, BERT-style N(0, 0.02)); per-layer
# weights are stacked over a leading num_layers axis so the single fused
# kernel can index them with a static layer loop, and Q/K/V are stored
# pre-concatenated as one (H, 3H) projection per layer.
# --------------------------------------------------------------------------- #
def init_params(seed, input_size, num_classes, num_heads, hidden_size_multiplier,
                num_layers, max_seq_length):
    hidden = num_heads * hidden_size_multiplier
    inter = hidden * 4
    key = jax.random.PRNGKey(seed)
    std = 0.02

    def nxt():
        nonlocal key
        key, sub = jax.random.split(key)
        return sub

    def w(shape):
        return std * jax.random.normal(nxt(), shape, jnp.float32)

    qkv_w, ao_w, i_w, o_w = [], [], [], []
    for _ in range(num_layers):
        qkv_w.append(jnp.concatenate(
            [w((hidden, hidden)), w((hidden, hidden)), w((hidden, hidden))], axis=1))
        ao_w.append(w((hidden, hidden)))
        i_w.append(w((hidden, inter)))
        o_w.append(w((inter, hidden)))

    params = {
        "hidden": hidden,
        "num_heads": num_heads,
        "num_layers": num_layers,
        "proj_w": w((input_size, hidden)),
        "proj_b": jnp.zeros((hidden,), jnp.float32),
        "cls_token": jnp.zeros((1, 1, hidden), jnp.float32),   # nn.Parameter(zeros)
        "pos_emb": w((max_seq_length + 1, hidden)),
        "tok_emb": w((2, hidden)),
        "emb_ln_g": jnp.ones((1, hidden), jnp.float32),
        "emb_ln_b": jnp.zeros((1, hidden), jnp.float32),
        # stacked per-layer weights: leading axis = num_layers
        "qkv_w": jnp.stack(qkv_w),                                   # (L, H, 3H)
        "qkv_b": jnp.zeros((num_layers, 1, 3 * hidden), jnp.float32),
        "ao_w": jnp.stack(ao_w),                                     # (L, H, H)
        "ao_b": jnp.zeros((num_layers, 1, hidden), jnp.float32),
        "ln1_g": jnp.ones((num_layers, 1, hidden), jnp.float32),
        "ln1_b": jnp.zeros((num_layers, 1, hidden), jnp.float32),
        "i_w": jnp.stack(i_w),                                       # (L, H, 4H)
        "i_b": jnp.zeros((num_layers, 1, inter), jnp.float32),
        "o_w": jnp.stack(o_w),                                       # (L, 4H, H)
        "o_b": jnp.zeros((num_layers, 1, hidden), jnp.float32),
        "ln2_g": jnp.ones((num_layers, 1, hidden), jnp.float32),
        "ln2_b": jnp.zeros((num_layers, 1, hidden), jnp.float32),
        "cls_w": w((hidden, num_classes)),
        "cls_b": jnp.zeros((num_classes,), jnp.float32),
        "gen_w": w((hidden, input_size)),
        "gen_b": jnp.zeros((input_size,), jnp.float32),
    }
    return params


# --------------------------------------------------------------------------- #
# Forward pass (inference semantics: dropout = identity)
# --------------------------------------------------------------------------- #
def transformer_motion_forward(params, x, attention_mask=None):
    """x: (B, S, input_size). Returns (classification (B, num_classes),
    generated_sequence (B, S, input_size))."""
    B, S, Din = x.shape
    H = params["hidden"]
    nh = params["num_heads"]
    L = params["num_layers"]
    C = params["cls_w"].shape[1]
    S1 = S + 1
    S_pad = ((S1 + 7) // 8) * 8            # sublane-aligned sequence length
    OUT_PAD = 128                          # lane-dense fused heads output (C+Din<=128)

    # ---- extended attention mask -> additive bias (padding rows masked) ----
    if attention_mask is None:
        attention_mask = jnp.ones((B, S), jnp.float32)
    mask_full = jnp.concatenate(
        [jnp.ones((B, 1), jnp.float32),
         attention_mask.astype(jnp.float32),
         jnp.zeros((B, S_pad - S1), jnp.float32)], axis=1)          # (B, S_pad)
    mask_bias = ((1.0 - mask_full) * (-1e9)).reshape(B, 1, S_pad)

    # ---- padded inputs + embedding "extra" term + fused head weights (tiny XLA glue) ----
    x_pad = jnp.pad(x.astype(jnp.float32), ((0, 0), (1, S_pad - S1), (0, 0)))
    extra = params["pos_emb"][:S_pad] + params["tok_emb"][0] + params["proj_b"]
    cls_row = params["cls_token"][0, 0] + params["pos_emb"][0] + params["tok_emb"][0]
    extra = extra.at[0].set(cls_row).reshape(1, S_pad, H)

    head_w = jnp.zeros((H, OUT_PAD), jnp.float32)
    head_w = head_w.at[:, :C].set(params["cls_w"]).at[:, C:C + Din].set(params["gen_w"])
    head_b = jnp.zeros((1, OUT_PAD), jnp.float32)
    head_b = head_b.at[0, :C].set(params["cls_b"]).at[0, C:C + Din].set(params["gen_b"])

    def inv(a):  # grid-invariant full-array BlockSpec
        nd = a.ndim
        return pl.BlockSpec(a.shape, lambda b, nd=nd: (0,) * nd)

    weights = (params["proj_w"], extra, params["emb_ln_g"], params["emb_ln_b"],
               params["qkv_w"], params["qkv_b"], params["ao_w"], params["ao_b"],
               params["ln1_g"], params["ln1_b"], params["i_w"], params["i_b"],
               params["o_w"], params["o_b"], params["ln2_g"], params["ln2_b"],
               head_w, head_b)

    # ---- the single fused pallas_call (grid over batch; parallel for v7x 2 TCs) ----
    out = pl.pallas_call(
        functools.partial(_fused_forward_kernel, num_layers=L, num_heads=nh, eps=1e-12),
        out_shape=jax.ShapeDtypeStruct((B, S_pad, OUT_PAD), jnp.float32),
        grid=(B,),
        in_specs=[pl.BlockSpec((1, S_pad, Din), lambda b: (b, 0, 0)),   # inputs
                  pl.BlockSpec((1, 1, S_pad), lambda b: (b, 0, 0))]     # mask bias
                 + [inv(a) for a in weights],
        out_specs=pl.BlockSpec((1, S_pad, OUT_PAD), lambda b: (b, 0, 0)),
        scratch_shapes=[pltpu.VMEM((S_pad, H), jnp.float32)],           # per-head ctx
        compiler_params=pltpu.CompilerParams(dimension_semantics=("parallel",)),
    )(x_pad, mask_bias, *weights)

    classification = out[:, 0, :C]                 # [CLS] row, classifier lanes
    generated = out[:, 1:S1, C:C + Din]            # real rows, generator lanes
    return classification, generated


# --------------------------------------------------------------------------- #
# Demo
# --------------------------------------------------------------------------- #
if __name__ == "__main__":
    # Small shapes consistent with the module:
    # batch=2, seq=sample_len=8, input_size=16, num_classes=5,
    # num_heads=4, hidden_size_multiplier=8 -> hidden_size=32, num_layers=2,
    # intermediate=128, max_seq_length=100.
    B, S, INPUT_SIZE, NUM_CLASSES = 2, 8, 16, 5
    NUM_HEADS, HS_MULT, NUM_LAYERS, MAX_SEQ = 4, 8, 2, 100

    params = init_params(0, INPUT_SIZE, NUM_CLASSES, NUM_HEADS, HS_MULT,
                         NUM_LAYERS, MAX_SEQ)

    key = jax.random.PRNGKey(0)
    x = jax.random.normal(key, (B, S, INPUT_SIZE), jnp.float32)
    # same construction as the module's training loop: (x != 0).any(-1).float()
    attention_mask = jnp.any(x != 0, axis=-1).astype(jnp.float32)

    fwd = jax.jit(functools.partial(transformer_motion_forward, params))
    classification, generated = fwd(x, attention_mask)
    jax.block_until_ready((classification, generated))

    assert classification.shape == (B, NUM_CLASSES)
    assert generated.shape == (B, S, INPUT_SIZE)
    assert bool(jnp.isfinite(classification).all()) and bool(jnp.isfinite(generated).all())
    print("KERNEL_OK")
</pallas_src>

<mosaic_0001>
module attributes {stable_mosaic.version = 11 : i64} {
  func.func @_fused_forward_kernel(%arg0: i32, %arg1: memref<1x16x16xf32, #tpu.memory_space<vmem>>, %arg2: memref<1x1x16xf32, #tpu.memory_space<vmem>>, %arg3: memref<16x32xf32, #tpu.memory_space<vmem>>, %arg4: memref<1x16x32xf32, #tpu.memory_space<vmem>>, %arg5: memref<1x32xf32, #tpu.memory_space<vmem>>, %arg6: memref<1x32xf32, #tpu.memory_space<vmem>>, %arg7: memref<2x32x96xf32, #tpu.memory_space<vmem>>, %arg8: memref<2x1x96xf32, #tpu.memory_space<vmem>>, %arg9: memref<2x32x32xf32, #tpu.memory_space<vmem>>, %arg10: memref<2x1x32xf32, #tpu.memory_space<vmem>>, %arg11: memref<2x1x32xf32, #tpu.memory_space<vmem>>, %arg12: memref<2x1x32xf32, #tpu.memory_space<vmem>>, %arg13: memref<2x32x128xf32, #tpu.memory_space<vmem>>, %arg14: memref<2x1x128xf32, #tpu.memory_space<vmem>>, %arg15: memref<2x128x32xf32, #tpu.memory_space<vmem>>, %arg16: memref<2x1x32xf32, #tpu.memory_space<vmem>>, %arg17: memref<2x1x32xf32, #tpu.memory_space<vmem>>, %arg18: memref<2x1x32xf32, #tpu.memory_space<vmem>>, %arg19: memref<32x128xf32, #tpu.memory_space<vmem>>, %arg20: memref<1x128xf32, #tpu.memory_space<vmem>>, %arg21: memref<1x16x128xf32, #tpu.memory_space<vmem>>, %arg22: memref<16x32xf32, #tpu.memory_space<vmem>>) attributes {dimension_semantics = [#tpu.dimension_semantics<parallel>], iteration_bounds = array<i64: 2>, scalar_prefetch = 0 : i64, scratch_operands = 1 : i64, tpu.core_type = #tpu.core_type<tc>, window_params = [{transform_indices = @transform_0, window_bounds = array<i64: 1, 16, 16>}, {transform_indices = @transform_1, window_bounds = array<i64: 1, 1, 16>}, {pipeline_mode = #tpu.pipeline_mode<synchronous>, transform_indices = @transform_2, window_bounds = array<i64: 16, 32>}, {pipeline_mode = #tpu.pipeline_mode<synchronous>, transform_indices = @transform_3, window_bounds = array<i64: 1, 16, 32>}, {pipeline_mode = #tpu.pipeline_mode<synchronous>, transform_indices = @transform_4, window_bounds = array<i64: 1, 32>}, {pipeline_mode = #tpu.pipeline_mode<synchronous>, transform_indices = @transform_5, window_bounds = array<i64: 1, 32>}, {pipeline_mode = #tpu.pipeline_mode<synchronous>, transform_indices = @transform_6, window_bounds = array<i64: 2, 32, 96>}, {pipeline_mode = #tpu.pipeline_mode<synchronous>, transform_indices = @transform_7, window_bounds = array<i64: 2, 1, 96>}, {pipeline_mode = #tpu.pipeline_mode<synchronous>, transform_indices = @transform_8, window_bounds = array<i64: 2, 32, 32>}, {pipeline_mode = #tpu.pipeline_mode<synchronous>, transform_indices = @transform_9, window_bounds = array<i64: 2, 1, 32>}, {pipeline_mode = #tpu.pipeline_mode<synchronous>, transform_indices = @transform_10, window_bounds = array<i64: 2, 1, 32>}, {pipeline_mode = #tpu.pipeline_mode<synchronous>, transform_indices = @transform_11, window_bounds = array<i64: 2, 1, 32>}, {pipeline_mode = #tpu.pipeline_mode<synchronous>, transform_indices = @transform_12, window_bounds = array<i64: 2, 32, 128>}, {pipeline_mode = #tpu.pipeline_mode<synchronous>, transform_indices = @transform_13, window_bounds = array<i64: 2, 1, 128>}, {pipeline_mode = #tpu.pipeline_mode<synchronous>, transform_indices = @transform_14, window_bounds = array<i64: 2, 128, 32>}, {pipeline_mode = #tpu.pipeline_mode<synchronous>, transform_indices = @transform_15, window_bounds = array<i64: 2, 1, 32>}, {pipeline_mode = #tpu.pipeline_mode<synchronous>, transform_indices = @transform_16, window_bounds = array<i64: 2, 1, 32>}, {pipeline_mode = #tpu.pipeline_mode<synchronous>, transform_indices = @transform_17, window_bounds = array<i64: 2, 1, 32>}, {pipeline_mode = #tpu.pipeline_mode<synchronous>, transform_indices = @transform_18, window_bounds = array<i64: 32, 128>}, {pipeline_mode = #tpu.pipeline_mode<synchronous>, transform_indices = @transform_19, window_bounds = array<i64: 1, 128>}, {transform_indices = @transform_20, window_bounds = array<i64: 1, 16, 128>}]} {
    %c0 = arith.constant 0 : index
    %c0_0 = arith.constant 0 : index
    %c0_1 = arith.constant 0 : index
    %0 = vector.load %arg1[%c0, %c0_0, %c0_1] : memref<1x16x16xf32, #tpu.memory_space<vmem>>, vector<1x16x16xf32>
    %1 = vector.shape_cast %0 : vector<1x16x16xf32> to vector<16x16xf32>
    %c0_2 = arith.constant 0 : index
    %c0_3 = arith.constant 0 : index
    %c0_4 = arith.constant 0 : index
    %2 = vector.load %arg2[%c0_2, %c0_3, %c0_4] : memref<1x1x16xf32, #tpu.memory_space<vmem>>, vector<1x1x16xf32>
    %3 = vector.shape_cast %2 : vector<1x1x16xf32> to vector<1x16xf32>
    %4 = vector.shape_cast %3 : vector<1x16xf32> to vector<1x16xf32>
    %5 = vector.broadcast %4 : vector<1x16xf32> to vector<16x16xf32>
    %c0_5 = arith.constant 0 : index
    %c0_6 = arith.constant 0 : index
    %6 = vector.load %arg3[%c0_5, %c0_6] : memref<16x32xf32, #tpu.memory_space<vmem>>, vector<16x32xf32>
    %cst = arith.constant dense<0.000000e+00> : vector<16x32xf32>
    %7 = tpu.matmul %1, %6, %cst {dimension_numbers = #tpu.dot_dimension_numbers<[1], [0], [0], [1], [0, 0, 1, 1], [], []>} : vector<16x16xf32>, vector<16x32xf32>, vector<16x32xf32> -> vector<16x32xf32>
    %c0_7 = arith.constant 0 : index
    %c0_8 = arith.constant 0 : index
    %c0_9 = arith.constant 0 : index
    %8 = vector.load %arg4[%c0_7, %c0_8, %c0_9] : memref<1x16x32xf32, #tpu.memory_space<vmem>>, vector<1x16x32xf32>
    %9 = vector.shape_cast %8 : vector<1x16x32xf32> to vector<16x32xf32>
    %10 = arith.addf %7, %9 : vector<16x32xf32>
    %c0_10 = arith.constant 0 : index
    %c0_11 = arith.constant 0 : index
    %11 = vector.load %arg5[%c0_10, %c0_11] : memref<1x32xf32, #tpu.memory_space<vmem>>, vector<1x32xf32>
    %c0_12 = arith.constant 0 : index
    %c0_13 = arith.constant 0 : index
    %12 = vector.load %arg6[%c0_12, %c0_13] : memref<1x32xf32, #tpu.memory_space<vmem>>, vector<1x32xf32>
    %cst_14 = arith.constant dense<0.000000e+00> : vector<16xf32>
    %13 = vector.multi_reduction <add>, %10, %cst_14 [1] : vector<16x32xf32> to vector<16xf32>
    %14 = vector.shape_cast %13 : vector<16xf32> to vector<16x1xf32>
    %cst_15 = arith.constant 3.200000e+01 : f32
    %15 = vector.broadcast %cst_15 : f32 to vector<16x1xf32>
    %16 = arith.divf %14, %15 : vector<16x1xf32>
    %17 = vector.broadcast %16 : vector<16x1xf32> to vector<16x32xf32>
    %18 = arith.subf %10, %17 : vector<16x32xf32>
    %19 = arith.mulf %18, %18 : vector<16x32xf32>
    %cst_16 = arith.constant dense<0.000000e+00> : vector<16xf32>
    %20 = vector.multi_reduction <add>, %19, %cst_16 [1] : vector<16x32xf32> to vector<16xf32>
    %21 = vector.shape_cast %20 : vector<16xf32> to vector<16x1xf32>
    %cst_17 = arith.constant 3.200000e+01 : f32
    %22 = vector.broadcast %cst_17 : f32 to vector<16x1xf32>
    %23 = arith.divf %21, %22 : vector<16x1xf32>
    %24 = vector.broadcast %16 : vector<16x1xf32> to vector<16x32xf32>
    %25 = arith.subf %10, %24 : vector<16x32xf32>
    %cst_18 = arith.constant 9.99999996E-13 : f32
    %26 = vector.broadcast %cst_18 : f32 to vector<16x1xf32>
    %27 = arith.addf %23, %26 : vector<16x1xf32>
    %28 = math.rsqrt %27 : vector<16x1xf32>
    %29 = vector.broadcast %28 : vector<16x1xf32> to vector<16x32xf32>
    %30 = arith.mulf %25, %29 : vector<16x32xf32>
    %31 = vector.broadcast %11 : vector<1x32xf32> to vector<16x32xf32>
    %32 = arith.mulf %30, %31 : vector<16x32xf32>
    %33 = vector.broadcast %12 : vector<1x32xf32> to vector<16x32xf32>
    %34 = arith.addf %32, %33 : vector<16x32xf32>
    %c0_19 = arith.constant 0 : index
    %c0_20 = arith.constant 0 : index
    %c0_21 = arith.constant 0 : index
    %35 = vector.load %arg7[%c0_19, %c0_20, %c0_21] : memref<2x32x96xf32, #tpu.memory_space<vmem>>, vector<1x32x96xf32>
    %36 = vector.shape_cast %35 : vector<1x32x96xf32> to vector<32x96xf32>
    %cst_22 = arith.constant dense<0.000000e+00> : vector<16x96xf32>
    %37 = tpu.matmul %34, %36, %cst_22 {dimension_numbers = #tpu.dot_dimension_numbers<[1], [0], [0], [1], [0, 0, 1, 1], [], []>} : vector<16x32xf32>, vector<32x96xf32>, vector<16x96xf32> -> vector<16x96xf32>
    %c0_23 = arith.constant 0 : index
    %c0_24 = arith.constant 0 : index
    %c0_25 = arith.constant 0 : index
    %38 = vector.load %arg8[%c0_23, %c0_24, %c0_25] : memref<2x1x96xf32, #tpu.memory_space<vmem>>, vector<1x1x96xf32>
    %39 = vector.shape_cast %38 : vector<1x1x96xf32> to vector<1x96xf32>
    %40 = vector.broadcast %39 : vector<1x96xf32> to vector<16x96xf32>
    %41 = arith.addf %37, %40 : vector<16x96xf32>
    %42 = vector.extract_strided_slice %41 {offsets = [0, 0], sizes = [16, 8], strides = [1, 1]} : vector<16x96xf32> to vector<16x8xf32>
    %43 = vector.extract_strided_slice %41 {offsets = [0, 32], sizes = [16, 8], strides = [1, 1]} : vector<16x96xf32> to vector<16x8xf32>
    %44 = vector.extract_strided_slice %41 {offsets = [0, 64], sizes = [16, 8], strides = [1, 1]} : vector<16x96xf32> to vector<16x8xf32>
    %cst_26 = arith.constant dense<0.000000e+00> : vector<16x16xf32>
    %45 = tpu.matmul %42, %43, %cst_26 {dimension_numbers = #tpu.dot_dimension_numbers<[1], [1], [0], [0], [0, 0, 1, 0], [], []>} : vector<16x8xf32>, vector<16x8xf32>, vector<16x16xf32> -> vector<16x16xf32>
    %cst_27 = arith.constant 0.353553385 : f32
    %46 = vector.broadcast %cst_27 : f32 to vector<16x16xf32>
    %47 = arith.mulf %45, %46 : vector<16x16xf32>
    %48 = arith.addf %47, %5 : vector<16x16xf32>
    %cst_28 = arith.constant dense<0xFF800000> : vector<16xf32>
    %49 = vector.multi_reduction <maximumf>, %48, %cst_28 [1] : vector<16x16xf32> to vector<16xf32>
    %50 = vector.shape_cast %49 : vector<16xf32> to vector<16x1xf32>
    %51 = vector.broadcast %50 : vector<16x1xf32> to vector<16x16xf32>
    %52 = arith.subf %48, %51 : vector<16x16xf32>
    %53 = math.exp %52 : vector<16x16xf32>
    %cst_29 = arith.constant dense<0.000000e+00> : vector<16xf32>
    %54 = vector.multi_reduction <add>, %53, %cst_29 [1] : vector<16x16xf32> to vector<16xf32>
    %55 = vector.shape_cast %54 : vector<16xf32> to vector<16x1xf32>
    %56 = tpu.reciprocal %55 {approx = true} : vector<16x1xf32> -> vector<16x1xf32>
    %57 = vector.broadcast %56 : vector<16x1xf32> to vector<16x16xf32>
    %58 = arith.mulf %53, %57 : vector<16x16xf32>
    %cst_30 = arith.constant dense<0.000000e+00> : vector<16x8xf32>
    %59 = tpu.matmul %58, %44, %cst_30 {dimension_numbers = #tpu.dot_dimension_numbers<[1], [0], [0], [1], [0, 0, 1, 1], [], []>} : vector<16x16xf32>, vector<16x8xf32>, vector<16x8xf32> -> vector<16x8xf32>
    %c0_31 = arith.constant 0 : index
    %c0_32 = arith.constant 0 : index
    %60 = vector.load %arg22[%c0_31, %c0_32] : memref<16x32xf32, #tpu.memory_space<vmem>>, vector<16x8xf32>
    tpu.vector_store %arg22[%c0_31, %c0_32], %59 {strides = array<i32>} : memref<16x32xf32, #tpu.memory_space<vmem>>, vector<16x8xf32>,
    %61 = vector.extract_strided_slice %41 {offsets = [0, 8], sizes = [16, 8], strides = [1, 1]} : vector<16x96xf32> to vector<16x8xf32>
    %62 = vector.extract_strided_slice %41 {offsets = [0, 40], sizes = [16, 8], strides = [1, 1]} : vector<16x96xf32> to vector<16x8xf32>
    %63 = vector.extract_strided_slice %41 {offsets = [0, 72], sizes = [16, 8], strides = [1, 1]} : vector<16x96xf32> to vector<16x8xf32>
    %cst_33 = arith.constant dense<0.000000e+00> : vector<16x16xf32>
    %64 = tpu.matmul %61, %62, %cst_33 {dimension_numbers = #tpu.dot_dimension_numbers<[1], [1], [0], [0], [0, 0, 1, 0], [], []>} : vector<16x8xf32>, vector<16x8xf32>, vector<16x16xf32> -> vector<16x16xf32>
    %cst_34 = arith.constant 0.353553385 : f32
    %65 = vector.broadcast %cst_34 : f32 to vector<16x16xf32>
    %66 = arith.mulf %64, %65 : vector<16x16xf32>
    %67 = arith.addf %66, %5 : vector<16x16xf32>
    %cst_35 = arith.constant dense<0xFF800000> : vector<16xf32>
    %68 = vector.multi_reduction <maximumf>, %67, %cst_35 [1] : vector<16x16xf32> to vector<16xf32>
    %69 = vector.shape_cast %68 : vector<16xf32> to vector<16x1xf32>
    %70 = vector.broadcast %69 : vector<16x1xf32> to vector<16x16xf32>
    %71 = arith.subf %67, %70 : vector<16x16xf32>
    %72 = math.exp %71 : vector<16x16xf32>
    %cst_36 = arith.constant dense<0.000000e+00> : vector<16xf32>
    %73 = vector.multi_reduction <add>, %72, %cst_36 [1] : vector<16x16xf32> to vector<16xf32>
    %74 = vector.shape_cast %73 : vector<16xf32> to vector<16x1xf32>
    %75 = tpu.reciprocal %74 {approx = true} : vector<16x1xf32> -> vector<16x1xf32>
    %76 = vector.broadcast %75 : vector<16x1xf32> to vector<16x16xf32>
    %77 = arith.mulf %72, %76 : vector<16x16xf32>
    %cst_37 = arith.constant dense<0.000000e+00> : vector<16x8xf32>
    %78 = tpu.matmul %77, %63, %cst_37 {dimension_numbers = #tpu.dot_dimension_numbers<[1], [0], [0], [1], [0, 0, 1, 1], [], []>} : vector<16x16xf32>, vector<16x8xf32>, vector<16x8xf32> -> vector<16x8xf32>
    %c0_38 = arith.constant 0 : index
    %c8 = arith.constant 8 : index
    %79 = vector.load %arg22[%c0_38, %c8] : memref<16x32xf32, #tpu.memory_space<vmem>>, vector<16x8xf32>
    tpu.vector_store %arg22[%c0_38, %c8], %78 {strides = array<i32>} : memref<16x32xf32, #tpu.memory_space<vmem>>, vector<16x8xf32>,
    %80 = vector.extract_strided_slice %41 {offsets = [0, 16], sizes = [16, 8], strides = [1, 1]} : vector<16x96xf32> to vector<16x8xf32>
    %81 = vector.extract_strided_slice %41 {offsets = [0, 48], sizes = [16, 8], strides = [1, 1]} : vector<16x96xf32> to vector<16x8xf32>
    %82 = vector.extract_strided_slice %41 {offsets = [0, 80], sizes = [16, 8], strides = [1, 1]} : vector<16x96xf32> to vector<16x8xf32>
    %cst_39 = arith.constant dense<0.000000e+00> : vector<16x16xf32>
    %83 = tpu.matmul %80, %81, %cst_39 {dimension_numbers = #tpu.dot_dimension_numbers<[1], [1], [0], [0], [0, 0, 1, 0], [], []>} : vector<16x8xf32>, vector<16x8xf32>, vector<16x16xf32> -> vector<16x16xf32>
    %cst_40 = arith.constant 0.353553385 : f32
    %84 = vector.broadcast %cst_40 : f32 to vector<16x16xf32>
    %85 = arith.mulf %83, %84 : vector<16x16xf32>
    %86 = arith.addf %85, %5 : vector<16x16xf32>
    %cst_41 = arith.constant dense<0xFF800000> : vector<16xf32>
    %87 = vector.multi_reduction <maximumf>, %86, %cst_41 [1] : vector<16x16xf32> to vector<16xf32>
    %88 = vector.shape_cast %87 : vector<16xf32> to vector<16x1xf32>
    %89 = vector.broadcast %88 : vector<16x1xf32> to vector<16x16xf32>
    %90 = arith.subf %86, %89 : vector<16x16xf32>
    %91 = math.exp %90 : vector<16x16xf32>
    %cst_42 = arith.constant dense<0.000000e+00> : vector<16xf32>
    %92 = vector.multi_reduction <add>, %91, %cst_42 [1] : vector<16x16xf32> to vector<16xf32>
    %93 = vector.shape_cast %92 : vector<16xf32> to vector<16x1xf32>
    %94 = tpu.reciprocal %93 {approx = true} : vector<16x1xf32> -> vector<16x1xf32>
    %95 = vector.broadcast %94 : vector<16x1xf32> to vector<16x16xf32>
    %96 = arith.mulf %91, %95 : vector<16x16xf32>
    %cst_43 = arith.constant dense<0.000000e+00> : vector<16x8xf32>
    %97 = tpu.matmul %96, %82, %cst_43 {dimension_numbers = #tpu.dot_dimension_numbers<[1], [0], [0], [1], [0, 0, 1, 1], [], []>} : vector<16x16xf32>, vector<16x8xf32>, vector<16x8xf32> -> vector<16x8xf32>
    %c0_44 = arith.constant 0 : index
    %c16 = arith.constant 16 : index
    %98 = vector.load %arg22[%c0_44, %c16] : memref<16x32xf32, #tpu.memory_space<vmem>>, vector<16x8xf32>
    tpu.vector_store %arg22[%c0_44, %c16], %97 {strides = array<i32>} : memref<16x32xf32, #tpu.memory_space<vmem>>, vector<16x8xf32>,
    %99 = vector.extract_strided_slice %41 {offsets = [0, 24], sizes = [16, 8], strides = [1, 1]} : vector<16x96xf32> to vector<16x8xf32>
    %100 = vector.extract_strided_slice %41 {offsets = [0, 56], sizes = [16, 8], strides = [1, 1]} : vector<16x96xf32> to vector<16x8xf32>
    %101 = vector.extract_strided_slice %41 {offsets = [0, 88], sizes = [16, 8], strides = [1, 1]} : vector<16x96xf32> to vector<16x8xf32>
    %cst_45 = arith.constant dense<0.000000e+00> : vector<16x16xf32>
    %102 = tpu.matmul %99, %100, %cst_45 {dimension_numbers = #tpu.dot_dimension_numbers<[1], [1], [0], [0], [0, 0, 1, 0], [], []>} : vector<16x8xf32>, vector<16x8xf32>, vector<16x16xf32> -> vector<16x16xf32>
    %cst_46 = arith.constant 0.353553385 : f32
    %103 = vector.broadcast %cst_46 : f32 to vector<16x16xf32>
    %104 = arith.mulf %102, %103 : vector<16x16xf32>
    %105 = arith.addf %104, %5 : vector<16x16xf32>
    %cst_47 = arith.constant dense<0xFF800000> : vector<16xf32>
    %106 = vector.multi_reduction <maximumf>, %105, %cst_47 [1] : vector<16x16xf32> to vector<16xf32>
    %107 = vector.shape_cast %106 : vector<16xf32> to vector<16x1xf32>
    %108 = vector.broadcast %107 : vector<16x1xf32> to vector<16x16xf32>
    %109 = arith.subf %105, %108 : vector<16x16xf32>
    %110 = math.exp %109 : vector<16x16xf32>
    %cst_48 = arith.constant dense<0.000000e+00> : vector<16xf32>
    %111 = vector.multi_reduction <add>, %110, %cst_48 [1] : vector<16x16xf32> to vector<16xf32>
    %112 = vector.shape_cast %111 : vector<16xf32> to vector<16x1xf32>
    %113 = tpu.reciprocal %112 {approx = true} : vector<16x1xf32> -> vector<16x1xf32>
    %114 = vector.broadcast %113 : vector<16x1xf32> to vector<16x16xf32>
    %115 = arith.mulf %110, %114 : vector<16x16xf32>
    %cst_49 = arith.constant dense<0.000000e+00> : vector<16x8xf32>
    %116 = tpu.matmul %115, %101, %cst_49 {dimension_numbers = #tpu.dot_dimension_numbers<[1], [0], [0], [1], [0, 0, 1, 1], [], []>} : vector<16x16xf32>, vector<16x8xf32>, vector<16x8xf32> -> vector<16x8xf32>
    %c0_50 = arith.constant 0 : index
    %c24 = arith.constant 24 : index
    %117 = vector.load %arg22[%c0_50, %c24] : memref<16x32xf32, #tpu.memory_space<vmem>>, vector<16x8xf32>
    tpu.vector_store %arg22[%c0_50, %c24], %116 {strides = array<i32>} : memref<16x32xf32, #tpu.memory_space<vmem>>, vector<16x8xf32>,
    %c0_51 = arith.constant 0 : index
    %c0_52 = arith.constant 0 : index
    %118 = vector.load %arg22[%c0_51, %c0_52] : memref<16x32xf32, #tpu.memory_space<vmem>>, vector<16x32xf32>
    %c0_53 = arith.constant 0 : index
    %c0_54 = arith.constant 0 : index
    %c0_55 = arith.constant 0 : index
    %119 = vector.load %arg9[%c0_53, %c0_54, %c0_55] : memref<2x32x32xf32, #tpu.memory_space<vmem>>, vector<1x32x32xf32>
    %120 = vector.shape_cast %119 : vector<1x32x32xf32> to vector<32x32xf32>
    %cst_56 = arith.constant dense<0.000000e+00> : vector<16x32xf32>
    %121 = tpu.matmul %118, %120, %cst_56 {dimension_numbers = #tpu.dot_dimension_numbers<[1], [0], [0], [1], [0, 0, 1, 1], [], []>} : vector<16x32xf32>, vector<32x32xf32>, vector<16x32xf32> -> vector<16x32xf32>
    %c0_57 = arith.constant 0 : index
    %c0_58 = arith.constant 0 : index
    %c0_59 = arith.constant 0 : index
    %122 = vector.load %arg10[%c0_57, %c0_58, %c0_59] : memref<2x1x32xf32, #tpu.memory_space<vmem>>, vector<1x1x32xf32>
    %123 = vector.shape_cast %122 : vector<1x1x32xf32> to vector<1x32xf32>
    %124 = vector.broadcast %123 : vector<1x32xf32> to vector<16x32xf32>
    %125 = arith.addf %121, %124 : vector<16x32xf32>
    %126 = arith.addf %125, %34 : vector<16x32xf32>
    %c0_60 = arith.constant 0 : index
    %c0_61 = arith.constant 0 : index
    %c0_62 = arith.constant 0 : index
    %127 = vector.load %arg11[%c0_60, %c0_61, %c0_62] : memref<2x1x32xf32, #tpu.memory_space<vmem>>, vector<1x1x32xf32>
    %128 = vector.shape_cast %127 : vector<1x1x32xf32> to vector<1x32xf32>
    %c0_63 = arith.constant 0 : index
    %c0_64 = arith.constant 0 : index
    %c0_65 = arith.constant 0 : index
    %129 = vector.load %arg12[%c0_63, %c0_64, %c0_65] : memref<2x1x32xf32, #tpu.memory_space<vmem>>, vector<1x1x32xf32>
    %130 = vector.shape_cast %129 : vector<1x1x32xf32> to vector<1x32xf32>
    %cst_66 = arith.constant dense<0.000000e+00> : vector<16xf32>
    %131 = vector.multi_reduction <add>, %126, %cst_66 [1] : vector<16x32xf32> to vector<16xf32>
    %132 = vector.shape_cast %131 : vector<16xf32> to vector<16x1xf32>
    %cst_67 = arith.constant 3.200000e+01 : f32
    %133 = vector.broadcast %cst_67 : f32 to vector<16x1xf32>
    %134 = arith.divf %132, %133 : vector<16x1xf32>
    %135 = vector.broadcast %134 : vector<16x1xf32> to vector<16x32xf32>
    %136 = arith.subf %126, %135 : vector<16x32xf32>
    %137 = arith.mulf %136, %136 : vector<16x32xf32>
    %cst_68 = arith.constant dense<0.000000e+00> : vector<16xf32>
    %138 = vector.multi_reduction <add>, %137, %cst_68 [1] : vector<16x32xf32> to vector<16xf32>
    %139 = vector.shape_cast %138 : vector<16xf32> to vector<16x1xf32>
    %cst_69 = arith.constant 3.200000e+01 : f32
    %140 = vector.broadcast %cst_69 : f32 to vector<16x1xf32>
    %141 = arith.divf %139, %140 : vector<16x1xf32>
    %142 = vector.broadcast %134 : vector<16x1xf32> to vector<16x32xf32>
    %143 = arith.subf %126, %142 : vector<16x32xf32>
    %cst_70 = arith.constant 9.99999996E-13 : f32
    %144 = vector.broadcast %cst_70 : f32 to vector<16x1xf32>
    %145 = arith.addf %141, %144 : vector<16x1xf32>
    %146 = math.rsqrt %145 : vector<16x1xf32>
    %147 = vector.broadcast %146 : vector<16x1xf32> to vector<16x32xf32>
    %148 = arith.mulf %143, %147 : vector<16x32xf32>
    %149 = vector.broadcast %128 : vector<1x32xf32> to vector<16x32xf32>
    %150 = arith.mulf %148, %149 : vector<16x32xf32>
    %151 = vector.broadcast %130 : vector<1x32xf32> to vector<16x32xf32>
    %152 = arith.addf %150, %151 : vector<16x32xf32>
    %c0_71 = arith.constant 0 : index
    %c0_72 = arith.constant 0 : index
    %c0_73 = arith.constant 0 : index
    %153 = vector.load %arg13[%c0_71, %c0_72, %c0_73] : memref<2x32x128xf32, #tpu.memory_space<vmem>>, vector<1x32x128xf32>
    %154 = vector.shape_cast %153 : vector<1x32x128xf32> to vector<32x128xf32>
    %cst_74 = arith.constant dense<0.000000e+00> : vector<16x128xf32>
    %155 = tpu.matmul %152, %154, %cst_74 {dimension_numbers = #tpu.dot_dimension_numbers<[1], [0], [0], [1], [0, 0, 1, 1], [], []>} : vector<16x32xf32>, vector<32x128xf32>, vector<16x128xf32> -> vector<16x128xf32>
    %c0_75 = arith.constant 0 : index
    %c0_76 = arith.constant 0 : index
    %c0_77 = arith.constant 0 : index
    %156 = vector.load %arg14[%c0_75, %c0_76, %c0_77] : memref<2x1x128xf32, #tpu.memory_space<vmem>>, vector<1x1x128xf32>
    %157 = vector.shape_cast %156 : vector<1x1x128xf32> to vector<1x128xf32>
    %158 = vector.broadcast %157 : vector<1x128xf32> to vector<16x128xf32>
    %159 = arith.addf %155, %158 : vector<16x128xf32>
    %160 = arith.mulf %159, %159 : vector<16x128xf32>
    %161 = arith.mulf %159, %160 : vector<16x128xf32>
    %cst_78 = arith.constant 4.471500e-02 : f32
    %162 = vector.broadcast %cst_78 : f32 to vector<16x128xf32>
    %163 = arith.mulf %162, %161 : vector<16x128xf32>
    %164 = arith.addf %159, %163 : vector<16x128xf32>
    %cst_79 = arith.constant 0.797884583 : f32
    %165 = vector.broadcast %cst_79 : f32 to vector<16x128xf32>
    %166 = arith.mulf %165, %164 : vector<16x128xf32>
    %167 = math.tanh %166 : vector<16x128xf32>
    %cst_80 = arith.constant 1.000000e+00 : f32
    %168 = vector.broadcast %cst_80 : f32 to vector<16x128xf32>
    %169 = arith.addf %168, %167 : vector<16x128xf32>
    %cst_81 = arith.constant 5.000000e-01 : f32
    %170 = vector.broadcast %cst_81 : f32 to vector<16x128xf32>
    %171 = arith.mulf %170, %169 : vector<16x128xf32>
    %172 = arith.mulf %159, %171 : vector<16x128xf32>
    %c0_82 = arith.constant 0 : index
    %c0_83 = arith.constant 0 : index
    %c0_84 = arith.constant 0 : index
    %173 = vector.load %arg15[%c0_82, %c0_83, %c0_84] : memref<2x128x32xf32, #tpu.memory_space<vmem>>, vector<1x128x32xf32>
    %174 = vector.shape_cast %173 : vector<1x128x32xf32> to vector<128x32xf32>
    %cst_85 = arith.constant dense<0.000000e+00> : vector<16x32xf32>
    %175 = tpu.matmul %172, %174, %cst_85 {dimension_numbers = #tpu.dot_dimension_numbers<[1], [0], [0], [1], [0, 0, 1, 1], [], []>} : vector<16x128xf32>, vector<128x32xf32>, vector<16x32xf32> -> vector<16x32xf32>
    %c0_86 = arith.constant 0 : index
    %c0_87 = arith.constant 0 : index
    %c0_88 = arith.constant 0 : index
    %176 = vector.load %arg16[%c0_86, %c0_87, %c0_88] : memref<2x1x32xf32, #tpu.memory_space<vmem>>, vector<1x1x32xf32>
    %177 = vector.shape_cast %176 : vector<1x1x32xf32> to vector<1x32xf32>
    %178 = vector.broadcast %177 : vector<1x32xf32> to vector<16x32xf32>
    %179 = arith.addf %175, %178 : vector<16x32xf32>
    %180 = arith.addf %179, %152 : vector<16x32xf32>
    %c0_89 = arith.constant 0 : index
    %c0_90 = arith.constant 0 : index
    %c0_91 = arith.constant 0 : index
    %181 = vector.load %arg17[%c0_89, %c0_90, %c0_91] : memref<2x1x32xf32, #tpu.memory_space<vmem>>, vector<1x1x32xf32>
    %182 = vector.shape_cast %181 : vector<1x1x32xf32> to vector<1x32xf32>
    %c0_92 = arith.constant 0 : index
    %c0_93 = arith.constant 0 : index
    %c0_94 = arith.constant 0 : index
    %183 = vector.load %arg18[%c0_92, %c0_93, %c0_94] : memref<2x1x32xf32, #tpu.memory_space<vmem>>, vector<1x1x32xf32>
    %184 = vector.shape_cast %183 : vector<1x1x32xf32> to vector<1x32xf32>
    %cst_95 = arith.constant dense<0.000000e+00> : vector<16xf32>
    %185 = vector.multi_reduction <add>, %180, %cst_95 [1] : vector<16x32xf32> to vector<16xf32>
    %186 = vector.shape_cast %185 : vector<16xf32> to vector<16x1xf32>
    %cst_96 = arith.constant 3.200000e+01 : f32
    %187 = vector.broadcast %cst_96 : f32 to vector<16x1xf32>
    %188 = arith.divf %186, %187 : vector<16x1xf32>
    %189 = vector.broadcast %188 : vector<16x1xf32> to vector<16x32xf32>
    %190 = arith.subf %180, %189 : vector<16x32xf32>
    %191 = arith.mulf %190, %190 : vector<16x32xf32>
    %cst_97 = arith.constant dense<0.000000e+00> : vector<16xf32>
    %192 = vector.multi_reduction <add>, %191, %cst_97 [1] : vector<16x32xf32> to vector<16xf32>
    %193 = vector.shape_cast %192 : vector<16xf32> to vector<16x1xf32>
    %cst_98 = arith.constant 3.200000e+01 : f32
    %194 = vector.broadcast %cst_98 : f32 to vector<16x1xf32>
    %195 = arith.divf %193, %194 : vector<16x1xf32>
    %196 = vector.broadcast %188 : vector<16x1xf32> to vector<16x32xf32>
    %197 = arith.subf %180, %196 : vector<16x32xf32>
    %cst_99 = arith.constant 9.99999996E-13 : f32
    %198 = vector.broadcast %cst_99 : f32 to vector<16x1xf32>
    %199 = arith.addf %195, %198 : vector<16x1xf32>
    %200 = math.rsqrt %199 : vector<16x1xf32>
    %201 = vector.broadcast %200 : vector<16x1xf32> to vector<16x32xf32>
    %202 = arith.mulf %197, %201 : vector<16x32xf32>
    %203 = vector.broadcast %182 : vector<1x32xf32> to vector<16x32xf32>
    %204 = arith.mulf %202, %203 : vector<16x32xf32>
    %205 = vector.broadcast %184 : vector<1x32xf32> to vector<16x32xf32>
    %206 = arith.addf %204, %205 : vector<16x32xf32>
    %c1 = arith.constant 1 : index
    %c0_100 = arith.constant 0 : index
    %c0_101 = arith.constant 0 : index
    %207 = vector.load %arg7[%c1, %c0_100, %c0_101] : memref<2x32x96xf32, #tpu.memory_space<vmem>>, vector<1x32x96xf32>
    %208 = vector.shape_cast %207 : vector<1x32x96xf32> to vector<32x96xf32>
    %cst_102 = arith.constant dense<0.000000e+00> : vector<16x96xf32>
    %209 = tpu.matmul %206, %208, %cst_102 {dimension_numbers = #tpu.dot_dimension_numbers<[1], [0], [0], [1], [0, 0, 1, 1], [], []>} : vector<16x32xf32>, vector<32x96xf32>, vector<16x96xf32> -> vector<16x96xf32>
    %c1_103 = arith.constant 1 : index
    %c0_104 = arith.constant 0 : index
    %c0_105 = arith.constant 0 : index
    %210 = vector.load %arg8[%c1_103, %c0_104, %c0_105] : memref<2x1x96xf32, #tpu.memory_space<vmem>>, vector<1x1x96xf32>
    %211 = vector.shape_cast %210 : vector<1x1x96xf32> to vector<1x96xf32>
    %212 = vector.broadcast %211 : vector<1x96xf32> to vector<16x96xf32>
    %213 = arith.addf %209, %212 : vector<16x96xf32>
    %214 = vector.extract_strided_slice %213 {offsets = [0, 0], sizes = [16, 8], strides = [1, 1]} : vector<16x96xf32> to vector<16x8xf32>
    %215 = vector.extract_strided_slice %213 {offsets = [0, 32], sizes = [16, 8], strides = [1, 1]} : vector<16x96xf32> to vector<16x8xf32>
    %216 = vector.extract_strided_slice %213 {offsets = [0, 64], sizes = [16, 8], strides = [1, 1]} : vector<16x96xf32> to vector<16x8xf32>
    %cst_106 = arith.constant dense<0.000000e+00> : vector<16x16xf32>
    %217 = tpu.matmul %214, %215, %cst_106 {dimension_numbers = #tpu.dot_dimension_numbers<[1], [1], [0], [0], [0, 0, 1, 0], [], []>} : vector<16x8xf32>, vector<16x8xf32>, vector<16x16xf32> -> vector<16x16xf32>
    %cst_107 = arith.constant 0.353553385 : f32
    %218 = vector.broadcast %cst_107 : f32 to vector<16x16xf32>
    %219 = arith.mulf %217, %218 : vector<16x16xf32>
    %220 = arith.addf %219, %5 : vector<16x16xf32>
    %cst_108 = arith.constant dense<0xFF800000> : vector<16xf32>
    %221 = vector.multi_reduction <maximumf>, %220, %cst_108 [1] : vector<16x16xf32> to vector<16xf32>
    %222 = vector.shape_cast %221 : vector<16xf32> to vector<16x1xf32>
    %223 = vector.broadcast %222 : vector<16x1xf32> to vector<16x16xf32>
    %224 = arith.subf %220, %223 : vector<16x16xf32>
    %225 = math.exp %224 : vector<16x16xf32>
    %cst_109 = arith.constant dense<0.000000e+00> : vector<16xf32>
    %226 = vector.multi_reduction <add>, %225, %cst_109 [1] : vector<16x16xf32> to vector<16xf32>
    %227 = vector.shape_cast %226 : vector<16xf32> to vector<16x1xf32>
    %228 = tpu.reciprocal %227 {approx = true} : vector<16x1xf32> -> vector<16x1xf32>
    %229 = vector.broadcast %228 : vector<16x1xf32> to vector<16x16xf32>
    %230 = arith.mulf %225, %229 : vector<16x16xf32>
    %cst_110 = arith.constant dense<0.000000e+00> : vector<16x8xf32>
    %231 = tpu.matmul %230, %216, %cst_110 {dimension_numbers = #tpu.dot_dimension_numbers<[1], [0], [0], [1], [0, 0, 1, 1], [], []>} : vector<16x16xf32>, vector<16x8xf32>, vector<16x8xf32> -> vector<16x8xf32>
    %c0_111 = arith.constant 0 : index
    %c0_112 = arith.constant 0 : index
    %232 = vector.load %arg22[%c0_111, %c0_112] : memref<16x32xf32, #tpu.memory_space<vmem>>, vector<16x8xf32>
    tpu.vector_store %arg22[%c0_111, %c0_112], %231 {strides = array<i32>} : memref<16x32xf32, #tpu.memory_space<vmem>>, vector<16x8xf32>,
    %233 = vector.extract_strided_slice %213 {offsets = [0, 8], sizes = [16, 8], strides = [1, 1]} : vector<16x96xf32> to vector<16x8xf32>
    %234 = vector.extract_strided_slice %213 {offsets = [0, 40], sizes = [16, 8], strides = [1, 1]} : vector<16x96xf32> to vector<16x8xf32>
    %235 = vector.extract_strided_slice %213 {offsets = [0, 72], sizes = [16, 8], strides = [1, 1]} : vector<16x96xf32> to vector<16x8xf32>
    %cst_113 = arith.constant dense<0.000000e+00> : vector<16x16xf32>
    %236 = tpu.matmul %233, %234, %cst_113 {dimension_numbers = #tpu.dot_dimension_numbers<[1], [1], [0], [0], [0, 0, 1, 0], [], []>} : vector<16x8xf32>, vector<16x8xf32>, vector<16x16xf32> -> vector<16x16xf32>
    %cst_114 = arith.constant 0.353553385 : f32
    %237 = vector.broadcast %cst_114 : f32 to vector<16x16xf32>
    %238 = arith.mulf %236, %237 : vector<16x16xf32>
    %239 = arith.addf %238, %5 : vector<16x16xf32>
    %cst_115 = arith.constant dense<0xFF800000> : vector<16xf32>
    %240 = vector.multi_reduction <maximumf>, %239, %cst_115 [1] : vector<16x16xf32> to vector<16xf32>
    %241 = vector.shape_cast %240 : vector<16xf32> to vector<16x1xf32>
    %242 = vector.broadcast %241 : vector<16x1xf32> to vector<16x16xf32>
    %243 = arith.subf %239, %242 : vector<16x16xf32>
    %244 = math.exp %243 : vector<16x16xf32>
    %cst_116 = arith.constant dense<0.000000e+00> : vector<16xf32>
    %245 = vector.multi_reduction <add>, %244, %cst_116 [1] : vector<16x16xf32> to vector<16xf32>
    %246 = vector.shape_cast %245 : vector<16xf32> to vector<16x1xf32>
    %247 = tpu.reciprocal %246 {approx = true} : vector<16x1xf32> -> vector<16x1xf32>
    %248 = vector.broadcast %247 : vector<16x1xf32> to vector<16x16xf32>
    %249 = arith.mulf %244, %248 : vector<16x16xf32>
    %cst_117 = arith.constant dense<0.000000e+00> : vector<16x8xf32>
    %250 = tpu.matmul %249, %235, %cst_117 {dimension_numbers = #tpu.dot_dimension_numbers<[1], [0], [0], [1], [0, 0, 1, 1], [], []>} : vector<16x16xf32>, vector<16x8xf32>, vector<16x8xf32> -> vector<16x8xf32>
    %c0_118 = arith.constant 0 : index
    %c8_119 = arith.constant 8 : index
    %251 = vector.load %arg22[%c0_118, %c8_119] : memref<16x32xf32, #tpu.memory_space<vmem>>, vector<16x8xf32>
    tpu.vector_store %arg22[%c0_118, %c8_119], %250 {strides = array<i32>} : memref<16x32xf32, #tpu.memory_space<vmem>>, vector<16x8xf32>,
    %252 = vector.extract_strided_slice %213 {offsets = [0, 16], sizes = [16, 8], strides = [1, 1]} : vector<16x96xf32> to vector<16x8xf32>
    %253 = vector.extract_strided_slice %213 {offsets = [0, 48], sizes = [16, 8], strides = [1, 1]} : vector<16x96xf32> to vector<16x8xf32>
    %254 = vector.extract_strided_slice %213 {offsets = [0, 80], sizes = [16, 8], strides = [1, 1]} : vector<16x96xf32> to vector<16x8xf32>
    %cst_120 = arith.constant dense<0.000000e+00> : vector<16x16xf32>
    %255 = tpu.matmul %252, %253, %cst_120 {dimension_numbers = #tpu.dot_dimension_numbers<[1], [1], [0], [0], [0, 0, 1, 0], [], []>} : vector<16x8xf32>, vector<16x8xf32>, vector<16x16xf32> -> vector<16x16xf32>
    %cst_121 = arith.constant 0.353553385 : f32
    %256 = vector.broadcast %cst_121 : f32 to vector<16x16xf32>
    %257 = arith.mulf %255, %256 : vector<16x16xf32>
    %258 = arith.addf %257, %5 : vector<16x16xf32>
    %cst_122 = arith.constant dense<0xFF800000> : vector<16xf32>
    %259 = vector.multi_reduction <maximumf>, %258, %cst_122 [1] : vector<16x16xf32> to vector<16xf32>
    %260 = vector.shape_cast %259 : vector<16xf32> to vector<16x1xf32>
    %261 = vector.broadcast %260 : vector<16x1xf32> to vector<16x16xf32>
    %262 = arith.subf %258, %261 : vector<16x16xf32>
    %263 = math.exp %262 : vector<16x16xf32>
    %cst_123 = arith.constant dense<0.000000e+00> : vector<16xf32>
    %264 = vector.multi_reduction <add>, %263, %cst_123 [1] : vector<16x16xf32> to vector<16xf32>
    %265 = vector.shape_cast %264 : vector<16xf32> to vector<16x1xf32>
    %266 = tpu.reciprocal %265 {approx = true} : vector<16x1xf32> -> vector<16x1xf32>
    %267 = vector.broadcast %266 : vector<16x1xf32> to vector<16x16xf32>
    %268 = arith.mulf %263, %267 : vector<16x16xf32>
    %cst_124 = arith.constant dense<0.000000e+00> : vector<16x8xf32>
    %269 = tpu.matmul %268, %254, %cst_124 {dimension_numbers = #tpu.dot_dimension_numbers<[1], [0], [0], [1], [0, 0, 1, 1], [], []>} : vector<16x16xf32>, vector<16x8xf32>, vector<16x8xf32> -> vector<16x8xf32>
    %c0_125 = arith.constant 0 : index
    %c16_126 = arith.constant 16 : index
    %270 = vector.load %arg22[%c0_125, %c16_126] : memref<16x32xf32, #tpu.memory_space<vmem>>, vector<16x8xf32>
    tpu.vector_store %arg22[%c0_125, %c16_126], %269 {strides = array<i32>} : memref<16x32xf32, #tpu.memory_space<vmem>>, vector<16x8xf32>,
    %271 = vector.extract_strided_slice %213 {offsets = [0, 24], sizes = [16, 8], strides = [1, 1]} : vector<16x96xf32> to vector<16x8xf32>
    %272 = vector.extract_strided_slice %213 {offsets = [0, 56], sizes = [16, 8], strides = [1, 1]} : vector<16x96xf32> to vector<16x8xf32>
    %273 = vector.extract_strided_slice %213 {offsets = [0, 88], sizes = [16, 8], strides = [1, 1]} : vector<16x96xf32> to vector<16x8xf32>
    %cst_127 = arith.constant dense<0.000000e+00> : vector<16x16xf32>
    %274 = tpu.matmul %271, %272, %cst_127 {dimension_numbers = #tpu.dot_dimension_numbers<[1], [1], [0], [0], [0, 0, 1, 0], [], []>} : vector<16x8xf32>, vector<16x8xf32>, vector<16x16xf32> -> vector<16x16xf32>
    %cst_128 = arith.constant 0.353553385 : f32
    %275 = vector.broadcast %cst_128 : f32 to vector<16x16xf32>
    %276 = arith.mulf %274, %275 : vector<16x16xf32>
    %277 = arith.addf %276, %5 : vector<16x16xf32>
    %cst_129 = arith.constant dense<0xFF800000> : vector<16xf32>
    %278 = vector.multi_reduction <maximumf>, %277, %cst_129 [1] : vector<16x16xf32> to vector<16xf32>
    %279 = vector.shape_cast %278 : vector<16xf32> to vector<16x1xf32>
    %280 = vector.broadcast %279 : vector<16x1xf32> to vector<16x16xf32>
    %281 = arith.subf %277, %280 : vector<16x16xf32>
    %282 = math.exp %281 : vector<16x16xf32>
    %cst_130 = arith.constant dense<0.000000e+00> : vector<16xf32>
    %283 = vector.multi_reduction <add>, %282, %cst_130 [1] : vector<16x16xf32> to vector<16xf32>
    %284 = vector.shape_cast %283 : vector<16xf32> to vector<16x1xf32>
    %285 = tpu.reciprocal %284 {approx = true} : vector<16x1xf32> -> vector<16x1xf32>
    %286 = vector.broadcast %285 : vector<16x1xf32> to vector<16x16xf32>
    %287 = arith.mulf %282, %286 : vector<16x16xf32>
    %cst_131 = arith.constant dense<0.000000e+00> : vector<16x8xf32>
    %288 = tpu.matmul %287, %273, %cst_131 {dimension_numbers = #tpu.dot_dimension_numbers<[1], [0], [0], [1], [0, 0, 1, 1], [], []>} : vector<16x16xf32>, vector<16x8xf32>, vector<16x8xf32> -> vector<16x8xf32>
    %c0_132 = arith.constant 0 : index
    %c24_133 = arith.constant 24 : index
    %289 = vector.load %arg22[%c0_132, %c24_133] : memref<16x32xf32, #tpu.memory_space<vmem>>, vector<16x8xf32>
    tpu.vector_store %arg22[%c0_132, %c24_133], %288 {strides = array<i32>} : memref<16x32xf32, #tpu.memory_space<vmem>>, vector<16x8xf32>,
    %c0_134 = arith.constant 0 : index
    %c0_135 = arith.constant 0 : index
    %290 = vector.load %arg22[%c0_134, %c0_135] : memref<16x32xf32, #tpu.memory_space<vmem>>, vector<16x32xf32>
    %c1_136 = arith.constant 1 : index
    %c0_137 = arith.constant 0 : index
    %c0_138 = arith.constant 0 : index
    %291 = vector.load %arg9[%c1_136, %c0_137, %c0_138] : memref<2x32x32xf32, #tpu.memory_space<vmem>>, vector<1x32x32xf32>
    %292 = vector.shape_cast %291 : vector<1x32x32xf32> to vector<32x32xf32>
    %cst_139 = arith.constant dense<0.000000e+00> : vector<16x32xf32>
    %293 = tpu.matmul %290, %292, %cst_139 {dimension_numbers = #tpu.dot_dimension_numbers<[1], [0], [0], [1], [0, 0, 1, 1], [], []>} : vector<16x32xf32>, vector<32x32xf32>, vector<16x32xf32> -> vector<16x32xf32>
    %c1_140 = arith.constant 1 : index
    %c0_141 = arith.constant 0 : index
    %c0_142 = arith.constant 0 : index
    %294 = vector.load %arg10[%c1_140, %c0_141, %c0_142] : memref<2x1x32xf32, #tpu.memory_space<vmem>>, vector<1x1x32xf32>
    %295 = vector.shape_cast %294 : vector<1x1x32xf32> to vector<1x32xf32>
    %296 = vector.broadcast %295 : vector<1x32xf32> to vector<16x32xf32>
    %297 = arith.addf %293, %296 : vector<16x32xf32>
    %298 = arith.addf %297, %206 : vector<16x32xf32>
    %c1_143 = arith.constant 1 : index
    %c0_144 = arith.constant 0 : index
    %c0_145 = arith.constant 0 : index
    %299 = vector.load %arg11[%c1_143, %c0_144, %c0_145] : memref<2x1x32xf32, #tpu.memory_space<vmem>>, vector<1x1x32xf32>
    %300 = vector.shape_cast %299 : vector<1x1x32xf32> to vector<1x32xf32>
    %c1_146 = arith.constant 1 : index
    %c0_147 = arith.constant 0 : index
    %c0_148 = arith.constant 0 : index
    %301 = vector.load %arg12[%c1_146, %c0_147, %c0_148] : memref<2x1x32xf32, #tpu.memory_space<vmem>>, vector<1x1x32xf32>
    %302 = vector.shape_cast %301 : vector<1x1x32xf32> to vector<1x32xf32>
    %cst_149 = arith.constant dense<0.000000e+00> : vector<16xf32>
    %303 = vector.multi_reduction <add>, %298, %cst_149 [1] : vector<16x32xf32> to vector<16xf32>
    %304 = vector.shape_cast %303 : vector<16xf32> to vector<16x1xf32>
    %cst_150 = arith.constant 3.200000e+01 : f32
    %305 = vector.broadcast %cst_150 : f32 to vector<16x1xf32>
    %306 = arith.divf %304, %305 : vector<16x1xf32>
    %307 = vector.broadcast %306 : vector<16x1xf32> to vector<16x32xf32>
    %308 = arith.subf %298, %307 : vector<16x32xf32>
    %309 = arith.mulf %308, %308 : vector<16x32xf32>
    %cst_151 = arith.constant dense<0.000000e+00> : vector<16xf32>
    %310 = vector.multi_reduction <add>, %309, %cst_151 [1] : vector<16x32xf32> to vector<16xf32>
    %311 = vector.shape_cast %310 : vector<16xf32> to vector<16x1xf32>
    %cst_152 = arith.constant 3.200000e+01 : f32
    %312 = vector.broadcast %cst_152 : f32 to vector<16x1xf32>
    %313 = arith.divf %311, %312 : vector<16x1xf32>
    %314 = vector.broadcast %306 : vector<16x1xf32> to vector<16x32xf32>
    %315 = arith.subf %298, %314 : vector<16x32xf32>
    %cst_153 = arith.constant 9.99999996E-13 : f32
    %316 = vector.broadcast %cst_153 : f32 to vector<16x1xf32>
    %317 = arith.addf %313, %316 : vector<16x1xf32>
    %318 = math.rsqrt %317 : vector<16x1xf32>
    %319 = vector.broadcast %318 : vector<16x1xf32> to vector<16x32xf32>
    %320 = arith.mulf %315, %319 : vector<16x32xf32>
    %321 = vector.broadcast %300 : vector<1x32xf32> to vector<16x32xf32>
    %322 = arith.mulf %320, %321 : vector<16x32xf32>
    %323 = vector.broadcast %302 : vector<1x32xf32> to vector<16x32xf32>
    %324 = arith.addf %322, %323 : vector<16x32xf32>
    %c1_154 = arith.constant 1 : index
    %c0_155 = arith.constant 0 : index
    %c0_156 = arith.constant 0 : index
    %325 = vector.load %arg13[%c1_154, %c0_155, %c0_156] : memref<2x32x128xf32, #tpu.memory_space<vmem>>, vector<1x32x128xf32>
    %326 = vector.shape_cast %325 : vector<1x32x128xf32> to vector<32x128xf32>
    %cst_157 = arith.constant dense<0.000000e+00> : vector<16x128xf32>
    %327 = tpu.matmul %324, %326, %cst_157 {dimension_numbers = #tpu.dot_dimension_numbers<[1], [0], [0], [1], [0, 0, 1, 1], [], []>} : vector<16x32xf32>, vector<32x128xf32>, vector<16x128xf32> -> vector<16x128xf32>
    %c1_158 = arith.constant 1 : index
    %c0_159 = arith.constant 0 : index
    %c0_160 = arith.constant 0 : index
    %328 = vector.load %arg14[%c1_158, %c0_159, %c0_160] : memref<2x1x128xf32, #tpu.memory_space<vmem>>, vector<1x1x128xf32>
    %329 = vector.shape_cast %328 : vector<1x1x128xf32> to vector<1x128xf32>
    %330 = vector.broadcast %329 : vector<1x128xf32> to vector<16x128xf32>
    %331 = arith.addf %327, %330 : vector<16x128xf32>
    %332 = arith.mulf %331, %331 : vector<16x128xf32>
    %333 = arith.mulf %331, %332 : vector<16x128xf32>
    %cst_161 = arith.constant 4.471500e-02 : f32
    %334 = vector.broadcast %cst_161 : f32 to vector<16x128xf32>
    %335 = arith.mulf %334, %333 : vector<16x128xf32>
    %336 = arith.addf %331, %335 : vector<16x128xf32>
    %cst_162 = arith.constant 0.797884583 : f32
    %337 = vector.broadcast %cst_162 : f32 to vector<16x128xf32>
    %338 = arith.mulf %337, %336 : vector<16x128xf32>
    %339 = math.tanh %338 : vector<16x128xf32>
    %cst_163 = arith.constant 1.000000e+00 : f32
    %340 = vector.broadcast %cst_163 : f32 to vector<16x128xf32>
    %341 = arith.addf %340, %339 : vector<16x128xf32>
    %cst_164 = arith.constant 5.000000e-01 : f32
    %342 = vector.broadcast %cst_164 : f32 to vector<16x128xf32>
    %343 = arith.mulf %342, %341 : vector<16x128xf32>
    %344 = arith.mulf %331, %343 : vector<16x128xf32>
    %c1_165 = arith.constant 1 : index
    %c0_166 = arith.constant 0 : index
    %c0_167 = arith.constant 0 : index
    %345 = vector.load %arg15[%c1_165, %c0_166, %c0_167] : memref<2x128x32xf32, #tpu.memory_space<vmem>>, vector<1x128x32xf32>
    %346 = vector.shape_cast %345 : vector<1x128x32xf32> to vector<128x32xf32>
    %cst_168 = arith.constant dense<0.000000e+00> : vector<16x32xf32>
    %347 = tpu.matmul %344, %346, %cst_168 {dimension_numbers = #tpu.dot_dimension_numbers<[1], [0], [0], [1], [0, 0, 1, 1], [], []>} : vector<16x128xf32>, vector<128x32xf32>, vector<16x32xf32> -> vector<16x32xf32>
    %c1_169 = arith.constant 1 : index
    %c0_170 = arith.constant 0 : index
    %c0_171 = arith.constant 0 : index
    %348 = vector.load %arg16[%c1_169, %c0_170, %c0_171] : memref<2x1x32xf32, #tpu.memory_space<vmem>>, vector<1x1x32xf32>
    %349 = vector.shape_cast %348 : vector<1x1x32xf32> to vector<1x32xf32>
    %350 = vector.broadcast %349 : vector<1x32xf32> to vector<16x32xf32>
    %351 = arith.addf %347, %350 : vector<16x32xf32>
    %352 = arith.addf %351, %324 : vector<16x32xf32>
    %c1_172 = arith.constant 1 : index
    %c0_173 = arith.constant 0 : index
    %c0_174 = arith.constant 0 : index
    %353 = vector.load %arg17[%c1_172, %c0_173, %c0_174] : memref<2x1x32xf32, #tpu.memory_space<vmem>>, vector<1x1x32xf32>
    %354 = vector.shape_cast %353 : vector<1x1x32xf32> to vector<1x32xf32>
    %c1_175 = arith.constant 1 : index
    %c0_176 = arith.constant 0 : index
    %c0_177 = arith.constant 0 : index
    %355 = vector.load %arg18[%c1_175, %c0_176, %c0_177] : memref<2x1x32xf32, #tpu.memory_space<vmem>>, vector<1x1x32xf32>
    %356 = vector.shape_cast %355 : vector<1x1x32xf32> to vector<1x32xf32>
    %cst_178 = arith.constant dense<0.000000e+00> : vector<16xf32>
    %357 = vector.multi_reduction <add>, %352, %cst_178 [1] : vector<16x32xf32> to vector<16xf32>
    %358 = vector.shape_cast %357 : vector<16xf32> to vector<16x1xf32>
    %cst_179 = arith.constant 3.200000e+01 : f32
    %359 = vector.broadcast %cst_179 : f32 to vector<16x1xf32>
    %360 = arith.divf %358, %359 : vector<16x1xf32>
    %361 = vector.broadcast %360 : vector<16x1xf32> to vector<16x32xf32>
    %362 = arith.subf %352, %361 : vector<16x32xf32>
    %363 = arith.mulf %362, %362 : vector<16x32xf32>
    %cst_180 = arith.constant dense<0.000000e+00> : vector<16xf32>
    %364 = vector.multi_reduction <add>, %363, %cst_180 [1] : vector<16x32xf32> to vector<16xf32>
    %365 = vector.shape_cast %364 : vector<16xf32> to vector<16x1xf32>
    %cst_181 = arith.constant 3.200000e+01 : f32
    %366 = vector.broadcast %cst_181 : f32 to vector<16x1xf32>
    %367 = arith.divf %365, %366 : vector<16x1xf32>
    %368 = vector.broadcast %360 : vector<16x1xf32> to vector<16x32xf32>
    %369 = arith.subf %352, %368 : vector<16x32xf32>
    %cst_182 = arith.constant 9.99999996E-13 : f32
    %370 = vector.broadcast %cst_182 : f32 to vector<16x1xf32>
    %371 = arith.addf %367, %370 : vector<16x1xf32>
    %372 = math.rsqrt %371 : vector<16x1xf32>
    %373 = vector.broadcast %372 : vector<16x1xf32> to vector<16x32xf32>
    %374 = arith.mulf %369, %373 : vector<16x32xf32>
    %375 = vector.broadcast %354 : vector<1x32xf32> to vector<16x32xf32>
    %376 = arith.mulf %374, %375 : vector<16x32xf32>
    %377 = vector.broadcast %356 : vector<1x32xf32> to vector<16x32xf32>
    %378 = arith.addf %376, %377 : vector<16x32xf32>
    %c0_183 = arith.constant 0 : index
    %c0_184 = arith.constant 0 : index
    %379 = vector.load %arg19[%c0_183, %c0_184] : memref<32x128xf32, #tpu.memory_space<vmem>>, vector<32x128xf32>
    %cst_185 = arith.constant dense<0.000000e+00> : vector<16x128xf32>
    %380 = tpu.matmul %378, %379, %cst_185 {dimension_numbers = #tpu.dot_dimension_numbers<[1], [0], [0], [1], [0, 0, 1, 1], [], []>} : vector<16x32xf32>, vector<32x128xf32>, vector<16x128xf32> -> vector<16x128xf32>
    %c0_186 = arith.constant 0 : index
    %c0_187 = arith.constant 0 : index
    %381 = vector.load %arg20[%c0_186, %c0_187] : memref<1x128xf32, #tpu.memory_space<vmem>>, vector<1x128xf32>
    %382 = vector.broadcast %381 : vector<1x128xf32> to vector<16x128xf32>
    %383 = arith.addf %380, %382 : vector<16x128xf32>
    %c0_188 = arith.constant 0 : index
    %c0_189 = arith.constant 0 : index
    %c0_190 = arith.constant 0 : index
    %384 = vector.load %arg21[%c0_188, %c0_189, %c0_190] : memref<1x16x128xf32, #tpu.memory_space<vmem>>, vector<1x16x128xf32>
    %385 = vector.shape_cast %384 : vector<1x16x128xf32> to vector<16x128xf32>
    %386 = vector.shape_cast %383 : vector<16x128xf32> to vector<1x16x128xf32>
    tpu.vector_store %arg21[%c0_188, %c0_189, %c0_190], %386 {strides = array<i32>} : memref<1x16x128xf32, #tpu.memory_space<vmem>>, vector<1x16x128xf32>,
    return
  }
  func.func @transform_0(%arg0: i32) -> (i32, i32, i32) {
    %c0_i32 = arith.constant 0 : i32
    %c0_i32_0 = arith.constant 0 : i32
    %c0_i32_1 = arith.constant 0 : i32
    return %arg0, %c0_i32, %c0_i32_0 : i32, i32, i32
  }
  func.func @transform_1(%arg0: i32) -> (i32, i32, i32) {
    %c0_i32 = arith.constant 0 : i32
    %c0_i32_0 = arith.constant 0 : i32
    %c0_i32_1 = arith.constant 0 : i32
    return %arg0, %c0_i32, %c0_i32_0 : i32, i32, i32
  }
  func.func @transform_2(%arg0: i32) -> (i32, i32) {
    %c0_i32 = arith.constant 0 : i32
    %c0_i32_0 = arith.constant 0 : i32
    %c0_i32_1 = arith.constant 0 : i32
    return %c0_i32, %c0_i32_0 : i32, i32
  }
  func.func @transform_3(%arg0: i32) -> (i32, i32, i32) {
    %c0_i32 = arith.constant 0 : i32
    %c0_i32_0 = arith.constant 0 : i32
    %c0_i32_1 = arith.constant 0 : i32
    %c0_i32_2 = arith.constant 0 : i32
    return %c0_i32, %c0_i32_0, %c0_i32_1 : i32, i32, i32
  }
  func.func @transform_4(%arg0: i32) -> (i32, i32) {
    %c0_i32 = arith.constant 0 : i32
    %c0_i32_0 = arith.constant 0 : i32
    %c0_i32_1 = arith.constant 0 : i32
    return %c0_i32, %c0_i32_0 : i32, i32
  }
  func.func @transform_5(%arg0: i32) -> (i32, i32) {
    %c0_i32 = arith.constant 0 : i32
    %c0_i32_0 = arith.constant 0 : i32
    %c0_i32_1 = arith.constant 0 : i32
    return %c0_i32, %c0_i32_0 : i32, i32
  }
  func.func @transform_6(%arg0: i32) -> (i32, i32, i32) {
    %c0_i32 = arith.constant 0 : i32
    %c0_i32_0 = arith.constant 0 : i32
    %c0_i32_1 = arith.constant 0 : i32
    %c0_i32_2 = arith.constant 0 : i32
    return %c0_i32, %c0_i32_0, %c0_i32_1 : i32, i32, i32
  }
  func.func @transform_7(%arg0: i32) -> (i32, i32, i32) {
    %c0_i32 = arith.constant 0 : i32
    %c0_i32_0 = arith.constant 0 : i32
    %c0_i32_1 = arith.constant 0 : i32
    %c0_i32_2 = arith.constant 0 : i32
    return %c0_i32, %c0_i32_0, %c0_i32_1 : i32, i32, i32
  }
  func.func @transform_8(%arg0: i32) -> (i32, i32, i32) {
    %c0_i32 = arith.constant 0 : i32
    %c0_i32_0 = arith.constant 0 : i32
    %c0_i32_1 = arith.constant 0 : i32
    %c0_i32_2 = arith.constant 0 : i32
    return %c0_i32, %c0_i32_0, %c0_i32_1 : i32, i32, i32
  }
  func.func @transform_9(%arg0: i32) -> (i32, i32, i32) {
    %c0_i32 = arith.constant 0 : i32
    %c0_i32_0 = arith.constant 0 : i32
    %c0_i32_1 = arith.constant 0 : i32
    %c0_i32_2 = arith.constant 0 : i32
    return %c0_i32, %c0_i32_0, %c0_i32_1 : i32, i32, i32
  }
  func.func @transform_10(%arg0: i32) -> (i32, i32, i32) {
    %c0_i32 = arith.constant 0 : i32
    %c0_i32_0 = arith.constant 0 : i32
    %c0_i32_1 = arith.constant 0 : i32
    %c0_i32_2 = arith.constant 0 : i32
    return %c0_i32, %c0_i32_0, %c0_i32_1 : i32, i32, i32
  }
  func.func @transform_11(%arg0: i32) -> (i32, i32, i32) {
    %c0_i32 = arith.constant 0 : i32
    %c0_i32_0 = arith.constant 0 : i32
    %c0_i32_1 = arith.constant 0 : i32
    %c0_i32_2 = arith.constant 0 : i32
    return %c0_i32, %c0_i32_0, %c0_i32_1 : i32, i32, i32
  }
  func.func @transform_12(%arg0: i32) -> (i32, i32, i32) {
    %c0_i32 = arith.constant 0 : i32
    %c0_i32_0 = arith.constant 0 : i32
    %c0_i32_1 = arith.constant 0 : i32
    %c0_i32_2 = arith.constant 0 : i32
    return %c0_i32, %c0_i32_0, %c0_i32_1 : i32, i32, i32
  }
  func.func @transform_13(%arg0: i32) -> (i32, i32, i32) {
    %c0_i32 = arith.constant 0 : i32
    %c0_i32_0 = arith.constant 0 : i32
    %c0_i32_1 = arith.constant 0 : i32
    %c0_i32_2 = arith.constant 0 : i32
    return %c0_i32, %c0_i32_0, %c0_i32_1 : i32, i32, i32
  }
  func.func @transform_14(%arg0: i32) -> (i32, i32, i32) {
    %c0_i32 = arith.constant 0 : i32
    %c0_i32_0 = arith.constant 0 : i32
    %c0_i32_1 = arith.constant 0 : i32
    %c0_i32_2 = arith.constant 0 : i32
    return %c0_i32, %c0_i32_0, %c0_i32_1 : i32, i32, i32
  }
  func.func @transform_15(%arg0: i32) -> (i32, i32, i32) {
    %c0_i32 = arith.constant 0 : i32
    %c0_i32_0 = arith.constant 0 : i32
    %c0_i32_1 = arith.constant 0 : i32
    %c0_i32_2 = arith.constant 0 : i32
    return %c0_i32, %c0_i32_0, %c0_i32_1 : i32, i32, i32
  }
  func.func @transform_16(%arg0: i32) -> (i32, i32, i32) {
    %c0_i32 = arith.constant 0 : i32
    %c0_i32_0 = arith.constant 0 : i32
    %c0_i32_1 = arith.constant 0 : i32
    %c0_i32_2 = arith.constant 0 : i32
    return %c0_i32, %c0_i32_0, %c0_i32_1 : i32, i32, i32
  }
  func.func @transform_17(%arg0: i32) -> (i32, i32, i32) {
    %c0_i32 = arith.constant 0 : i32
    %c0_i32_0 = arith.constant 0 : i32
    %c0_i32_1 = arith.constant 0 : i32
    %c0_i32_2 = arith.constant 0 : i32
    return %c0_i32, %c0_i32_0, %c0_i32_1 : i32, i32, i32
  }
  func.func @transform_18(%arg0: i32) -> (i32, i32) {
    %c0_i32 = arith.constant 0 : i32
    %c0_i32_0 = arith.constant 0 : i32
    %c0_i32_1 = arith.constant 0 : i32
    return %c0_i32, %c0_i32_0 : i32, i32
  }
  func.func @transform_19(%arg0: i32) -> (i32, i32) {
    %c0_i32 = arith.constant 0 : i32
    %c0_i32_0 = arith.constant 0 : i32
    %c0_i32_1 = arith.constant 0 : i32
    return %c0_i32, %c0_i32_0 : i32, i32
  }
  func.func @transform_20(%arg0: i32) -> (i32, i32, i32) {
    %c0_i32 = arith.constant 0 : i32
    %c0_i32_0 = arith.constant 0 : i32
    %c0_i32_1 = arith.constant 0 : i32
    return %arg0, %c0_i32, %c0_i32_0 : i32, i32, i32
  }
}

</mosaic_0001>

<llo_original>
// kernel: transformer_motion_forward.1
$region0: #{transformer_motion_forward.1}
  #allocation0 [shape = 'u32[]', space=smem, size = 0x4, offset = 0x4, fixed_abs, tag = 'smem constant byte address 0x4 - core index']
  #allocation1 [shape = 'u32[144,128]{1,0:T(1,128)}', space=vmem, size = 0x12000, scoped, tag = 'internal scratch']
  #allocation2 [shape = 'f32[16,32]{1,0:T(8,128)}', space=vmem, size = 0x2000, scoped, tag = 'scratch operand']
  %s0 = inlined_call_operand.vmem [shape: f32[2,16,16], index: 0, kind: input, shape index: {}]
  %s1 = inlined_call_operand.vmem [shape: f32[2,1,16], index: 1, kind: input, shape index: {}]
  %s2 = inlined_call_operand.hbm [shape: f32[16,32], index: 2, kind: input, shape index: {}]
  %s3 = inlined_call_operand.hbm [shape: f32[1,16,32], index: 3, kind: input, shape index: {}]
  %s4 = inlined_call_operand.vmem [shape: f32[1,32], index: 4, kind: input, shape index: {}]
  %s5 = inlined_call_operand.vmem [shape: f32[1,32], index: 5, kind: input, shape index: {}]
  %s6 = inlined_call_operand.hbm [shape: f32[2,32,96], index: 6, kind: input, shape index: {}]
  %s7 = inlined_call_operand.vmem [shape: f32[2,1,96], index: 7, kind: input, shape index: {}]
  %s8 = inlined_call_operand.vmem [shape: f32[2,32,32], index: 8, kind: input, shape index: {}]
  %s9 = inlined_call_operand.vmem [shape: f32[2,1,32], index: 9, kind: input, shape index: {}, may-alias: {9,11,15,17}]
  %s10 = inlined_call_operand.vmem [shape: f32[2,1,32], index: 10, kind: input, shape index: {}, may-alias: {10,16}]
  %s11 = inlined_call_operand.vmem [shape: f32[2,1,32], index: 11, kind: input, shape index: {}, may-alias: {9,11,15,17}]
  %s12 = inlined_call_operand.vmem [shape: f32[2,32,128], index: 12, kind: input, shape index: {}]
  %s13 = inlined_call_operand.vmem [shape: f32[2,1,128], index: 13, kind: input, shape index: {}]
  %s14 = inlined_call_operand.vmem [shape: f32[2,128,32], index: 14, kind: input, shape index: {}]
  %s15 = inlined_call_operand.vmem [shape: f32[2,1,32], index: 15, kind: input, shape index: {}, may-alias: {9,11,15,17}]
  %s16 = inlined_call_operand.vmem [shape: f32[2,1,32], index: 16, kind: input, shape index: {}, may-alias: {10,16}]
  %s17 = inlined_call_operand.vmem [shape: f32[2,1,32], index: 17, kind: input, shape index: {}, may-alias: {9,11,15,17}]
  %s18 = inlined_call_operand.vmem [shape: f32[32,128], index: 18, kind: input, shape index: {}]
  %s19 = inlined_call_operand.vmem [shape: f32[1,128], index: 19, kind: input, shape index: {}]
  %s20 = inlined_call_operand.vmem [shape: f32[2,16,128], index: 20, kind: output, shape index: {}]
  %s21 = sld [smem:[#allocation0]]
  $region125: #{transformer_motion_forward.1} parent=0
    _
  %s23 = ssub.s32 1, %s21
  %s24 = scalar_select 0, %s23, %s21
  $region1: #{transformer_motion_forward.1} parent=0
    #allocation3 [shape = 'u8[8192]{0}', space=vmem, size = 0x2000, scoped, tag = 'input window, operand 2, single buffered']
    #allocation4 [shape = 's32[2]{0}', space=sflag, size = 0x8, scoped, tag = 'scoped memory for transformer_motion_forward.1']
    #allocation5 [shape = 'u8[8192]{0}', space=vmem, size = 0x2000, scoped, tag = 'input window, operand 3, single buffered']
    #allocation6 [shape = 's32[1]{0}', space=sflag, size = 0x4, scoped, tag = 'scoped memory for transformer_motion_forward.1']
    #allocation7 [shape = 'u8[32768]{0}', space=vmem, size = 0x8000, scoped, tag = 'input window, operand 6, single buffered']
    %25 = vsyncpa [#allocation4], 0
    %26 = vsyncpa [#allocation6], 0
    loop: start=0, step=1, limit=4
    $region2: #{transformer_motion_forward.1} parent=1 // loop_pre_header
      _
    $region3: #{transformer_motion_forward.1} parent=1 // loop_header
      %s28 = sphi 0, %s32
      %p29 = scmp.ge.s32.totalorder %s28, 4
      %s38 = sphi 0, %s40
      %s41 = sphi 0, %s38
      %s42 = sphi 0, %s41
      %s58 = sphi 0, %s42
      %s64 = sphi 0, %s66
      %s67 = sphi 0, %s64
      %s68 = sphi 0, %s67
      %s84 = sphi 0, %s68
      %s88 = sphi 0, %s88
      %s90 = sphi 0, %s88
      %s91 = sphi 0, %s90
      %s105 = sphi 0, %s91
      %s109 = sphi 0, %s109
      %s111 = sphi 0, %s109
      %s112 = sphi 0, %s111
      %s126 = sphi 0, %s112
      %s130 = sphi 0, %s130
      %s132 = sphi 0, %s130
      %s133 = sphi 0, %s132
      %s147 = sphi 0, %s133
      %s151 = sphi 0, %s151
      %s153 = sphi 0, %s151
      %s154 = sphi 0, %s153
      %s168 = sphi 0, %s154
      %s172 = sphi 0, %s172
      %s174 = sphi 0, %s172
      %s175 = sphi 0, %s174
      %s189 = sphi 0, %s175
      %s193 = sphi 0, %s193
      %s195 = sphi 0, %s193
      %s196 = sphi 0, %s195
      %s210 = sphi 0, %s196
      %s214 = sphi 0, %s214
      %s216 = sphi 0, %s214
      %s217 = sphi 0, %s216
      %s231 = sphi 0, %s217
      %s235 = sphi 0, %s235
      %s237 = sphi 0, %s235
      %s238 = sphi 0, %s237
      %s252 = sphi 0, %s238
      %s256 = sphi 0, %s256
      %s258 = sphi 0, %s256
      %s259 = sphi 0, %s258
      %s273 = sphi 0, %s259
      %s277 = sphi 0, %s277
      %s279 = sphi 0, %s277
      %s280 = sphi 0, %s279
      %s294 = sphi 0, %s280
      %s298 = sphi 0, %s298
      %s300 = sphi 0, %s298
      %s301 = sphi 0, %s300
      %s315 = sphi 0, %s301
      %s319 = sphi 0, %s319
      %s321 = sphi 0, %s319
      %s322 = sphi 0, %s321
      %s336 = sphi 0, %s322
      %s340 = sphi 0, %s340
      %s342 = sphi 0, %s340
      %s343 = sphi 0, %s342
      %s357 = sphi 0, %s343
      %s361 = sphi 0, %s361
      %s363 = sphi 0, %s361
      %s364 = sphi 0, %s363
      %s378 = sphi 0, %s364
      %s382 = sphi 0, %s382
      %s384 = sphi 0, %s382
      %s385 = sphi 0, %s384
      %s399 = sphi 0, %s385
      %s403 = sphi 0, %s403
      %s405 = sphi 0, %s403
      %s406 = sphi 0, %s405
      %s420 = sphi 0, %s406
      %s424 = sphi 0, %s424
      %s426 = sphi 0, %s424
      %s427 = sphi 0, %s426
      %s441 = sphi 0, %s427
      %s445 = sphi 0, %s445
      %s447 = sphi 0, %s445
      %s448 = sphi 0, %s447
      %s462 = sphi 0, %s448
      %s468 = sphi 0, %s470
      %s471 = sphi 0, %s468
      %s472 = sphi 0, %s471
      %s488 = sphi 0, %s472
    $region4: #{transformer_motion_forward.1} parent=1 // loop_header_branch
      %31 = sbr.rel (%p29) target = $region8
    $region5: #{transformer_motion_forward.1} parent=1 // loop_body
      %s33 = ssub.s32 %s28, 1
      %s34 = ssub.s32 %s28, 2
      %s35 = sadd.s32 %s28, 1
      %s36 = ssub.s32 %s28, %s35
      %p37 = scmp.eq.s32.totalorder %s36, 0
      %s39 = sadd.s32 %s38, 1
      %s40 = scalar_select %p37, %s38, %s39
      %p43 = pneg %p37
      %p44 = scmp.eq.s32.totalorder %s28, 1
      %p45 = por %p43, %p44
      %p46 = scmp.ne.s32.totalorder %s38, %s41
      %p47 = scmp.eq.s32.totalorder %s28, 0
      %p48 = por %p46, %p47
      %p49 = scmp.ne.s32.totalorder %s38, %s41
      %p50 = scmp.eq.s32.totalorder %s33, 1
      %p51 = por %p49, %p50
      %p52 = scmp.ne.s32.totalorder %s41, %s42
      %p53 = scmp.eq.s32.totalorder %s33, 0
      %p54 = por %p52, %p53
      %p55 = scmp.ne.s32.totalorder %s41, %s42
      %p56 = scmp.eq.s32.totalorder %s34, 1
      %p57 = por %p55, %p56
      %p59 = scmp.ne.s32.totalorder %s42, %s58
      %p60 = scmp.eq.s32.totalorder %s34, 0
      %p61 = por %p59, %p60
      %s62 = ssub.s32 %s28, %s35
      %p63 = scmp.eq.s32.totalorder %s62, 0
      %s65 = sadd.s32 %s64, 1
      %s66 = scalar_select %p63, %s64, %s65
      %p69 = pneg %p63
      %p70 = scmp.eq.s32.totalorder %s28, 1
      %p71 = por %p69, %p70
      %p72 = scmp.ne.s32.totalorder %s64, %s67
      %p73 = scmp.eq.s32.totalorder %s28, 0
      %p74 = por %p72, %p73
      %p75 = scmp.ne.s32.totalorder %s64, %s67
      %p76 = scmp.eq.s32.totalorder %s33, 1
      %p77 = por %p75, %p76
      %p78 = scmp.ne.s32.totalorder %s67, %s68
      %p79 = scmp.eq.s32.totalorder %s33, 0
      %p80 = por %p78, %p79
      %p81 = scmp.ne.s32.totalorder %s67, %s68
      %p82 = scmp.eq.s32.totalorder %s34, 1
      %p83 = por %p81, %p82
      %p85 = scmp.ne.s32.totalorder %s68, %s84
      %p86 = scmp.eq.s32.totalorder %s34, 0
      %p87 = por %p85, %p86
      %s89 = sadd.s32 %s88, 1
      %p92 = scmp.eq.s32.totalorder %s28, 1
      %p93 = scmp.ne.s32.totalorder %s88, %s90
      %p94 = scmp.eq.s32.totalorder %s28, 0
      %p95 = por %p93, %p94
      %p96 = scmp.ne.s32.totalorder %s88, %s90
      %p97 = scmp.eq.s32.totalorder %s33, 1
      %p98 = por %p96, %p97
      %p99 = scmp.ne.s32.totalorder %s90, %s91
      %p100 = scmp.eq.s32.totalorder %s33, 0
      %p101 = por %p99, %p100
      %p102 = scmp.ne.s32.totalorder %s90, %s91
      %p103 = scmp.eq.s32.totalorder %s34, 1
      %p104 = por %p102, %p103
      %p106 = scmp.ne.s32.totalorder %s91, %s105
      %p107 = scmp.eq.s32.totalorder %s34, 0
      %p108 = por %p106, %p107
      %s110 = sadd.s32 %s109, 1
      %p113 = scmp.eq.s32.totalorder %s28, 1
      %p114 = scmp.ne.s32.totalorder %s109, %s111
      %p115 = scmp.eq.s32.totalorder %s28, 0
      %p116 = por %p114, %p115
      %p117 = scmp.ne.s32.totalorder %s109, %s111
      %p118 = scmp.eq.s32.totalorder %s33, 1
      %p119 = por %p117, %p118
      %p120 = scmp.ne.s32.totalorder %s111, %s112
      %p121 = scmp.eq.s32.totalorder %s33, 0
      %p122 = por %p120, %p121
      %p123 = scmp.ne.s32.totalorder %s111, %s112
      %p124 = scmp.eq.s32.totalorder %s34, 1
      %p125 = por %p123, %p124
      %p127 = scmp.ne.s32.totalorder %s112, %s126
      %p128 = scmp.eq.s32.totalorder %s34, 0
      %p129 = por %p127, %p128
      %s131 = sadd.s32 %s130, 1
      %p134 = scmp.eq.s32.totalorder %s28, 1
      %p135 = scmp.ne.s32.totalorder %s130, %s132
      %p136 = scmp.eq.s32.totalorder %s28, 0
      %p137 = por %p135, %p136
      %p138 = scmp.ne.s32.totalorder %s130, %s132
      %p139 = scmp.eq.s32.totalorder %s33, 1
      %p140 = por %p138, %p139
      %p141 = scmp.ne.s32.totalorder %s132, %s133
      %p142 = scmp.eq.s32.totalorder %s33, 0
      %p143 = por %p141, %p142
      %p144 = scmp.ne.s32.totalorder %s132, %s133
      %p145 = scmp.eq.s32.totalorder %s34, 1
      %p146 = por %p144, %p145
      %p148 = scmp.ne.s32.totalorder %s133, %s147
      %p149 = scmp.eq.s32.totalorder %s34, 0
      %p150 = por %p148, %p149
      %s152 = sadd.s32 %s151, 1
      %p155 = scmp.eq.s32.totalorder %s28, 1
      %p156 = scmp.ne.s32.totalorder %s151, %s153
      %p157 = scmp.eq.s32.totalorder %s28, 0
      %p158 = por %p156, %p157
      %p159 = scmp.ne.s32.totalorder %s151, %s153
      %p160 = scmp.eq.s32.totalorder %s33, 1
      %p161 = por %p159, %p160
      %p162 = scmp.ne.s32.totalorder %s153, %s154
      %p163 = scmp.eq.s32.totalorder %s33, 0
      %p164 = por %p162, %p163
      %p165 = scmp.ne.s32.totalorder %s153, %s154
      %p166 = scmp.eq.s32.totalorder %s34, 1
      %p167 = por %p165, %p166
      %p169 = scmp.ne.s32.totalorder %s154, %s168
      %p170 = scmp.eq.s32.totalorder %s34, 0
      %p171 = por %p169, %p170
      %s173 = sadd.s32 %s172, 1
      %p176 = scmp.eq.s32.totalorder %s28, 1
      %p177 = scmp.ne.s32.totalorder %s172, %s174
      %p178 = scmp.eq.s32.totalorder %s28, 0
      %p179 = por %p177, %p178
      %p180 = scmp.ne.s32.totalorder %s172, %s174
      %p181 = scmp.eq.s32.totalorder %s33, 1
      %p182 = por %p180, %p181
      %p183 = scmp.ne.s32.totalorder %s174, %s175
      %p184 = scmp.eq.s32.totalorder %s33, 0
      %p185 = por %p183, %p184
      %p186 = scmp.ne.s32.totalorder %s174, %s175
      %p187 = scmp.eq.s32.totalorder %s34, 1
      %p188 = por %p186, %p187
      %p190 = scmp.ne.s32.totalorder %s175, %s189
      %p191 = scmp.eq.s32.totalorder %s34, 0
      %p192 = por %p190, %p191
      %s194 = sadd.s32 %s193, 1
      %p197 = scmp.eq.s32.totalorder %s28, 1
      %p198 = scmp.ne.s32.totalorder %s193, %s195
      %p199 = scmp.eq.s32.totalorder %s28, 0
      %p200 = por %p198, %p199
      %p201 = scmp.ne.s32.totalorder %s193, %s195
      %p202 = scmp.eq.s32.totalorder %s33, 1
      %p203 = por %p201, %p202
      %p204 = scmp.ne.s32.totalorder %s195, %s196
      %p205 = scmp.eq.s32.totalorder %s33, 0
      %p206 = por %p204, %p205
      %p207 = scmp.ne.s32.totalorder %s195, %s196
      %p208 = scmp.eq.s32.totalorder %s34, 1
      %p209 = por %p207, %p208
      %p211 = scmp.ne.s32.totalorder %s196, %s210
      %p212 = scmp.eq.s32.totalorder %s34, 0
      %p213 = por %p211, %p212
      %s215 = sadd.s32 %s214, 1
      %p218 = scmp.eq.s32.totalorder %s28, 1
      %p219 = scmp.ne.s32.totalorder %s214, %s216
      %p220 = scmp.eq.s32.totalorder %s28, 0
      %p221 = por %p219, %p220
      %p222 = scmp.ne.s32.totalorder %s214, %s216
      %p223 = scmp.eq.s32.totalorder %s33, 1
      %p224 = por %p222, %p223
      %p225 = scmp.ne.s32.totalorder %s216, %s217
      %p226 = scmp.eq.s32.totalorder %s33, 0
      %p227 = por %p225, %p226
      %p228 = scmp.ne.s32.totalorder %s216, %s217
      %p229 = scmp.eq.s32.totalorder %s34, 1
      %p230 = por %p228, %p229
      %p232 = scmp.ne.s32.totalorder %s217, %s231
      %p233 = scmp.eq.s32.totalorder %s34, 0
      %p234 = por %p232, %p233
      %s236 = sadd.s32 %s235, 1
      %p239 = scmp.eq.s32.totalorder %s28, 1
      %p240 = scmp.ne.s32.totalorder %s235, %s237
      %p241 = scmp.eq.s32.totalorder %s28, 0
      %p242 = por %p240, %p241
      %p243 = scmp.ne.s32.totalorder %s235, %s237
      %p244 = scmp.eq.s32.totalorder %s33, 1
      %p245 = por %p243, %p244
      %p246 = scmp.ne.s32.totalorder %s237, %s238
      %p247 = scmp.eq.s32.totalorder %s33, 0
      %p248 = por %p246, %p247
      %p249 = scmp.ne.s32.totalorder %s237, %s238
      %p250 = scmp.eq.s32.totalorder %s34, 1
      %p251 = por %p249, %p250
      %p253 = scmp.ne.s32.totalorder %s238, %s252
      %p254 = scmp.eq.s32.totalorder %s34, 0
      %p255 = por %p253, %p254
      %s257 = sadd.s32 %s256, 1
      %p260 = scmp.eq.s32.totalorder %s28, 1
      %p261 = scmp.ne.s32.totalorder %s256, %s258
      %p262 = scmp.eq.s32.totalorder %s28, 0
      %p263 = por %p261, %p262
      %p264 = scmp.ne.s32.totalorder %s256, %s258
      %p265 = scmp.eq.s32.totalorder %s33, 1
      %p266 = por %p264, %p265
      %p267 = scmp.ne.s32.totalorder %s258, %s259
      %p268 = scmp.eq.s32.totalorder %s33, 0
      %p269 = por %p267, %p268
      %p270 = scmp.ne.s32.totalorder %s258, %s259
      %p271 = scmp.eq.s32.totalorder %s34, 1
      %p272 = por %p270, %p271
      %p274 = scmp.ne.s32.totalorder %s259, %s273
      %p275 = scmp.eq.s32.totalorder %s34, 0
      %p276 = por %p274, %p275
      %s278 = sadd.s32 %s277, 1
      %p281 = scmp.eq.s32.totalorder %s28, 1
      %p282 = scmp.ne.s32.totalorder %s277, %s279
      %p283 = scmp.eq.s32.totalorder %s28, 0
      %p284 = por %p282, %p283
      %p285 = scmp.ne.s32.totalorder %s277, %s279
      %p286 = scmp.eq.s32.totalorder %s33, 1
      %p287 = por %p285, %p286
      %p288 = scmp.ne.s32.totalorder %s279, %s280
      %p289 = scmp.eq.s32.totalorder %s33, 0
      %p290 = por %p288, %p289
      %p291 = scmp.ne.s32.totalorder %s279, %s280
      %p292 = scmp.eq.s32.totalorder %s34, 1
      %p293 = por %p291, %p292
      %p295 = scmp.ne.s32.totalorder %s280, %s294
      %p296 = scmp.eq.s32.totalorder %s34, 0
      %p297 = por %p295, %p296
      %s299 = sadd.s32 %s298, 1
      %p302 = scmp.eq.s32.totalorder %s28, 1
      %p303 = scmp.ne.s32.totalorder %s298, %s300
      %p304 = scmp.eq.s32.totalorder %s28, 0
      %p305 = por %p303, %p304
      %p306 = scmp.ne.s32.totalorder %s298, %s300
      %p307 = scmp.eq.s32.totalorder %s33, 1
      %p308 = por %p306, %p307
      %p309 = scmp.ne.s32.totalorder %s300, %s301
      %p310 = scmp.eq.s32.totalorder %s33, 0
      %p311 = por %p309, %p310
      %p312 = scmp.ne.s32.totalorder %s300, %s301
      %p313 = scmp.eq.s32.totalorder %s34, 1
      %p314 = por %p312, %p313
      %p316 = scmp.ne.s32.totalorder %s301, %s315
      %p317 = scmp.eq.s32.totalorder %s34, 0
      %p318 = por %p316, %p317
      %s320 = sadd.s32 %s319, 1
      %p323 = scmp.eq.s32.totalorder %s28, 1
      %p324 = scmp.ne.s32.totalorder %s319, %s321
      %p325 = scmp.eq.s32.totalorder %s28, 0
      %p326 = por %p324, %p325
      %p327 = scmp.ne.s32.totalorder %s319, %s321
      %p328 = scmp.eq.s32.totalorder %s33, 1
      %p329 = por %p327, %p328
      %p330 = scmp.ne.s32.totalorder %s321, %s322
      %p331 = scmp.eq.s32.totalorder %s33, 0
      %p332 = por %p330, %p331
      %p333 = scmp.ne.s32.totalorder %s321, %s322
      %p334 = scmp.eq.s32.totalorder %s34, 1
      %p335 = por %p333, %p334
      %p337 = scmp.ne.s32.totalorder %s322, %s336
      %p338 = scmp.eq.s32.totalorder %s34, 0
      %p339 = por %p337, %p338
      %s341 = sadd.s32 %s340, 1
      %p344 = scmp.eq.s32.totalorder %s28, 1
      %p345 = scmp.ne.s32.totalorder %s340, %s342
      %p346 = scmp.eq.s32.totalorder %s28, 0
      %p347 = por %p345, %p346
      %p348 = scmp.ne.s32.totalorder %s340, %s342
      %p349 = scmp.eq.s32.totalorder %s33, 1
      %p350 = por %p348, %p349
      %p351 = scmp.ne.s32.totalorder %s342, %s343
      %p352 = scmp.eq.s32.totalorder %s33, 0
      %p353 = por %p351, %p352
      %p354 = scmp.ne.s32.totalorder %s342, %s343
      %p355 = scmp.eq.s32.totalorder %s34, 1
      %p356 = por %p354, %p355
      %p358 = scmp.ne.s32.totalorder %s343, %s357
      %p359 = scmp.eq.s32.totalorder %s34, 0
      %p360 = por %p358, %p359
      %s362 = sadd.s32 %s361, 1
      %p365 = scmp.eq.s32.totalorder %s28, 1
      %p366 = scmp.ne.s32.totalorder %s361, %s363
      %p367 = scmp.eq.s32.totalorder %s28, 0
      %p368 = por %p366, %p367
      %p369 = scmp.ne.s32.totalorder %s361, %s363
      %p370 = scmp.eq.s32.totalorder %s33, 1
      %p371 = por %p369, %p370
      %p372 = scmp.ne.s32.totalorder %s363, %s364
      %p373 = scmp.eq.s32.totalorder %s33, 0
      %p374 = por %p372, %p373
      %p375 = scmp.ne.s32.totalorder %s363, %s364
      %p376 = scmp.eq.s32.totalorder %s34, 1
      %p377 = por %p375, %p376
      %p379 = scmp.ne.s32.totalorder %s364, %s378
      %p380 = scmp.eq.s32.totalorder %s34, 0
      %p381 = por %p379, %p380
      %s383 = sadd.s32 %s382, 1
      %p386 = scmp.eq.s32.totalorder %s28, 1
      %p387 = scmp.ne.s32.totalorder %s382, %s384
      %p388 = scmp.eq.s32.totalorder %s28, 0
      %p389 = por %p387, %p388
      %p390 = scmp.ne.s32.totalorder %s382, %s384
      %p391 = scmp.eq.s32.totalorder %s33, 1
      %p392 = por %p390, %p391
      %p393 = scmp.ne.s32.totalorder %s384, %s385
      %p394 = scmp.eq.s32.totalorder %s33, 0
      %p395 = por %p393, %p394
      %p396 = scmp.ne.s32.totalorder %s384, %s385
      %p397 = scmp.eq.s32.totalorder %s34, 1
      %p398 = por %p396, %p397
      %p400 = scmp.ne.s32.totalorder %s385, %s399
      %p401 = scmp.eq.s32.totalorder %s34, 0
      %p402 = por %p400, %p401
      %s404 = sadd.s32 %s403, 1
      %p407 = scmp.eq.s32.totalorder %s28, 1
      %p408 = scmp.ne.s32.totalorder %s403, %s405
      %p409 = scmp.eq.s32.totalorder %s28, 0
      %p410 = por %p408, %p409
      %p411 = scmp.ne.s32.totalorder %s403, %s405
      %p412 = scmp.eq.s32.totalorder %s33, 1
      %p413 = por %p411, %p412
      %p414 = scmp.ne.s32.totalorder %s405, %s406
      %p415 = scmp.eq.s32.totalorder %s33, 0
      %p416 = por %p414, %p415
      %p417 = scmp.ne.s32.totalorder %s405, %s406
      %p418 = scmp.eq.s32.totalorder %s34, 1
      %p419 = por %p417, %p418
      %p421 = scmp.ne.s32.totalorder %s406, %s420
      %p422 = scmp.eq.s32.totalorder %s34, 0
      %p423 = por %p421, %p422
      %s425 = sadd.s32 %s424, 1
      %p428 = scmp.eq.s32.totalorder %s28, 1
      %p429 = scmp.ne.s32.totalorder %s424, %s426
      %p430 = scmp.eq.s32.totalorder %s28, 0
      %p431 = por %p429, %p430
      %p432 = scmp.ne.s32.totalorder %s424, %s426
      %p433 = scmp.eq.s32.totalorder %s33, 1
      %p434 = por %p432, %p433
      %p435 = scmp.ne.s32.totalorder %s426, %s427
      %p436 = scmp.eq.s32.totalorder %s33, 0
      %p437 = por %p435, %p436
      %p438 = scmp.ne.s32.totalorder %s426, %s427
      %p439 = scmp.eq.s32.totalorder %s34, 1
      %p440 = por %p438, %p439
      %p442 = scmp.ne.s32.totalorder %s427, %s441
      %p443 = scmp.eq.s32.totalorder %s34, 0
      %p444 = por %p442, %p443
      %s446 = sadd.s32 %s445, 1
      %p449 = scmp.eq.s32.totalorder %s28, 1
      %p450 = scmp.ne.s32.totalorder %s445, %s447
      %p451 = scmp.eq.s32.totalorder %s28, 0
      %p452 = por %p450, %p451
      %p453 = scmp.ne.s32.totalorder %s445, %s447
      %p454 = scmp.eq.s32.totalorder %s33, 1
      %p455 = por %p453, %p454
      %p456 = scmp.ne.s32.totalorder %s447, %s448
      %p457 = scmp.eq.s32.totalorder %s33, 0
      %p458 = por %p456, %p457
      %p459 = scmp.ne.s32.totalorder %s447, %s448
      %p460 = scmp.eq.s32.totalorder %s34, 1
      %p461 = por %p459, %p460
      %p463 = scmp.ne.s32.totalorder %s448, %s462
      %p464 = scmp.eq.s32.totalorder %s34, 0
      %p465 = por %p463, %p464
      %s466 = ssub.s32 %s28, %s35
      %p467 = scmp.eq.s32.totalorder %s466, 0
      %s469 = sadd.s32 %s468, 1
      %s470 = scalar_select %p467, %s468, %s469
      %p473 = pneg %p467
      %p474 = scmp.eq.s32.totalorder %s28, 1
      %p475 = por %p473, %p474
      %p476 = scmp.ne.s32.totalorder %s468, %s471
      %p477 = scmp.eq.s32.totalorder %s28, 0
      %p478 = por %p476, %p477
      %p479 = scmp.ne.s32.totalorder %s468, %s471
      %p480 = scmp.eq.s32.totalorder %s33, 1
      %p481 = por %p479, %p480
      %p482 = scmp.ne.s32.totalorder %s471, %s472
      %p483 = scmp.eq.s32.totalorder %s33, 0
      %p484 = por %p482, %p483
      %p485 = scmp.ne.s32.totalorder %s471, %s472
      %p486 = scmp.eq.s32.totalorder %s34, 1
      %p487 = por %p485, %p486
      %p489 = scmp.ne.s32.totalorder %s472, %s488
      %p490 = scmp.eq.s32.totalorder %s34, 0
      %p491 = por %p489, %p490
      %p492 = scmp.le.s32.totalorder 1, %s28
      %p493 = scmp.lt.s32.totalorder %s28, 3
      %p494 = pnand %p492, %p493
      %p495 = pneg %p494
      // Predicated region
      $region9: #{transformer_motion_forward.1} parent=5 // pred_check
        _
      $region10: #{transformer_motion_forward.1} parent=5 // pred_check_branch
        %497 = sbr.rel (%p494) target = $region12
      $region11: #{transformer_motion_forward.1} parent=5 // pred_region
        %s498 = ssub.s32 %s28, 1
        // Predicated region
        $region13: #{transformer_motion_forward.1} parent=11 // pred_check
          %p499 = pneg %p101
        $region14: #{transformer_motion_forward.1} parent=11 // pred_check_branch
          %501 = sbr.rel (%p499) target = $region16
        $region15: #{transformer_motion_forward.1} parent=11 // pred_region
          %s503 = ssub.s32 256, 256
          %504 = vsyncadd [#allocation4], %s503
          %s505 = sshll.u32 [#allocation3], 4
          %s506 = int_to_ptr.vmem [resolvable:$true] %s505
          %511 = dma.hbm_to_vmem [thread:$0]  %s2, 256, %s506, [#allocation4], 128, 128, 8
        $region16: #{transformer_motion_forward.1} parent=11 // pred_fallthru
          _
        // Predicated region
        $region17: #{transformer_motion_forward.1} parent=11 // pred_check
          %p512 = pneg %p122
        $region18: #{transformer_motion_forward.1} parent=11 // pred_check_branch
          %514 = sbr.rel (%p512) target = $region20
        $region19: #{transformer_motion_forward.1} parent=11 // pred_region
          %s516 = ssub.s32 256, 256
          %517 = vsyncadd [#allocation6], %s516
          %s518 = sshll.u32 [#allocation5], 4
          %s519 = int_to_ptr.vmem [resolvable:$true] %s518
          %524 = dma.hbm_to_vmem [thread:$0]  %s3, 256, %s519, [#allocation6], 128, 128, 8
        $region20: #{transformer_motion_forward.1} parent=11 // pred_fallthru
          _
        // Predicated region
        $region21: #{transformer_motion_forward.1} parent=11 // pred_check
          %p525 = pneg %p143
        $region22: #{transformer_motion_forward.1} parent=11 // pred_check_branch
          %527 = sbr.rel (%p525) target = $region24
        $region23: #{transformer_motion_forward.1} parent=11 // pred_region
          _
        $region24: #{transformer_motion_forward.1} parent=11 // pred_fallthru
          _
        // Predicated region
        $region25: #{transformer_motion_forward.1} parent=11 // pred_check
          %p528 = pneg %p164
        $region26: #{transformer_motion_forward.1} parent=11 // pred_check_branch
          %530 = sbr.rel (%p528) target = $region28
        $region27: #{transformer_motion_forward.1} parent=11 // pred_region
          _
        $region28: #{transformer_motion_forward.1} parent=11 // pred_fallthru
          _
        // Predicated region
        $region29: #{transformer_motion_forward.1} parent=11 // pred_check
          %p531 = pneg %p185
        $region30: #{transformer_motion_forward.1} parent=11 // pred_check_branch
          %533 = sbr.rel (%p531) target = $region32
        $region31: #{transformer_motion_forward.1} parent=11 // pred_region
          %s535 = ssub.s32 1024, 1024
          %536 = vsyncadd [#allocation6], %s535
          %s537 = sshll.u32 [#allocation7], 4
          %s538 = int_to_ptr.vmem [resolvable:$true] %s537
          %543 = dma.hbm_to_vmem [thread:$0]  %s6, 1024, %s538, [#allocation6], 128, 128, 8
        $region32: #{transformer_motion_forward.1} parent=11 // pred_fallthru
          _
        // Predicated region
        $region33: #{transformer_motion_forward.1} parent=11 // pred_check
          %p544 = pneg %p206
        $region34: #{transformer_motion_forward.1} parent=11 // pred_check_branch
          %546 = sbr.rel (%p544) target = $region36
        $region35: #{transformer_motion_forward.1} parent=11 // pred_region
          _
        $region36: #{transformer_motion_forward.1} parent=11 // pred_fallthru
          _
        // Predicated region
        $region37: #{transformer_motion_forward.1} parent=11 // pred_check
          %p547 = pneg %p227
        $region38: #{transformer_motion_forward.1} parent=11 // pred_check_branch
          %549 = sbr.rel (%p547) target = $region40
        $region39: #{transformer_motion_forward.1} parent=11 // pred_region
          _
        $region40: #{transformer_motion_forward.1} parent=11 // pred_fallthru
          _
        // Predicated region
        $region41: #{transformer_motion_forward.1} parent=11 // pred_check
          %p550 = pneg %p248
        $region42: #{transformer_motion_forward.1} parent=11 // pred_check_branch
          %552 = sbr.rel (%p550) target = $region44
        $region43: #{transformer_motion_forward.1} parent=11 // pred_region
          _
        $region44: #{transformer_motion_forward.1} parent=11 // pred_fallthru
          _
        // Predicated region
        $region45: #{transformer_motion_forward.1} parent=11 // pred_check
          %p553 = pneg %p269
        $region46: #{transformer_motion_forward.1} parent=11 // pred_check_branch
          %555 = sbr.rel (%p553) target = $region48
        $region47: #{transformer_motion_forward.1} parent=11 // pred_region
          _
        $region48: #{transformer_motion_forward.1} parent=11 // pred_fallthru
          _
        // Predicated region
        $region49: #{transformer_motion_forward.1} parent=11 // pred_check
          %p556 = pneg %p290
        $region50: #{transformer_motion_forward.1} parent=11 // pred_check_branch
          %558 = sbr.rel (%p556) target = $region52
        $region51: #{transformer_motion_forward.1} parent=11 // pred_region
          _
        $region52: #{transformer_motion_forward.1} parent=11 // pred_fallthru
          _
        // Predicated region
        $region53: #{transformer_motion_forward.1} parent=11 // pred_check
          %p559 = pneg %p311
        $region54: #{transformer_motion_forward.1} parent=11 // pred_check_branch
          %561 = sbr.rel (%p559) target = $region56
        $region55: #{transformer_motion_forward.1} parent=11 // pred_region
          _
        $region56: #{transformer_motion_forward.1} parent=11 // pred_fallthru
          _
        // Predicated region
        $region57: #{transformer_motion_forward.1} parent=11 // pred_check
          %p562 = pneg %p332
        $region58: #{transformer_motion_forward.1} parent=11 // pred_check_branch
          %564 = sbr.rel (%p562) target = $region60
        $region59: #{transformer_motion_forward.1} parent=11 // pred_region
          _
        $region60: #{transformer_motion_forward.1} parent=11 // pred_fallthru
          _
        // Predicated region
        $region61: #{transformer_motion_forward.1} parent=11 // pred_check
          %p565 = pneg %p353
        $region62: #{transformer_motion_forward.1} parent=11 // pred_check_branch
          %567 = sbr.rel (%p565) target = $region64
        $region63: #{transformer_motion_forward.1} parent=11 // pred_region
          _
        $region64: #{transformer_motion_forward.1} parent=11 // pred_fallthru
          _
        // Predicated region
        $region65: #{transformer_motion_forward.1} parent=11 // pred_check
          %p568 = pneg %p374
        $region66: #{transformer_motion_forward.1} parent=11 // pred_check_branch
          %570 = sbr.rel (%p568) target = $region68
        $region67: #{transformer_motion_forward.1} parent=11 // pred_region
          _
        $region68: #{transformer_motion_forward.1} parent=11 // pred_fallthru
          _
        // Predicated region
        $region69: #{transformer_motion_forward.1} parent=11 // pred_check
          %p571 = pneg %p395
        $region70: #{transformer_motion_forward.1} parent=11 // pred_check_branch
          %573 = sbr.rel (%p571) target = $region72
        $region71: #{transformer_motion_forward.1} parent=11 // pred_region
          _
        $region72: #{transformer_motion_forward.1} parent=11 // pred_fallthru
          _
        // Predicated region
        $region73: #{transformer_motion_forward.1} parent=11 // pred_check
          %p574 = pneg %p416
        $region74: #{transformer_motion_forward.1} parent=11 // pred_check_branch
          %576 = sbr.rel (%p574) target = $region76
        $region75: #{transformer_motion_forward.1} parent=11 // pred_region
          _
        $region76: #{transformer_motion_forward.1} parent=11 // pred_fallthru
          _
        // Predicated region
        $region77: #{transformer_motion_forward.1} parent=11 // pred_check
          %p577 = pneg %p437
        $region78: #{transformer_motion_forward.1} parent=11 // pred_check_branch
          %579 = sbr.rel (%p577) target = $region80
        $region79: #{transformer_motion_forward.1} parent=11 // pred_region
          _
        $region80: #{transformer_motion_forward.1} parent=11 // pred_fallthru
          _
        // Predicated region
        $region81: #{transformer_motion_forward.1} parent=11 // pred_check
          %p580 = pneg %p458
        $region82: #{transformer_motion_forward.1} parent=11 // pred_check_branch
          %582 = sbr.rel (%p580) target = $region84
        $region83: #{transformer_motion_forward.1} parent=11 // pred_region
          _
        $region84: #{transformer_motion_forward.1} parent=11 // pred_fallthru
          _
      $region12: #{transformer_motion_forward.1} parent=5 // pred_fallthru
        _
      %p583 = scmp.lt.s32.totalorder %s28, 2
      // Predicated region
      $region85: #{transformer_motion_forward.1} parent=5 // pred_check
        %p584 = pneg %p583
      $region86: #{transformer_motion_forward.1} parent=5 // pred_check_branch
        %586 = sbr.rel (%p584) target = $region88
      $region87: #{transformer_motion_forward.1} parent=5 // pred_region
        // Predicated region
        $region89: #{transformer_motion_forward.1} parent=87 // pred_check
          %p587 = pneg %p48
        $region90: #{transformer_motion_forward.1} parent=87 // pred_check_branch
          %589 = sbr.rel (%p587) target = $region92
        $region91: #{transformer_motion_forward.1} parent=87 // pred_region
          %p590 = scmp.lt.s32.totalorder %s28, 1
          %s591 = scalar_select %p590, %s28, 1
          %s592 = smul.addr %s591, 2
          %s593 = smul.addr %s592, 8
          %s594 = scalar_lea.vmem %s0, %s593
        $region92: #{transformer_motion_forward.1} parent=87 // pred_fallthru
          _
        // Predicated region
        $region93: #{transformer_motion_forward.1} parent=87 // pred_check
          %p595 = pneg %p74
        $region94: #{transformer_motion_forward.1} parent=87 // pred_check_branch
          %597 = sbr.rel (%p595) target = $region96
        $region95: #{transformer_motion_forward.1} parent=87 // pred_region
          %p598 = scmp.lt.s32.totalorder %s28, 1
          %s599 = scalar_select %p598, %s28, 1
          %s600 = scalar_lea.vmem %s1, %s599
        $region96: #{transformer_motion_forward.1} parent=87 // pred_fallthru
          _
      $region88: #{transformer_motion_forward.1} parent=5 // pred_fallthru
        _
      %p601 = scmp.le.s32.totalorder 1, %s28
      %p602 = scmp.lt.s32.totalorder %s28, 3
      %p603 = pnand %p601, %p602
      %p604 = pneg %p603
      // Predicated region
      $region97: #{transformer_motion_forward.1} parent=5 // pred_check
        _
      $region98: #{transformer_motion_forward.1} parent=5 // pred_check_branch
        %606 = sbr.rel (%p603) target = $region100
      $region99: #{transformer_motion_forward.1} parent=5 // pred_region
        %s607 = ssub.s32 %s28, 1
        // Predicated region
        $region101: #{transformer_motion_forward.1} parent=99 // pred_check
          %p608 = pneg %p101
        $region102: #{transformer_motion_forward.1} parent=99 // pred_check_branch
          %610 = sbr.rel (%p608) target = $region104
        $region103: #{transformer_motion_forward.1} parent=99 // pred_region
          %611 = dma.done [#allocation4], 256
        $region104: #{transformer_motion_forward.1} parent=99 // pred_fallthru
          _
        // Predicated region
        $region105: #{transformer_motion_forward.1} parent=99 // pred_check
          %p612 = pneg %p122
        $region106: #{transformer_motion_forward.1} parent=99 // pred_check_branch
          %614 = sbr.rel (%p612) target = $region108
        $region107: #{transformer_motion_forward.1} parent=99 // pred_region
          %615 = dma.done [#allocation6], 256
        $region108: #{transformer_motion_forward.1} parent=99 // pred_fallthru
          _
        // Predicated region
        $region109: #{transformer_motion_forward.1} parent=99 // pred_check
          %p616 = pneg %p185
        $region110: #{transformer_motion_forward.1} parent=99 // pred_check_branch
          %618 = sbr.rel (%p616) target = $region112
        $region111: #{transformer_motion_forward.1} parent=99 // pred_region
          %619 = dma.done [#allocation6], 1024
        $region112: #{transformer_motion_forward.1} parent=99 // pred_fallthru
          _
        %p620 = scmp.lt.s32.totalorder %s33, 1
        %s621 = scalar_select %p620, %s33, 1
        %s622 = smul.addr %s621, 2
        %s623 = smul.addr %s622, 8
        %s624 = scalar_lea.vmem %s0, %s623
        %p625 = pneg %p54
        %p626 = pneg %p51
        %p627 = scmp.lt.s32.totalorder %s33, 1
        %s628 = scalar_select %p627, %s33, 1
        %s629 = scalar_lea.vmem %s1, %s628
        %p630 = pneg %p80
        %p631 = pneg %p77
        %p632 = pneg %p101
        %p633 = pneg %p98
        %p634 = pneg %p122
        %p635 = pneg %p119
        %p636 = pneg %p143
        %p637 = pneg %p140
        %p638 = pneg %p164
        %p639 = pneg %p161
        %p640 = pneg %p185
        %p641 = pneg %p182
        %p642 = pneg %p206
        %p643 = pneg %p203
        %p644 = pneg %p227
        %p645 = pneg %p224
        %p646 = pneg %p248
        %p647 = pneg %p245
        %p648 = pneg %p269
        %p649 = pneg %p266
        %p650 = pneg %p290
        %p651 = pneg %p287
        %p652 = pneg %p311
        %p653 = pneg %p308
        %p654 = pneg %p332
        %p655 = pneg %p329
        %p656 = pneg %p353
        %p657 = pneg %p350
        %p658 = pneg %p374
        %p659 = pneg %p371
        %p660 = pneg %p395
        %p661 = pneg %p392
        %p662 = pneg %p416
        %p663 = pneg %p413
        %p664 = pneg %p437
        %p665 = pneg %p434
        %p666 = pneg %p458
        %p667 = pneg %p455
        %p668 = pneg %p484
        %p669 = pneg %p481
        %p670 = scmp.lt.s32.totalorder %s33, 1
        %s671 = scalar_select %p670, %s33, 1
        %s672 = smul.addr %s671, 2
        %s673 = smul.addr %s672, 8
        %s674 = scalar_lea.vmem %s20, %s673
        %p675 = scmp.lt.s32.totalorder %s33, 1
        %s676 = scalar_select %p675, %s33, 1
        %s677 = smul.addr %s676, 2
        %s678 = smul.addr %s677, 8
        %s679 = scalar_lea.vmem %s0, %s678
        %p680 = scmp.lt.s32.totalorder %s33, 1
        %s681 = scalar_select %p680, %s33, 1
        %s682 = scalar_lea.vmem %s1, %s681
        %p683 = scmp.lt.s32.totalorder %s33, 1
        %s684 = scalar_select %p683, %s33, 1
        %s685 = smul.addr %s684, 2
        %s686 = smul.addr %s685, 8
        %s687 = scalar_lea.vmem %s20, %s686
        %v688 = vld [vmem:[%s679] sm:$0xff]
        %v689 = vld [vmem:[%s679 + $0x8] sm:$0xff]
        %v690 = vld [vmem:[%s682] sm:$0x1]
        %v692 = vlaneseq
        %v693 = vshrl.u32 %v692, 7
        %v694 = vsub.s32 0, %v693
        %v695 = vrot.slane %v690, %v694
        %v697 = vld [vmem:[#allocation3] sm:$0xff]
        %v698 = vld [vmem:[#allocation3 + $0x8] sm:$0xff]
        %v699 = vld [vmem:[#allocation5] sm:$0xff]
        %v700 = vld [vmem:[#allocation5 + $0x8] sm:$0xff]
        %vm701 = vcmask 130048
        %v703 = vsel %vm701, %v688, 0
        %v706 = vsel %vm701, %v689, 0
        %708 = vmatprep.subr.mxu0 0.0
        %709 = vmatpush1.msra.mxu0 %v697
        %710 = vmatprep.subr.mxu0 0.0
        %711 = vmatpush1.msra.mxu0 %v698
        %712 = vmatprep.subr.mxu0 0.0
        %713 = vmatpush1.msra.mxu0 0.0
        %714 = vmatprep.subr.mxu0 0.0
        %715 = vmatpush1.msra.mxu0 0.0
        %716 = vmatprep.subr.mxu0 0.0
        %717 = vmatpush1.msra.mxu0 0.0
        %718 = vmatprep.subr.mxu0 0.0
        %719 = vmatpush1.msra.mxu0 0.0
        %720 = vmatprep.subr.mxu0 0.0
        %721 = vmatpush1.msra.mxu0 0.0
        %722 = vmatprep.subr.mxu0 0.0
        %723 = vmatpush1.msra.mxu0 0.0
        %724 = vmatprep.subr.mxu0 0.0
        %725 = vmatpush1.msra.mxu0 0.0
        %726 = vmatprep.subr.mxu0 0.0
        %727 = vmatpush1.msra.mxu0 0.0
        %728 = vmatprep.subr.mxu0 0.0
        %729 = vmatpush1.msra.mxu0 0.0
        %730 = vmatprep.subr.mxu0 0.0
        %731 = vmatpush1.msra.mxu0 0.0
        %732 = vmatprep.subr.mxu0 0.0
        %733 = vmatpush1.msra.mxu0 0.0
        %734 = vmatprep.subr.mxu0 0.0
        %735 = vmatpush1.msra.mxu0 0.0
        %736 = vmatprep.subr.mxu0 0.0
        %737 = vmatpush1.msra.mxu0 0.0
        %738 = vmatprep.subr.mxu0 0.0
        %739 = vmatpush1.msra.mxu0 0.0
        %740 = vmatprep.subr.mxu0 0.0
        %741 = vmatpush1.msra.mxu0 0.0
        %742 = vmatprep.subr.mxu0 0.0
        %743 = vmatpush1.msra.mxu0 0.0
        %744 = vmatprep.subr.mxu0 0.0
        %745 = vmatpush1.msra.mxu0 0.0
        %746 = vmatprep.subr.mxu0 0.0
        %747 = vmatpush1.msra.mxu0 0.0
        %748 = vmatprep.subr.mxu0 0.0
        %749 = vmatpush1.msra.mxu0 0.0
        %750 = vmatprep.subr.mxu0 0.0
        %751 = vmatpush1.msra.mxu0 0.0
        %752 = vmatprep.subr.mxu0 0.0
        %753 = vmatpush1.msra.mxu0 0.0
        %754 = vmatprep.subr.mxu0 0.0
        %755 = vmatpush1.msra.mxu0 0.0
        %756 = vmatprep.subr.mxu0 0.0
        %757 = vmatpush1.msra.mxu0 0.0
        %758 = vmatprep.subr.mxu0 0.0
        %759 = vmatpush1.msra.mxu0 0.0
        %760 = vmatprep.subr.mxu0 0.0
        %761 = vmatpush1.msra.mxu0 0.0
        %762 = vmatprep.subr.mxu0 0.0
        %763 = vmatpush1.msra.mxu0 0.0
        %764 = vmatprep.subr.mxu0 0.0
        %765 = vmatpush1.msra.mxu0 0.0
        %766 = vmatprep.subr.mxu0 0.0
        %767 = vmatpush1.msra.mxu0 0.0
        %768 = vmatprep.subr.mxu0 0.0
        %769 = vmatpush1.msra.mxu0 0.0
        %770 = vmatprep.subr.mxu0 0.0
        %771 = vmatpush1.msra.mxu0 0.0
        %772 = vmatprep.mubr.f32.mxu0 0.0
        %773 = vmatmul.mubr.f32.gmra.mrb[0].mxu0 %v703
        %v774 = vpop.f32.mrb[0].mxu0
        %v775 = vadd.f32 %v699, %v774
        %v776 = vpop.f32.mrb[0].mxu0
        %777 = vmatprep.mubr.f32.mxu0 0.0
        %778 = vmatmul.mubr.f32.gmra.mrb[0].mxu0 %v706
        %v779 = vpop.f32.mrb[0].mxu0
        %v780 = vadd.f32 %v700, %v779
        %v781 = vpop.f32.mrb[0].mxu0
        %782 = vdwg.mxu0
        %v783 = vld [vmem:[%s4] sm:$0x1]
        %v784 = vld [vmem:[%s5] sm:$0x1]
        %vm785 = vcmask 261120
        %v786 = vsel %vm785, %v775, 0.0
        %787 = vadd.xlane.f32.xlu0 %v786
        %v788 = vpop.xlane.xlu0 %787
        %v789 = vsel %vm785, %v780, 0.0
        %790 = vadd.xlane.f32.xlu0 %v789
        %v791 = vpop.xlane.xlu0 %790
        %v792 = vrcp.pop 32.0
        %v793 = vmul.f32 %v788, %v792
        %v794 = vmul.f32 %v791, %v792
        %v795 = vsub.f32 %v775, %v793
        %v796 = vsub.f32 %v780, %v794
        %v797 = vmul.f32 %v795, %v795
        %v798 = vmul.f32 %v796, %v796
        %v799 = vsel %vm785, %v797, 0.0
        %800 = vadd.xlane.f32.xlu0 %v799
        %v801 = vpop.xlane.xlu0 %800
        %v802 = vsel %vm785, %v798, 0.0
        %803 = vadd.xlane.f32.xlu0 %v802
        %v804 = vpop.xlane.xlu0 %803
        %v805 = vmul.f32 %v801, %v792
        %v806 = vmul.f32 %v804, %v792
        %v807 = vadd.f32 %v805, 1e-12
        %v808 = vadd.f32 %v806, 1e-12
        %v809 = vrsqrt.pop %v807
        %v810 = vrsqrt.pop %v808
        %v811 = vmul.f32 %v795, %v809
        %v812 = vmul.f32 %v796, %v810
        %v814 = vlaneseq
        %v815 = vshrl.u32 %v814, 7
        %v816 = vsub.s32 0, %v815
        %v817 = vrot.slane %v783, %v816
        %v819 = vmul.f32 %v811, %v817
        %v820 = vmul.f32 %v812, %v817
        %v822 = vlaneseq
        %v823 = vshrl.u32 %v822, 7
        %v824 = vsub.s32 0, %v823
        %v825 = vrot.slane %v784, %v824
        %v827 = vadd.f32 %v819, %v825
        %v828 = vadd.f32 %v820, %v825
        %v829 = vld [vmem:[#allocation7] sm:$0xff]
        %v830 = vld [vmem:[#allocation7 + $0x8] sm:$0xff]
        %v831 = vld [vmem:[#allocation7 + $0x10] sm:$0xff]
        %v832 = vld [vmem:[#allocation7 + $0x18] sm:$0xff]
        %v833 = vld [vmem:[%s7] sm:$0x1]
        %v835 = vlaneseq
        %v836 = vshrl.u32 %v835, 7
        %v837 = vsub.s32 0, %v836
        %v838 = vrot.slane %v833, %v837
        %v841 = vsel %vm785, %v827, 0
        %v844 = vsel %vm785, %v828, 0
        %846 = vmatprep.subr.mxu0 0.0
        %847 = vmatpush1.msra.mxu0 %v829
        %848 = vmatprep.subr.mxu0 0.0
        %849 = vmatpush1.msra.mxu0 %v830
        %850 = vmatprep.subr.mxu0 0.0
        %851 = vmatpush1.msra.mxu0 %v831
        %852 = vmatprep.subr.mxu0 0.0
        %853 = vmatpush1.msra.mxu0 %v832
        %854 = vmatprep.subr.mxu0 0.0
        %855 = vmatpush1.msra.mxu0 0.0
        %856 = vmatprep.subr.mxu0 0.0
        %857 = vmatpush1.msra.mxu0 0.0
        %858 = vmatprep.subr.mxu0 0.0
        %859 = vmatpush1.msra.mxu0 0.0
        %860 = vmatprep.subr.mxu0 0.0
        %861 = vmatpush1.msra.mxu0 0.0
        %862 = vmatprep.subr.mxu0 0.0
        %863 = vmatpush1.msra.mxu0 0.0
        %864 = vmatprep.subr.mxu0 0.0
        %865 = vmatpush1.msra.mxu0 0.0
        %866 = vmatprep.subr.mxu0 0.0
        %867 = vmatpush1.msra.mxu0 0.0
        %868 = vmatprep.subr.mxu0 0.0
        %869 = vmatpush1.msra.mxu0 0.0
        %870 = vmatprep.subr.mxu0 0.0
        %871 = vmatpush1.msra.mxu0 0.0
        %872 = vmatprep.subr.mxu0 0.0
        %873 = vmatpush1.msra.mxu0 0.0
        %874 = vmatprep.subr.mxu0 0.0
        %875 = vmatpush1.msra.mxu0 0.0
        %876 = vmatprep.subr.mxu0 0.0
        %877 = vmatpush1.msra.mxu0 0.0
        %878 = vmatprep.subr.mxu0 0.0
        %879 = vmatpush1.msra.mxu0 0.0
        %880 = vmatprep.subr.mxu0 0.0
        %881 = vmatpush1.msra.mxu0 0.0
        %882 = vmatprep.subr.mxu0 0.0
        %883 = vmatpush1.msra.mxu0 0.0
        %884 = vmatprep.subr.mxu0 0.0
        %885 = vmatpush1.msra.mxu0 0.0
        %886 = vmatprep.subr.mxu0 0.0
        %887 = vmatpush1.msra.mxu0 0.0
        %888 = vmatprep.subr.mxu0 0.0
        %889 = vmatpush1.msra.mxu0 0.0
        %890 = vmatprep.subr.mxu0 0.0
        %891 = vmatpush1.msra.mxu0 0.0
        %892 = vmatprep.subr.mxu0 0.0
        %893 = vmatpush1.msra.mxu0 0.0
        %894 = vmatprep.subr.mxu0 0.0
        %895 = vmatpush1.msra.mxu0 0.0
        %896 = vmatprep.subr.mxu0 0.0
        %897 = vmatpush1.msra.mxu0 0.0
        %898 = vmatprep.subr.mxu0 0.0
        %899 = vmatpush1.msra.mxu0 0.0
        %900 = vmatprep.subr.mxu0 0.0
        %901 = vmatpush1.msra.mxu0 0.0
        %902 = vmatprep.subr.mxu0 0.0
        %903 = vmatpush1.msra.mxu0 0.0
        %904 = vmatprep.subr.mxu0 0.0
        %905 = vmatpush1.msra.mxu0 0.0
        %906 = vmatprep.subr.mxu0 0.0
        %907 = vmatpush1.msra.mxu0 0.0
        %908 = vmatprep.subr.mxu0 0.0
        %909 = vmatpush1.msra.mxu0 0.0
        %910 = vmatprep.mubr.f32.mxu0 0.0
        %911 = vmatmul.mubr.f32.gmra.mrb[0].mxu0 %v841
        %v912 = vpop.f32.mrb[0].mxu0
        %v913 = vadd.f32 %v838, %v912
        %v914 = vpop.f32.mrb[0].mxu0
        %915 = vmatprep.mubr.f32.mxu0 0.0
        %916 = vmatmul.mubr.f32.gmra.mrb[0].mxu0 %v844
        %v917 = vpop.f32.mrb[0].mxu0
        %v918 = vadd.f32 %v838, %v917
        %v919 = vpop.f32.mrb[0].mxu0
        %920 = vdwg.mxu0
        %923 = vrot.lane.b32.xlu0 %v913, 96
        %v924 = vpop.permute.xlu0 %923
        %925 = vrot.lane.b32.xlu0 %v918, 96
        %v926 = vpop.permute.xlu0 %925
        %vm927 = vcmask 64512
        %v928 = vsel %vm927, %v913, 0
        %v930 = vsel %vm927, %v918, 0
        %v932 = vsel %vm927, %v924, 0
        %v934 = vsel %vm927, %v926, 0
        %936 = vmatprep.subr.mxu0 0.0
        %937 = vmatpush1.xpose.msra.mxu0 %v932
        %938 = vmatprep.subr.mxu0 0.0
        %939 = vmatpush1.xpose.msra.mxu0 %v934
        %940 = vmatprep.subr.mxu0 0.0
        %941 = vmatpush1.xpose.msra.mxu0 0.0
        %942 = vmatprep.subr.mxu0 0.0
        %943 = vmatpush1.xpose.msra.mxu0 0.0
        %944 = vmatprep.subr.mxu0 0.0
        %945 = vmatpush1.xpose.msra.mxu0 0.0
        %946 = vmatprep.subr.mxu0 0.0
        %947 = vmatpush1.xpose.msra.mxu0 0.0
        %948 = vmatprep.subr.mxu0 0.0
        %949 = vmatpush1.xpose.msra.mxu0 0.0
        %950 = vmatprep.subr.mxu0 0.0
        %951 = vmatpush1.xpose.msra.mxu0 0.0
        %952 = vmatprep.subr.mxu0 0.0
        %953 = vmatpush1.xpose.msra.mxu0 0.0
        %954 = vmatprep.subr.mxu0 0.0
        %955 = vmatpush1.xpose.msra.mxu0 0.0
        %956 = vmatprep.subr.mxu0 0.0
        %957 = vmatpush1.xpose.msra.mxu0 0.0
        %958 = vmatprep.subr.mxu0 0.0
        %959 = vmatpush1.xpose.msra.mxu0 0.0
        %960 = vmatprep.subr.mxu0 0.0
        %961 = vmatpush1.xpose.msra.mxu0 0.0
        %962 = vmatprep.subr.mxu0 0.0
        %963 = vmatpush1.xpose.msra.mxu0 0.0
        %964 = vmatprep.subr.mxu0 0.0
        %965 = vmatpush1.xpose.msra.mxu0 0.0
        %966 = vmatprep.subr.mxu0 0.0
        %967 = vmatpush1.xpose.msra.mxu0 0.0
        %968 = vmatprep.subr.mxu0 0.0
        %969 = vmatpush1.xpose.msra.mxu0 0.0
        %970 = vmatprep.subr.mxu0 0.0
        %971 = vmatpush1.xpose.msra.mxu0 0.0
        %972 = vmatprep.subr.mxu0 0.0
        %973 = vmatpush1.xpose.msra.mxu0 0.0
        %974 = vmatprep.subr.mxu0 0.0
        %975 = vmatpush1.xpose.msra.mxu0 0.0
        %976 = vmatprep.subr.mxu0 0.0
        %977 = vmatpush1.xpose.msra.mxu0 0.0
        %978 = vmatprep.subr.mxu0 0.0
        %979 = vmatpush1.xpose.msra.mxu0 0.0
        %980 = vmatprep.subr.mxu0 0.0
        %981 = vmatpush1.xpose.msra.mxu0 0.0
        %982 = vmatprep.subr.mxu0 0.0
        %983 = vmatpush1.xpose.msra.mxu0 0.0
        %984 = vmatprep.subr.mxu0 0.0
        %985 = vmatpush1.xpose.msra.mxu0 0.0
        %986 = vmatprep.subr.mxu0 0.0
        %987 = vmatpush1.xpose.msra.mxu0 0.0
        %988 = vmatprep.subr.mxu0 0.0
        %989 = vmatpush1.xpose.msra.mxu0 0.0
        %990 = vmatprep.subr.mxu0 0.0
        %991 = vmatpush1.xpose.msra.mxu0 0.0
        %992 = vmatprep.subr.mxu0 0.0
        %993 = vmatpush1.xpose.msra.mxu0 0.0
        %994 = vmatprep.subr.mxu0 0.0
        %995 = vmatpush1.xpose.msra.mxu0 0.0
        %996 = vmatprep.subr.mxu0 0.0
        %997 = vmatpush1.xpose.msra.mxu0 0.0
        %998 = vmatprep.subr.mxu0 0.0
        %999 = vmatpush1.xpose.msra.mxu0 0.0
        %1000 = vmatprep.mubr.f32.mxu0 0.0
        %1001 = vmatmul.mubr.f32.gmra.mrb[0].mxu0 %v928
        %v1002 = vpop.f32.mrb[0].mxu0
        %v1003 = vadd.f32 0.0, %v1002
        %v1004 = vpop.f32.mrb[0].mxu0
        %1005 = vmatprep.mubr.f32.mxu0 0.0
        %1006 = vmatmul.mubr.f32.gmra.mrb[0].mxu0 %v930
        %v1007 = vpop.f32.mrb[0].mxu0
        %v1008 = vadd.f32 0.0, %v1007
        %v1009 = vpop.f32.mrb[0].mxu0
        %1010 = vdwg.mxu0
        %v1011 = vmul.f32 %v1003, 0.35355338
        %v1012 = vmul.f32 %v1008, 0.35355338
        %v1013 = vadd.f32 %v1011, %v695
        %v1014 = vadd.f32 %v1012, %v695
        %v1015 = vsel %vm701, %v1013, -inf
        %1016 = vmax.xlane.f32.xlu0 %v1015
        %v1017 = vpop.xlane.xlu0 %1016
        %v1018 = vsel %vm701, %v1014, -inf
        %1019 = vmax.xlane.f32.xlu0 %v1018
        %v1020 = vpop.xlane.xlu0 %1019
        %v1021 = vsub.f32 %v1013, %v1017
        %v1022 = vsub.f32 %v1014, %v1020
        %v1023 = vmul.f32 %v1021, 1.442695
        %v1024 = vpow.pop %v1023
        %v1025 = vmul.f32 %v1022, 1.442695
        %v1026 = vpow.pop %v1025
        %v1027 = vsel %vm701, %v1024, 0.0
        %1028 = vadd.xlane.f32.xlu0 %v1027
        %v1029 = vpop.xlane.xlu0 %1028
        %v1030 = vsel %vm701, %v1026, 0.0
        %1031 = vadd.xlane.f32.xlu0 %v1030
        %v1032 = vpop.xlane.xlu0 %1031
        %v1033 = vrcp.pop %v1029
        %v1034 = vrcp.pop %v1032
        %v1035 = vmul.f32 %v1024, %v1033
        %v1036 = vmul.f32 %v1026, %v1034
        %1037 = vrot.lane.b32.xlu0 %v913, 64
        %v1038 = vpop.permute.xlu0 %1037
        %1039 = vrot.lane.b32.xlu0 %v918, 64
        %v1040 = vpop.permute.xlu0 %1039
        %v1044 = vsel %vm701, %v1035, 0
        %v1047 = vsel %vm701, %v1036, 0
        %1049 = vmatprep.subr.mxu0 0.0
        %1050 = vmatpush1.msra.mxu0 %v1038
        %1051 = vmatprep.subr.mxu0 0.0
        %1052 = vmatpush1.msra.mxu0 %v1040
        %1053 = vmatprep.subr.mxu0 0.0
        %1054 = vmatpush1.msra.mxu0 0.0
        %1055 = vmatprep.subr.mxu0 0.0
        %1056 = vmatpush1.msra.mxu0 0.0
        %1057 = vmatprep.subr.mxu0 0.0
        %1058 = vmatpush1.msra.mxu0 0.0
        %1059 = vmatprep.subr.mxu0 0.0
        %1060 = vmatpush1.msra.mxu0 0.0
        %1061 = vmatprep.subr.mxu0 0.0
        %1062 = vmatpush1.msra.mxu0 0.0
        %1063 = vmatprep.subr.mxu0 0.0
        %1064 = vmatpush1.msra.mxu0 0.0
        %1065 = vmatprep.subr.mxu0 0.0
        %1066 = vmatpush1.msra.mxu0 0.0
        %1067 = vmatprep.subr.mxu0 0.0
        %1068 = vmatpush1.msra.mxu0 0.0
        %1069 = vmatprep.subr.mxu0 0.0
        %1070 = vmatpush1.msra.mxu0 0.0
        %1071 = vmatprep.subr.mxu0 0.0
        %1072 = vmatpush1.msra.mxu0 0.0
        %1073 = vmatprep.subr.mxu0 0.0
        %1074 = vmatpush1.msra.mxu0 0.0
        %1075 = vmatprep.subr.mxu0 0.0
        %1076 = vmatpush1.msra.mxu0 0.0
        %1077 = vmatprep.subr.mxu0 0.0
        %1078 = vmatpush1.msra.mxu0 0.0
        %1079 = vmatprep.subr.mxu0 0.0
        %1080 = vmatpush1.msra.mxu0 0.0
        %1081 = vmatprep.subr.mxu0 0.0
        %1082 = vmatpush1.msra.mxu0 0.0
        %1083 = vmatprep.subr.mxu0 0.0
        %1084 = vmatpush1.msra.mxu0 0.0
        %1085 = vmatprep.subr.mxu0 0.0
        %1086 = vmatpush1.msra.mxu0 0.0
        %1087 = vmatprep.subr.mxu0 0.0
        %1088 = vmatpush1.msra.mxu0 0.0
        %1089 = vmatprep.subr.mxu0 0.0
        %1090 = vmatpush1.msra.mxu0 0.0
        %1091 = vmatprep.subr.mxu0 0.0
        %1092 = vmatpush1.msra.mxu0 0.0
        %1093 = vmatprep.subr.mxu0 0.0
        %1094 = vmatpush1.msra.mxu0 0.0
        %1095 = vmatprep.subr.mxu0 0.0
        %1096 = vmatpush1.msra.mxu0 0.0
        %1097 = vmatprep.subr.mxu0 0.0
        %1098 = vmatpush1.msra.mxu0 0.0
        %1099 = vmatprep.subr.mxu0 0.0
        %1100 = vmatpush1.msra.mxu0 0.0
        %1101 = vmatprep.subr.mxu0 0.0
        %1102 = vmatpush1.msra.mxu0 0.0
        %1103 = vmatprep.subr.mxu0 0.0
        %1104 = vmatpush1.msra.mxu0 0.0
        %1105 = vmatprep.subr.mxu0 0.0
        %1106 = vmatpush1.msra.mxu0 0.0
        %1107 = vmatprep.subr.mxu0 0.0
        %1108 = vmatpush1.msra.mxu0 0.0
        %1109 = vmatprep.subr.mxu0 0.0
        %1110 = vmatpush1.msra.mxu0 0.0
        %1111 = vmatprep.subr.mxu0 0.0
        %1112 = vmatpush1.msra.mxu0 0.0
        %1113 = vmatprep.mubr.f32.mxu0 0.0
        %1114 = vmatmul.mubr.f32.gmra.mrb[0].mxu0 %v1044
        %v1115 = vpop.f32.mrb[0].mxu0
        %v1116 = vadd.f32 0.0, %v1115
        %v1117 = vpop.f32.mrb[0].mxu0
        %1118 = vmatprep.mubr.f32.mxu0 0.0
        %1119 = vmatmul.mubr.f32.gmra.mrb[0].mxu0 %v1047
        %v1120 = vpop.f32.mrb[0].mxu0
        %v1121 = vadd.f32 0.0, %v1120
        %v1122 = vpop.f32.mrb[0].mxu0
        %1123 = vdwg.mxu0
        %1124 = vst.msk [vmem:[#allocation2] sm:$0xff] %vm927, %v1116
        %1125 = vst.msk [vmem:[#allocation2 + $0x8] sm:$0xff] %vm927, %v1121
        %1126 = vrot.lane.b32.xlu0 %v913, 120
        %v1127 = vpop.permute.xlu0 %1126
        %1128 = vrot.lane.b32.xlu0 %v918, 120
        %v1129 = vpop.permute.xlu0 %1128
        %1130 = vrot.lane.b32.xlu0 %v913, 88
        %v1131 = vpop.permute.xlu0 %1130
        %1132 = vrot.lane.b32.xlu0 %v918, 88
        %v1133 = vpop.permute.xlu0 %1132
        %v1134 = vsel %vm927, %v1127, 0
        %v1136 = vsel %vm927, %v1129, 0
        %v1138 = vsel %vm927, %v1131, 0
        %v1140 = vsel %vm927, %v1133, 0
        %1142 = vmatprep.subr.mxu0 0.0
        %1143 = vmatpush1.xpose.msra.mxu0 %v1138
        %1144 = vmatprep.subr.mxu0 0.0
        %1145 = vmatpush1.xpose.msra.mxu0 %v1140
        %1146 = vmatprep.subr.mxu0 0.0
        %1147 = vmatpush1.xpose.msra.mxu0 0.0
        %1148 = vmatprep.subr.mxu0 0.0
        %1149 = vmatpush1.xpose.msra.mxu0 0.0
        %1150 = vmatprep.subr.mxu0 0.0
        %1151 = vmatpush1.xpose.msra.mxu0 0.0
        %1152 = vmatprep.subr.mxu0 0.0
        %1153 = vmatpush1.xpose.msra.mxu0 0.0
        %1154 = vmatprep.subr.mxu0 0.0
        %1155 = vmatpush1.xpose.msra.mxu0 0.0
        %1156 = vmatprep.subr.mxu0 0.0
        %1157 = vmatpush1.xpose.msra.mxu0 0.0
        %1158 = vmatprep.subr.mxu0 0.0
        %1159 = vmatpush1.xpose.msra.mxu0 0.0
        %1160 = vmatprep.subr.mxu0 0.0
        %1161 = vmatpush1.xpose.msra.mxu0 0.0
        %1162 = vmatprep.subr.mxu0 0.0
        %1163 = vmatpush1.xpose.msra.mxu0 0.0
        %1164 = vmatprep.subr.mxu0 0.0
        %1165 = vmatpush1.xpose.msra.mxu0 0.0
        %1166 = vmatprep.subr.mxu0 0.0
        %1167 = vmatpush1.xpose.msra.mxu0 0.0
        %1168 = vmatprep.subr.mxu0 0.0
        %1169 = vmatpush1.xpose.msra.mxu0 0.0
        %1170 = vmatprep.subr.mxu0 0.0
        %1171 = vmatpush1.xpose.msra.mxu0 0.0
        %1172 = vmatprep.subr.mxu0 0.0
        %1173 = vmatpush1.xpose.msra.mxu0 0.0
        %1174 = vmatprep.subr.mxu0 0.0
        %1175 = vmatpush1.xpose.msra.mxu0 0.0
        %1176 = vmatprep.subr.mxu0 0.0
        %1177 = vmatpush1.xpose.msra.mxu0 0.0
        %1178 = vmatprep.subr.mxu0 0.0
        %1179 = vmatpush1.xpose.msra.mxu0 0.0
        %1180 = vmatprep.subr.mxu0 0.0
        %1181 = vmatpush1.xpose.msra.mxu0 0.0
        %1182 = vmatprep.subr.mxu0 0.0
        %1183 = vmatpush1.xpose.msra.mxu0 0.0
        %1184 = vmatprep.subr.mxu0 0.0
        %1185 = vmatpush1.xpose.msra.mxu0 0.0
        %1186 = vmatprep.subr.mxu0 0.0
        %1187 = vmatpush1.xpose.msra.mxu0 0.0
        %1188 = vmatprep.subr.mxu0 0.0
        %1189 = vmatpush1.xpose.msra.mxu0 0.0
        %1190 = vmatprep.subr.mxu0 0.0
        %1191 = vmatpush1.xpose.msra.mxu0 0.0
        %1192 = vmatprep.subr.mxu0 0.0
        %1193 = vmatpush1.xpose.msra.mxu0 0.0
        %1194 = vmatprep.subr.mxu0 0.0
        %1195 = vmatpush1.xpose.msra.mxu0 0.0
        %1196 = vmatprep.subr.mxu0 0.0
        %1197 = vmatpush1.xpose.msra.mxu0 0.0
        %1198 = vmatprep.subr.mxu0 0.0
        %1199 = vmatpush1.xpose.msra.mxu0 0.0
        %1200 = vmatprep.subr.mxu0 0.0
        %1201 = vmatpush1.xpose.msra.mxu0 0.0
        %1202 = vmatprep.subr.mxu0 0.0
        %1203 = vmatpush1.xpose.msra.mxu0 0.0
        %1204 = vmatprep.subr.mxu0 0.0
        %1205 = vmatpush1.xpose.msra.mxu0 0.0
        %1206 = vmatprep.mubr.f32.mxu0 0.0
        %1207 = vmatmul.mubr.f32.gmra.mrb[0].mxu0 %v1134
        %v1208 = vpop.f32.mrb[0].mxu0
        %v1209 = vadd.f32 0.0, %v1208
        %v1210 = vpop.f32.mrb[0].mxu0
        %1211 = vmatprep.mubr.f32.mxu0 0.0
        %1212 = vmatmul.mubr.f32.gmra.mrb[0].mxu0 %v1136
        %v1213 = vpop.f32.mrb[0].mxu0
        %v1214 = vadd.f32 0.0, %v1213
        %v1215 = vpop.f32.mrb[0].mxu0
        %1216 = vdwg.mxu0
        %v1217 = vmul.f32 %v1209, 0.35355338
        %v1218 = vmul.f32 %v1214, 0.35355338
        %v1219 = vadd.f32 %v1217, %v695
        %v1220 = vadd.f32 %v1218, %v695
        %v1221 = vsel %vm701, %v1219, -inf
        %1222 = vmax.xlane.f32.xlu0 %v1221
        %v1223 = vpop.xlane.xlu0 %1222
        %v1224 = vsel %vm701, %v1220, -inf
        %1225 = vmax.xlane.f32.xlu0 %v1224
        %v1226 = vpop.xlane.xlu0 %1225
        %v1227 = vsub.f32 %v1219, %v1223
        %v1228 = vsub.f32 %v1220, %v1226
        %v1229 = vmul.f32 %v1227, 1.442695
        %v1230 = vpow.pop %v1229
        %v1231 = vmul.f32 %v1228, 1.442695
        %v1232 = vpow.pop %v1231
        %v1233 = vsel %vm701, %v1230, 0.0
        %1234 = vadd.xlane.f32.xlu0 %v1233
        %v1235 = vpop.xlane.xlu0 %1234
        %v1236 = vsel %vm701, %v1232, 0.0
        %1237 = vadd.xlane.f32.xlu0 %v1236
        %v1238 = vpop.xlane.xlu0 %1237
        %v1239 = vrcp.pop %v1235
        %v1240 = vrcp.pop %v1238
        %v1241 = vmul.f32 %v1230, %v1239
        %v1242 = vmul.f32 %v1232, %v1240
        %1243 = vrot.lane.b32.xlu0 %v913, 56
        %v1244 = vpop.permute.xlu0 %1243
        %1245 = vrot.lane.b32.xlu0 %v918, 56
        %v1246 = vpop.permute.xlu0 %1245
        %v1250 = vsel %vm701, %v1241, 0
        %v1253 = vsel %vm701, %v1242, 0
        %1255 = vmatprep.subr.mxu0 0.0
        %1256 = vmatpush1.msra.mxu0 %v1244
        %1257 = vmatprep.subr.mxu0 0.0
        %1258 = vmatpush1.msra.mxu0 %v1246
        %1259 = vmatprep.subr.mxu0 0.0
        %1260 = vmatpush1.msra.mxu0 0.0
        %1261 = vmatprep.subr.mxu0 0.0
        %1262 = vmatpush1.msra.mxu0 0.0
        %1263 = vmatprep.subr.mxu0 0.0
        %1264 = vmatpush1.msra.mxu0 0.0
        %1265 = vmatprep.subr.mxu0 0.0
        %1266 = vmatpush1.msra.mxu0 0.0
        %1267 = vmatprep.subr.mxu0 0.0
        %1268 = vmatpush1.msra.mxu0 0.0
        %1269 = vmatprep.subr.mxu0 0.0
        %1270 = vmatpush1.msra.mxu0 0.0
        %1271 = vmatprep.subr.mxu0 0.0
        %1272 = vmatpush1.msra.mxu0 0.0
        %1273 = vmatprep.subr.mxu0 0.0
        %1274 = vmatpush1.msra.mxu0 0.0
        %1275 = vmatprep.subr.mxu0 0.0
        %1276 = vmatpush1.msra.mxu0 0.0
        %1277 = vmatprep.subr.mxu0 0.0
        %1278 = vmatpush1.msra.mxu0 0.0
        %1279 = vmatprep.subr.mxu0 0.0
        %1280 = vmatpush1.msra.mxu0 0.0
        %1281 = vmatprep.subr.mxu0 0.0
        %1282 = vmatpush1.msra.mxu0 0.0
        %1283 = vmatprep.subr.mxu0 0.0
        %1284 = vmatpush1.msra.mxu0 0.0
        %1285 = vmatprep.subr.mxu0 0.0
        %1286 = vmatpush1.msra.mxu0 0.0
        %1287 = vmatprep.subr.mxu0 0.0
        %1288 = vmatpush1.msra.mxu0 0.0
        %1289 = vmatprep.subr.mxu0 0.0
        %1290 = vmatpush1.msra.mxu0 0.0
        %1291 = vmatprep.subr.mxu0 0.0
        %1292 = vmatpush1.msra.mxu0 0.0
        %1293 = vmatprep.subr.mxu0 0.0
        %1294 = vmatpush1.msra.mxu0 0.0
        %1295 = vmatprep.subr.mxu0 0.0
        %1296 = vmatpush1.msra.mxu0 0.0
        %1297 = vmatprep.subr.mxu0 0.0
        %1298 = vmatpush1.msra.mxu0 0.0
        %1299 = vmatprep.subr.mxu0 0.0
        %1300 = vmatpush1.msra.mxu0 0.0
        %1301 = vmatprep.subr.mxu0 0.0
        %1302 = vmatpush1.msra.mxu0 0.0
        %1303 = vmatprep.subr.mxu0 0.0
        %1304 = vmatpush1.msra.mxu0 0.0
        %1305 = vmatprep.subr.mxu0 0.0
        %1306 = vmatpush1.msra.mxu0 0.0
        %1307 = vmatprep.subr.mxu0 0.0
        %1308 = vmatpush1.msra.mxu0 0.0
        %1309 = vmatprep.subr.mxu0 0.0
        %1310 = vmatpush1.msra.mxu0 0.0
        %1311 = vmatprep.subr.mxu0 0.0
        %1312 = vmatpush1.msra.mxu0 0.0
        %1313 = vmatprep.subr.mxu0 0.0
        %1314 = vmatpush1.msra.mxu0 0.0
        %1315 = vmatprep.subr.mxu0 0.0
        %1316 = vmatpush1.msra.mxu0 0.0
        %1317 = vmatprep.subr.mxu0 0.0
        %1318 = vmatpush1.msra.mxu0 0.0
        %1319 = vmatprep.mubr.f32.mxu0 0.0
        %1320 = vmatmul.mubr.f32.gmra.mrb[0].mxu0 %v1250
        %v1321 = vpop.f32.mrb[0].mxu0
        %v1322 = vadd.f32 0.0, %v1321
        %v1323 = vpop.f32.mrb[0].mxu0
        %1324 = vmatprep.mubr.f32.mxu0 0.0
        %1325 = vmatmul.mubr.f32.gmra.mrb[0].mxu0 %v1253
        %v1326 = vpop.f32.mrb[0].mxu0
        %v1327 = vadd.f32 0.0, %v1326
        %v1328 = vpop.f32.mrb[0].mxu0
        %1329 = vdwg.mxu0
        %1332 = vrot.lane.b32.xlu0 %v1322, 8
        %v1333 = vpop.permute.xlu0 %1332
        %1334 = vrot.lane.b32.xlu0 %v1327, 8
        %v1335 = vpop.permute.xlu0 %1334
        %vm1338 = vcmask 130112
        %1339 = vst.msk [vmem:[#allocation2] sm:$0xff] %vm1338, %v1333
        %1340 = vst.msk [vmem:[#allocation2 + $0x8] sm:$0xff] %vm1338, %v1335
        %1341 = vrot.lane.b32.xlu0 %v913, 112
        %v1342 = vpop.permute.xlu0 %1341
        %1343 = vrot.lane.b32.xlu0 %v918, 112
        %v1344 = vpop.permute.xlu0 %1343
        %1345 = vrot.lane.b32.xlu0 %v913, 80
        %v1346 = vpop.permute.xlu0 %1345
        %1347 = vrot.lane.b32.xlu0 %v918, 80
        %v1348 = vpop.permute.xlu0 %1347
        %v1349 = vsel %vm927, %v1342, 0
        %v1351 = vsel %vm927, %v1344, 0
        %v1353 = vsel %vm927, %v1346, 0
        %v1355 = vsel %vm927, %v1348, 0
        %1357 = vmatprep.subr.mxu0 0.0
        %1358 = vmatpush1.xpose.msra.mxu0 %v1353
        %1359 = vmatprep.subr.mxu0 0.0
        %1360 = vmatpush1.xpose.msra.mxu0 %v1355
        %1361 = vmatprep.subr.mxu0 0.0
        %1362 = vmatpush1.xpose.msra.mxu0 0.0
        %1363 = vmatprep.subr.mxu0 0.0
        %1364 = vmatpush1.xpose.msra.mxu0 0.0
        %1365 = vmatprep.subr.mxu0 0.0
        %1366 = vmatpush1.xpose.msra.mxu0 0.0
        %1367 = vmatprep.subr.mxu0 0.0
        %1368 = vmatpush1.xpose.msra.mxu0 0.0
        %1369 = vmatprep.subr.mxu0 0.0
        %1370 = vmatpush1.xpose.msra.mxu0 0.0
        %1371 = vmatprep.subr.mxu0 0.0
        %1372 = vmatpush1.xpose.msra.mxu0 0.0
        %1373 = vmatprep.subr.mxu0 0.0
        %1374 = vmatpush1.xpose.msra.mxu0 0.0
        %1375 = vmatprep.subr.mxu0 0.0
        %1376 = vmatpush1.xpose.msra.mxu0 0.0
        %1377 = vmatprep.subr.mxu0 0.0
        %1378 = vmatpush1.xpose.msra.mxu0 0.0
        %1379 = vmatprep.subr.mxu0 0.0
        %1380 = vmatpush1.xpose.msra.mxu0 0.0
        %1381 = vmatprep.subr.mxu0 0.0
        %1382 = vmatpush1.xpose.msra.mxu0 0.0
        %1383 = vmatprep.subr.mxu0 0.0
        %1384 = vmatpush1.xpose.msra.mxu0 0.0
        %1385 = vmatprep.subr.mxu0 0.0
        %1386 = vmatpush1.xpose.msra.mxu0 0.0
        %1387 = vmatprep.subr.mxu0 0.0
        %1388 = vmatpush1.xpose.msra.mxu0 0.0
        %1389 = vmatprep.subr.mxu0 0.0
        %1390 = vmatpush1.xpose.msra.mxu0 0.0
        %1391 = vmatprep.subr.mxu0 0.0
        %1392 = vmatpush1.xpose.msra.mxu0 0.0
        %1393 = vmatprep.subr.mxu0 0.0
        %1394 = vmatpush1.xpose.msra.mxu0 0.0
        %1395 = vmatprep.subr.mxu0 0.0
        %1396 = vmatpush1.xpose.msra.mxu0 0.0
        %1397 = vmatprep.subr.mxu0 0.0
        %1398 = vmatpush1.xpose.msra.mxu0 0.0
        %1399 = vmatprep.subr.mxu0 0.0
        %1400 = vmatpush1.xpose.msra.mxu0 0.0
        %1401 = vmatprep.subr.mxu0 0.0
        %1402 = vmatpush1.xpose.msra.mxu0 0.0
        %1403 = vmatprep.subr.mxu0 0.0
        %1404 = vmatpush1.xpose.msra.mxu0 0.0
        %1405 = vmatprep.subr.mxu0 0.0
        %1406 = vmatpush1.xpose.msra.mxu0 0.0
        %1407 = vmatprep.subr.mxu0 0.0
        %1408 = vmatpush1.xpose.msra.mxu0 0.0
        %1409 = vmatprep.subr.mxu0 0.0
        %1410 = vmatpush1.xpose.msra.mxu0 0.0
        %1411 = vmatprep.subr.mxu0 0.0
        %1412 = vmatpush1.xpose.msra.mxu0 0.0
        %1413 = vmatprep.subr.mxu0 0.0
        %1414 = vmatpush1.xpose.msra.mxu0 0.0
        %1415 = vmatprep.subr.mxu0 0.0
        %1416 = vmatpush1.xpose.msra.mxu0 0.0
        %1417 = vmatprep.subr.mxu0 0.0
        %1418 = vmatpush1.xpose.msra.mxu0 0.0
        %1419 = vmatprep.subr.mxu0 0.0
        %1420 = vmatpush1.xpose.msra.mxu0 0.0
        %1421 = vmatprep.mubr.f32.mxu0 0.0
        %1422 = vmatmul.mubr.f32.gmra.mrb[0].mxu0 %v1349
        %v1423 = vpop.f32.mrb[0].mxu0
        %v1424 = vadd.f32 0.0, %v1423
        %v1425 = vpop.f32.mrb[0].mxu0
        %1426 = vmatprep.mubr.f32.mxu0 0.0
        %1427 = vmatmul.mubr.f32.gmra.mrb[0].mxu0 %v1351
        %v1428 = vpop.f32.mrb[0].mxu0
        %v1429 = vadd.f32 0.0, %v1428
        %v1430 = vpop.f32.mrb[0].mxu0
        %1431 = vdwg.mxu0
        %v1432 = vmul.f32 %v1424, 0.35355338
        %v1433 = vmul.f32 %v1429, 0.35355338
        %v1434 = vadd.f32 %v1432, %v695
        %v1435 = vadd.f32 %v1433, %v695
        %v1436 = vsel %vm701, %v1434, -inf
        %1437 = vmax.xlane.f32.xlu0 %v1436
        %v1438 = vpop.xlane.xlu0 %1437
        %v1439 = vsel %vm701, %v1435, -inf
        %1440 = vmax.xlane.f32.xlu0 %v1439
        %v1441 = vpop.xlane.xlu0 %1440
        %v1442 = vsub.f32 %v1434, %v1438
        %v1443 = vsub.f32 %v1435, %v1441
        %v1444 = vmul.f32 %v1442, 1.442695
        %v1445 = vpow.pop %v1444
        %v1446 = vmul.f32 %v1443, 1.442695
        %v1447 = vpow.pop %v1446
        %v1448 = vsel %vm701, %v1445, 0.0
        %1449 = vadd.xlane.f32.xlu0 %v1448
        %v1450 = vpop.xlane.xlu0 %1449
        %v1451 = vsel %vm701, %v1447, 0.0
        %1452 = vadd.xlane.f32.xlu0 %v1451
        %v1453 = vpop.xlane.xlu0 %1452
        %v1454 = vrcp.pop %v1450
        %v1455 = vrcp.pop %v1453
        %v1456 = vmul.f32 %v1445, %v1454
        %v1457 = vmul.f32 %v1447, %v1455
        %1458 = vrot.lane.b32.xlu0 %v913, 48
        %v1459 = vpop.permute.xlu0 %1458
        %1460 = vrot.lane.b32.xlu0 %v918, 48
        %v1461 = vpop.permute.xlu0 %1460
        %v1465 = vsel %vm701, %v1456, 0
        %v1468 = vsel %vm701, %v1457, 0
        %1470 = vmatprep.subr.mxu0 0.0
        %1471 = vmatpush1.msra.mxu0 %v1459
        %1472 = vmatprep.subr.mxu0 0.0
        %1473 = vmatpush1.msra.mxu0 %v1461
        %1474 = vmatprep.subr.mxu0 0.0
        %1475 = vmatpush1.msra.mxu0 0.0
        %1476 = vmatprep.subr.mxu0 0.0
        %1477 = vmatpush1.msra.mxu0 0.0
        %1478 = vmatprep.subr.mxu0 0.0
        %1479 = vmatpush1.msra.mxu0 0.0
        %1480 = vmatprep.subr.mxu0 0.0
        %1481 = vmatpush1.msra.mxu0 0.0
        %1482 = vmatprep.subr.mxu0 0.0
        %1483 = vmatpush1.msra.mxu0 0.0
        %1484 = vmatprep.subr.mxu0 0.0
        %1485 = vmatpush1.msra.mxu0 0.0
        %1486 = vmatprep.subr.mxu0 0.0
        %1487 = vmatpush1.msra.mxu0 0.0
        %1488 = vmatprep.subr.mxu0 0.0
        %1489 = vmatpush1.msra.mxu0 0.0
        %1490 = vmatprep.subr.mxu0 0.0
        %1491 = vmatpush1.msra.mxu0 0.0
        %1492 = vmatprep.subr.mxu0 0.0
        %1493 = vmatpush1.msra.mxu0 0.0
        %1494 = vmatprep.subr.mxu0 0.0
        %1495 = vmatpush1.msra.mxu0 0.0
        %1496 = vmatprep.subr.mxu0 0.0
        %1497 = vmatpush1.msra.mxu0 0.0
        %1498 = vmatprep.subr.mxu0 0.0
        %1499 = vmatpush1.msra.mxu0 0.0
        %1500 = vmatprep.subr.mxu0 0.0
        %1501 = vmatpush1.msra.mxu0 0.0
        %1502 = vmatprep.subr.mxu0 0.0
        %1503 = vmatpush1.msra.mxu0 0.0
        %1504 = vmatprep.subr.mxu0 0.0
        %1505 = vmatpush1.msra.mxu0 0.0
        %1506 = vmatprep.subr.mxu0 0.0
        %1507 = vmatpush1.msra.mxu0 0.0
        %1508 = vmatprep.subr.mxu0 0.0
        %1509 = vmatpush1.msra.mxu0 0.0
        %1510 = vmatprep.subr.mxu0 0.0
        %1511 = vmatpush1.msra.mxu0 0.0
        %1512 = vmatprep.subr.mxu0 0.0
        %1513 = vmatpush1.msra.mxu0 0.0
        %1514 = vmatprep.subr.mxu0 0.0
        %1515 = vmatpush1.msra.mxu0 0.0
        %1516 = vmatprep.subr.mxu0 0.0
        %1517 = vmatpush1.msra.mxu0 0.0
        %1518 = vmatprep.subr.mxu0 0.0
        %1519 = vmatpush1.msra.mxu0 0.0
        %1520 = vmatprep.subr.mxu0 0.0
        %1521 = vmatpush1.msra.mxu0 0.0
        %1522 = vmatprep.subr.mxu0 0.0
        %1523 = vmatpush1.msra.mxu0 0.0
        %1524 = vmatprep.subr.mxu0 0.0
        %1525 = vmatpush1.msra.mxu0 0.0
        %1526 = vmatprep.subr.mxu0 0.0
        %1527 = vmatpush1.msra.mxu0 0.0
        %1528 = vmatprep.subr.mxu0 0.0
        %1529 = vmatpush1.msra.mxu0 0.0
        %1530 = vmatprep.subr.mxu0 0.0
        %1531 = vmatpush1.msra.mxu0 0.0
        %1532 = vmatprep.subr.mxu0 0.0
        %1533 = vmatpush1.msra.mxu0 0.0
        %1534 = vmatprep.mubr.f32.mxu0 0.0
        %1535 = vmatmul.mubr.f32.gmra.mrb[0].mxu0 %v1465
        %v1536 = vpop.f32.mrb[0].mxu0
        %v1537 = vadd.f32 0.0, %v1536
        %v1538 = vpop.f32.mrb[0].mxu0
        %1539 = vmatprep.mubr.f32.mxu0 0.0
        %1540 = vmatmul.mubr.f32.gmra.mrb[0].mxu0 %v1468
        %v1541 = vpop.f32.mrb[0].mxu0
        %v1542 = vadd.f32 0.0, %v1541
        %v1543 = vpop.f32.mrb[0].mxu0
        %1544 = vdwg.mxu0
        %1547 = vrot.lane.b32.xlu0 %v1537, 16
        %v1548 = vpop.permute.xlu0 %1547
        %1549 = vrot.lane.b32.xlu0 %v1542, 16
        %v1550 = vpop.permute.xlu0 %1549
        %vm1553 = vcmask 195712
        %1554 = vst.msk [vmem:[#allocation2] sm:$0xff] %vm1553, %v1548
        %1555 = vst.msk [vmem:[#allocation2 + $0x8] sm:$0xff] %vm1553, %v1550
        %1556 = vrot.lane.b32.xlu0 %v913, 104
        %v1557 = vpop.permute.xlu0 %1556
        %1558 = vrot.lane.b32.xlu0 %v918, 104
        %v1559 = vpop.permute.xlu0 %1558
        %1560 = vrot.lane.b32.xlu0 %v913, 72
        %v1561 = vpop.permute.xlu0 %1560
        %1562 = vrot.lane.b32.xlu0 %v918, 72
        %v1563 = vpop.permute.xlu0 %1562
        %v1564 = vsel %vm927, %v1557, 0
        %v1566 = vsel %vm927, %v1559, 0
        %v1568 = vsel %vm927, %v1561, 0
        %v1570 = vsel %vm927, %v1563, 0
        %1572 = vmatprep.subr.mxu0 0.0
        %1573 = vmatpush1.xpose.msra.mxu0 %v1568
        %1574 = vmatprep.subr.mxu0 0.0
        %1575 = vmatpush1.xpose.msra.mxu0 %v1570
        %1576 = vmatprep.subr.mxu0 0.0
        %1577 = vmatpush1.xpose.msra.mxu0 0.0
        %1578 = vmatprep.subr.mxu0 0.0
        %1579 = vmatpush1.xpose.msra.mxu0 0.0
        %1580 = vmatprep.subr.mxu0 0.0
        %1581 = vmatpush1.xpose.msra.mxu0 0.0
        %1582 = vmatprep.subr.mxu0 0.0
        %1583 = vmatpush1.xpose.msra.mxu0 0.0
        %1584 = vmatprep.subr.mxu0 0.0
        %1585 = vmatpush1.xpose.msra.mxu0 0.0
        %1586 = vmatprep.subr.mxu0 0.0
        %1587 = vmatpush1.xpose.msra.mxu0 0.0
        %1588 = vmatprep.subr.mxu0 0.0
        %1589 = vmatpush1.xpose.msra.mxu0 0.0
        %1590 = vmatprep.subr.mxu0 0.0
        %1591 = vmatpush1.xpose.msra.mxu0 0.0
        %1592 = vmatprep.subr.mxu0 0.0
        %1593 = vmatpush1.xpose.msra.mxu0 0.0
        %1594 = vmatprep.subr.mxu0 0.0
        %1595 = vmatpush1.xpose.msra.mxu0 0.0
        %1596 = vmatprep.subr.mxu0 0.0
        %1597 = vmatpush1.xpose.msra.mxu0 0.0
        %1598 = vmatprep.subr.mxu0 0.0
        %1599 = vmatpush1.xpose.msra.mxu0 0.0
        %1600 = vmatprep.subr.mxu0 0.0
        %1601 = vmatpush1.xpose.msra.mxu0 0.0
        %1602 = vmatprep.subr.mxu0 0.0
        %1603 = vmatpush1.xpose.msra.mxu0 0.0
        %1604 = vmatprep.subr.mxu0 0.0
        %1605 = vmatpush1.xpose.msra.mxu0 0.0
        %1606 = vmatprep.subr.mxu0 0.0
        %1607 = vmatpush1.xpose.msra.mxu0 0.0
        %1608 = vmatprep.subr.mxu0 0.0
        %1609 = vmatpush1.xpose.msra.mxu0 0.0
        %1610 = vmatprep.subr.mxu0 0.0
        %1611 = vmatpush1.xpose.msra.mxu0 0.0
        %1612 = vmatprep.subr.mxu0 0.0
        %1613 = vmatpush1.xpose.msra.mxu0 0.0
        %1614 = vmatprep.subr.mxu0 0.0
        %1615 = vmatpush1.xpose.msra.mxu0 0.0
        %1616 = vmatprep.subr.mxu0 0.0
        %1617 = vmatpush1.xpose.msra.mxu0 0.0
        %1618 = vmatprep.subr.mxu0 0.0
        %1619 = vmatpush1.xpose.msra.mxu0 0.0
        %1620 = vmatprep.subr.mxu0 0.0
        %1621 = vmatpush1.xpose.msra.mxu0 0.0
        %1622 = vmatprep.subr.mxu0 0.0
        %1623 = vmatpush1.xpose.msra.mxu0 0.0
        %1624 = vmatprep.subr.mxu0 0.0
        %1625 = vmatpush1.xpose.msra.mxu0 0.0
        %1626 = vmatprep.subr.mxu0 0.0
        %1627 = vmatpush1.xpose.msra.mxu0 0.0
        %1628 = vmatprep.subr.mxu0 0.0
        %1629 = vmatpush1.xpose.msra.mxu0 0.0
        %1630 = vmatprep.subr.mxu0 0.0
        %1631 = vmatpush1.xpose.msra.mxu0 0.0
        %1632 = vmatprep.subr.mxu0 0.0
        %1633 = vmatpush1.xpose.msra.mxu0 0.0
        %1634 = vmatprep.subr.mxu0 0.0
        %1635 = vmatpush1.xpose.msra.mxu0 0.0
        %1636 = vmatprep.mubr.f32.mxu0 0.0
        %1637 = vmatmul.mubr.f32.gmra.mrb[0].mxu0 %v1564
        %v1638 = vpop.f32.mrb[0].mxu0
        %v1639 = vadd.f32 0.0, %v1638
        %v1640 = vpop.f32.mrb[0].mxu0
        %1641 = vmatprep.mubr.f32.mxu0 0.0
        %1642 = vmatmul.mubr.f32.gmra.mrb[0].mxu0 %v1566
        %v1643 = vpop.f32.mrb[0].mxu0
        %v1644 = vadd.f32 0.0, %v1643
        %v1645 = vpop.f32.mrb[0].mxu0
        %1646 = vdwg.mxu0
        %v1647 = vmul.f32 %v1639, 0.35355338
        %v1648 = vmul.f32 %v1644, 0.35355338
        %v1649 = vadd.f32 %v1647, %v695
        %v1650 = vadd.f32 %v1648, %v695
        %v1651 = vsel %vm701, %v1649, -inf
        %1652 = vmax.xlane.f32.xlu0 %v1651
        %v1653 = vpop.xlane.xlu0 %1652
        %v1654 = vsel %vm701, %v1650, -inf
        %1655 = vmax.xlane.f32.xlu0 %v1654
        %v1656 = vpop.xlane.xlu0 %1655
        %v1657 = vsub.f32 %v1649, %v1653
        %v1658 = vsub.f32 %v1650, %v1656
        %v1659 = vmul.f32 %v1657, 1.442695
        %v1660 = vpow.pop %v1659
        %v1661 = vmul.f32 %v1658, 1.442695
        %v1662 = vpow.pop %v1661
        %v1663 = vsel %vm701, %v1660, 0.0
        %1664 = vadd.xlane.f32.xlu0 %v1663
        %v1665 = vpop.xlane.xlu0 %1664
        %v1666 = vsel %vm701, %v1662, 0.0
        %1667 = vadd.xlane.f32.xlu0 %v1666
        %v1668 = vpop.xlane.xlu0 %1667
        %v1669 = vrcp.pop %v1665
        %v1670 = vrcp.pop %v1668
        %v1671 = vmul.f32 %v1660, %v1669
        %v1672 = vmul.f32 %v1662, %v1670
        %1673 = vrot.lane.b32.xlu0 %v913, 40
        %v1674 = vpop.permute.xlu0 %1673
        %1675 = vrot.lane.b32.xlu0 %v918, 40
        %v1676 = vpop.permute.xlu0 %1675
        %v1680 = vsel %vm701, %v1671, 0
        %v1683 = vsel %vm701, %v1672, 0
        %1685 = vmatprep.subr.mxu0 0.0
        %1686 = vmatpush1.msra.mxu0 %v1674
        %1687 = vmatprep.subr.mxu0 0.0
        %1688 = vmatpush1.msra.mxu0 %v1676
        %1689 = vmatprep.subr.mxu0 0.0
        %1690 = vmatpush1.msra.mxu0 0.0
        %1691 = vmatprep.subr.mxu0 0.0
        %1692 = vmatpush1.msra.mxu0 0.0
        %1693 = vmatprep.subr.mxu0 0.0
        %1694 = vmatpush1.msra.mxu0 0.0
        %1695 = vmatprep.subr.mxu0 0.0
        %1696 = vmatpush1.msra.mxu0 0.0
        %1697 = vmatprep.subr.mxu0 0.0
        %1698 = vmatpush1.msra.mxu0 0.0
        %1699 = vmatprep.subr.mxu0 0.0
        %1700 = vmatpush1.msra.mxu0 0.0
        %1701 = vmatprep.subr.mxu0 0.0
        %1702 = vmatpush1.msra.mxu0 0.0
        %1703 = vmatprep.subr.mxu0 0.0
        %1704 = vmatpush1.msra.mxu0 0.0
        %1705 = vmatprep.subr.mxu0 0.0
        %1706 = vmatpush1.msra.mxu0 0.0
        %1707 = vmatprep.subr.mxu0 0.0
        %1708 = vmatpush1.msra.mxu0 0.0
        %1709 = vmatprep.subr.mxu0 0.0
        %1710 = vmatpush1.msra.mxu0 0.0
        %1711 = vmatprep.subr.mxu0 0.0
        %1712 = vmatpush1.msra.mxu0 0.0
        %1713 = vmatprep.subr.mxu0 0.0
        %1714 = vmatpush1.msra.mxu0 0.0
        %1715 = vmatprep.subr.mxu0 0.0
        %1716 = vmatpush1.msra.mxu0 0.0
        %1717 = vmatprep.subr.mxu0 0.0
        %1718 = vmatpush1.msra.mxu0 0.0
        %1719 = vmatprep.subr.mxu0 0.0
        %1720 = vmatpush1.msra.mxu0 0.0
        %1721 = vmatprep.subr.mxu0 0.0
        %1722 = vmatpush1.msra.mxu0 0.0
        %1723 = vmatprep.subr.mxu0 0.0
        %1724 = vmatpush1.msra.mxu0 0.0
        %1725 = vmatprep.subr.mxu0 0.0
        %1726 = vmatpush1.msra.mxu0 0.0
        %1727 = vmatprep.subr.mxu0 0.0
        %1728 = vmatpush1.msra.mxu0 0.0
        %1729 = vmatprep.subr.mxu0 0.0
        %1730 = vmatpush1.msra.mxu0 0.0
        %1731 = vmatprep.subr.mxu0 0.0
        %1732 = vmatpush1.msra.mxu0 0.0
        %1733 = vmatprep.subr.mxu0 0.0
        %1734 = vmatpush1.msra.mxu0 0.0
        %1735 = vmatprep.subr.mxu0 0.0
        %1736 = vmatpush1.msra.mxu0 0.0
        %1737 = vmatprep.subr.mxu0 0.0
        %1738 = vmatpush1.msra.mxu0 0.0
        %1739 = vmatprep.subr.mxu0 0.0
        %1740 = vmatpush1.msra.mxu0 0.0
        %1741 = vmatprep.subr.mxu0 0.0
        %1742 = vmatpush1.msra.mxu0 0.0
        %1743 = vmatprep.subr.mxu0 0.0
        %1744 = vmatpush1.msra.mxu0 0.0
        %1745 = vmatprep.subr.mxu0 0.0
        %1746 = vmatpush1.msra.mxu0 0.0
        %1747 = vmatprep.subr.mxu0 0.0
        %1748 = vmatpush1.msra.mxu0 0.0
        %1749 = vmatprep.mubr.f32.mxu0 0.0
        %1750 = vmatmul.mubr.f32.gmra.mrb[0].mxu0 %v1680
        %v1751 = vpop.f32.mrb[0].mxu0
        %v1752 = vadd.f32 0.0, %v1751
        %v1753 = vpop.f32.mrb[0].mxu0
        %1754 = vmatprep.mubr.f32.mxu0 0.0
        %1755 = vmatmul.mubr.f32.gmra.mrb[0].mxu0 %v1683
        %v1756 = vpop.f32.mrb[0].mxu0
        %v1757 = vadd.f32 0.0, %v1756
        %v1758 = vpop.f32.mrb[0].mxu0
        %1759 = vdwg.mxu0
        %1762 = vrot.lane.b32.xlu0 %v1752, 24
        %v1763 = vpop.permute.xlu0 %1762
        %1764 = vrot.lane.b32.xlu0 %v1757, 24
        %v1765 = vpop.permute.xlu0 %1764
        %vm1768 = vcmask 261312
        %1769 = vst.msk [vmem:[#allocation2] sm:$0xff] %vm1768, %v1763
        %1770 = vst.msk [vmem:[#allocation2 + $0x8] sm:$0xff] %vm1768, %v1765
        %v1771 = vld [vmem:[#allocation2] sm:$0xff]
        %v1772 = vld [vmem:[#allocation2 + $0x8] sm:$0xff]
        %v1773 = vld [vmem:[%s8] sm:$0xff]
        %v1774 = vld [vmem:[%s8 + $0x8] sm:$0xff]
        %v1775 = vld [vmem:[%s8 + $0x10] sm:$0xff]
        %v1776 = vld [vmem:[%s8 + $0x18] sm:$0xff]
        %v1777 = vld [vmem:[%s9] sm:$0x1]
        %v1779 = vlaneseq
        %v1780 = vshrl.u32 %v1779, 7
        %v1781 = vsub.s32 0, %v1780
        %v1782 = vrot.slane %v1777, %v1781
        %v1785 = vsel %vm785, %v1771, 0
        %v1788 = vsel %vm785, %v1772, 0
        %1790 = vmatprep.subr.mxu0 0.0
        %1791 = vmatpush1.msra.mxu0 %v1773
        %1792 = vmatprep.subr.mxu0 0.0
        %1793 = vmatpush1.msra.mxu0 %v1774
        %1794 = vmatprep.subr.mxu0 0.0
        %1795 = vmatpush1.msra.mxu0 %v1775
        %1796 = vmatprep.subr.mxu0 0.0
        %1797 = vmatpush1.msra.mxu0 %v1776
        %1798 = vmatprep.subr.mxu0 0.0
        %1799 = vmatpush1.msra.mxu0 0.0
        %1800 = vmatprep.subr.mxu0 0.0
        %1801 = vmatpush1.msra.mxu0 0.0
        %1802 = vmatprep.subr.mxu0 0.0
        %1803 = vmatpush1.msra.mxu0 0.0
        %1804 = vmatprep.subr.mxu0 0.0
        %1805 = vmatpush1.msra.mxu0 0.0
        %1806 = vmatprep.subr.mxu0 0.0
        %1807 = vmatpush1.msra.mxu0 0.0
        %1808 = vmatprep.subr.mxu0 0.0
        %1809 = vmatpush1.msra.mxu0 0.0
        %1810 = vmatprep.subr.mxu0 0.0
        %1811 = vmatpush1.msra.mxu0 0.0
        %1812 = vmatprep.subr.mxu0 0.0
        %1813 = vmatpush1.msra.mxu0 0.0
        %1814 = vmatprep.subr.mxu0 0.0
        %1815 = vmatpush1.msra.mxu0 0.0
        %1816 = vmatprep.subr.mxu0 0.0
        %1817 = vmatpush1.msra.mxu0 0.0
        %1818 = vmatprep.subr.mxu0 0.0
        %1819 = vmatpush1.msra.mxu0 0.0
        %1820 = vmatprep.subr.mxu0 0.0
        %1821 = vmatpush1.msra.mxu0 0.0
        %1822 = vmatprep.subr.mxu0 0.0
        %1823 = vmatpush1.msra.mxu0 0.0
        %1824 = vmatprep.subr.mxu0 0.0
        %1825 = vmatpush1.msra.mxu0 0.0
        %1826 = vmatprep.subr.mxu0 0.0
        %1827 = vmatpush1.msra.mxu0 0.0
        %1828 = vmatprep.subr.mxu0 0.0
        %1829 = vmatpush1.msra.mxu0 0.0
        %1830 = vmatprep.subr.mxu0 0.0
        %1831 = vmatpush1.msra.mxu0 0.0
        %1832 = vmatprep.subr.mxu0 0.0
        %1833 = vmatpush1.msra.mxu0 0.0
        %1834 = vmatprep.subr.mxu0 0.0
        %1835 = vmatpush1.msra.mxu0 0.0
        %1836 = vmatprep.subr.mxu0 0.0
        %1837 = vmatpush1.msra.mxu0 0.0
        %1838 = vmatprep.subr.mxu0 0.0
        %1839 = vmatpush1.msra.mxu0 0.0
        %1840 = vmatprep.subr.mxu0 0.0
        %1841 = vmatpush1.msra.mxu0 0.0
        %1842 = vmatprep.subr.mxu0 0.0
        %1843 = vmatpush1.msra.mxu0 0.0
        %1844 = vmatprep.subr.mxu0 0.0
        %1845 = vmatpush1.msra.mxu0 0.0
        %1846 = vmatprep.subr.mxu0 0.0
        %1847 = vmatpush1.msra.mxu0 0.0
        %1848 = vmatprep.subr.mxu0 0.0
        %1849 = vmatpush1.msra.mxu0 0.0
        %1850 = vmatprep.subr.mxu0 0.0
        %1851 = vmatpush1.msra.mxu0 0.0
        %1852 = vmatprep.subr.mxu0 0.0
        %1853 = vmatpush1.msra.mxu0 0.0
        %1854 = vmatprep.mubr.f32.mxu0 0.0
        %1855 = vmatmul.mubr.f32.gmra.mrb[0].mxu0 %v1785
        %v1856 = vpop.f32.mrb[0].mxu0
        %v1857 = vadd.f32 %v1782, %v1856
        %v1858 = vpop.f32.mrb[0].mxu0
        %1859 = vmatprep.mubr.f32.mxu0 0.0
        %1860 = vmatmul.mubr.f32.gmra.mrb[0].mxu0 %v1788
        %v1861 = vpop.f32.mrb[0].mxu0
        %v1862 = vadd.f32 %v1782, %v1861
        %v1863 = vpop.f32.mrb[0].mxu0
        %1864 = vdwg.mxu0
        %v1865 = vadd.f32 %v1857, %v827
        %v1866 = vadd.f32 %v1862, %v828
        %v1867 = vld [vmem:[%s10] sm:$0x1]
        %v1868 = vld [vmem:[%s11] sm:$0x1]
        %v1869 = vsel %vm785, %v1865, 0.0
        %1870 = vadd.xlane.f32.xlu0 %v1869
        %v1871 = vpop.xlane.xlu0 %1870
        %v1872 = vsel %vm785, %v1866, 0.0
        %1873 = vadd.xlane.f32.xlu0 %v1872
        %v1874 = vpop.xlane.xlu0 %1873
        %v1875 = vmul.f32 %v1871, %v792
        %v1876 = vmul.f32 %v1874, %v792
        %v1877 = vsub.f32 %v1865, %v1875
        %v1878 = vsub.f32 %v1866, %v1876
        %v1879 = vmul.f32 %v1877, %v1877
        %v1880 = vmul.f32 %v1878, %v1878
        %v1881 = vsel %vm785, %v1879, 0.0
        %1882 = vadd.xlane.f32.xlu0 %v1881
        %v1883 = vpop.xlane.xlu0 %1882
        %v1884 = vsel %vm785, %v1880, 0.0
        %1885 = vadd.xlane.f32.xlu0 %v1884
        %v1886 = vpop.xlane.xlu0 %1885
        %v1887 = vmul.f32 %v1883, %v792
        %v1888 = vmul.f32 %v1886, %v792
        %v1889 = vadd.f32 %v1887, 1e-12
        %v1890 = vadd.f32 %v1888, 1e-12
        %v1891 = vrsqrt.pop %v1889
        %v1892 = vrsqrt.pop %v1890
        %v1893 = vmul.f32 %v1877, %v1891
        %v1894 = vmul.f32 %v1878, %v1892
        %v1896 = vlaneseq
        %v1897 = vshrl.u32 %v1896, 7
        %v1898 = vsub.s32 0, %v1897
        %v1899 = vrot.slane %v1867, %v1898
        %v1901 = vmul.f32 %v1893, %v1899
        %v1902 = vmul.f32 %v1894, %v1899
        %v1904 = vlaneseq
        %v1905 = vshrl.u32 %v1904, 7
        %v1906 = vsub.s32 0, %v1905
        %v1907 = vrot.slane %v1868, %v1906
        %v1909 = vadd.f32 %v1901, %v1907
        %v1910 = vadd.f32 %v1902, %v1907
        %v1911 = vld [vmem:[%s12] sm:$0xff]
        %v1912 = vld [vmem:[%s12 + $0x8] sm:$0xff]
        %v1913 = vld [vmem:[%s12 + $0x10] sm:$0xff]
        %v1914 = vld [vmem:[%s12 + $0x18] sm:$0xff]
        %v1915 = vld [vmem:[%s13] sm:$0x1]
        %v1917 = vlaneseq
        %v1918 = vshrl.u32 %v1917, 7
        %v1919 = vsub.s32 0, %v1918
        %v1920 = vrot.slane %v1915, %v1919
        %v1923 = vsel %vm785, %v1909, 0
        %v1926 = vsel %vm785, %v1910, 0
        %1928 = vmatprep.subr.mxu0 0.0
        %1929 = vmatpush1.msra.mxu0 %v1911
        %1930 = vmatprep.subr.mxu0 0.0
        %1931 = vmatpush1.msra.mxu0 %v1912
        %1932 = vmatprep.subr.mxu0 0.0
        %1933 = vmatpush1.msra.mxu0 %v1913
        %1934 = vmatprep.subr.mxu0 0.0
        %1935 = vmatpush1.msra.mxu0 %v1914
        %1936 = vmatprep.subr.mxu0 0.0
        %1937 = vmatpush1.msra.mxu0 0.0
        %1938 = vmatprep.subr.mxu0 0.0
        %1939 = vmatpush1.msra.mxu0 0.0
        %1940 = vmatprep.subr.mxu0 0.0
        %1941 = vmatpush1.msra.mxu0 0.0
        %1942 = vmatprep.subr.mxu0 0.0
        %1943 = vmatpush1.msra.mxu0 0.0
        %1944 = vmatprep.subr.mxu0 0.0
        %1945 = vmatpush1.msra.mxu0 0.0
        %1946 = vmatprep.subr.mxu0 0.0
        %1947 = vmatpush1.msra.mxu0 0.0
        %1948 = vmatprep.subr.mxu0 0.0
        %1949 = vmatpush1.msra.mxu0 0.0
        %1950 = vmatprep.subr.mxu0 0.0
        %1951 = vmatpush1.msra.mxu0 0.0
        %1952 = vmatprep.subr.mxu0 0.0
        %1953 = vmatpush1.msra.mxu0 0.0
        %1954 = vmatprep.subr.mxu0 0.0
        %1955 = vmatpush1.msra.mxu0 0.0
        %1956 = vmatprep.subr.mxu0 0.0
        %1957 = vmatpush1.msra.mxu0 0.0
        %1958 = vmatprep.subr.mxu0 0.0
        %1959 = vmatpush1.msra.mxu0 0.0
        %1960 = vmatprep.subr.mxu0 0.0
        %1961 = vmatpush1.msra.mxu0 0.0
        %1962 = vmatprep.subr.mxu0 0.0
        %1963 = vmatpush1.msra.mxu0 0.0
        %1964 = vmatprep.subr.mxu0 0.0
        %1965 = vmatpush1.msra.mxu0 0.0
        %1966 = vmatprep.subr.mxu0 0.0
        %1967 = vmatpush1.msra.mxu0 0.0
        %1968 = vmatprep.subr.mxu0 0.0
        %1969 = vmatpush1.msra.mxu0 0.0
        %1970 = vmatprep.subr.mxu0 0.0
        %1971 = vmatpush1.msra.mxu0 0.0
        %1972 = vmatprep.subr.mxu0 0.0
        %1973 = vmatpush1.msra.mxu0 0.0
        %1974 = vmatprep.subr.mxu0 0.0
        %1975 = vmatpush1.msra.mxu0 0.0
        %1976 = vmatprep.subr.mxu0 0.0
        %1977 = vmatpush1.msra.mxu0 0.0
        %1978 = vmatprep.subr.mxu0 0.0
        %1979 = vmatpush1.msra.mxu0 0.0
        %1980 = vmatprep.subr.mxu0 0.0
        %1981 = vmatpush1.msra.mxu0 0.0
        %1982 = vmatprep.subr.mxu0 0.0
        %1983 = vmatpush1.msra.mxu0 0.0
        %1984 = vmatprep.subr.mxu0 0.0
        %1985 = vmatpush1.msra.mxu0 0.0
        %1986 = vmatprep.subr.mxu0 0.0
        %1987 = vmatpush1.msra.mxu0 0.0
        %1988 = vmatprep.subr.mxu0 0.0
        %1989 = vmatpush1.msra.mxu0 0.0
        %1990 = vmatprep.subr.mxu0 0.0
        %1991 = vmatpush1.msra.mxu0 0.0
        %1992 = vmatprep.mubr.f32.mxu0 0.0
        %1993 = vmatmul.mubr.f32.gmra.mrb[0].mxu0 %v1923
        %v1994 = vpop.f32.mrb[0].mxu0
        %v1995 = vadd.f32 %v1920, %v1994
        %v1996 = vpop.f32.mrb[0].mxu0
        %1997 = vmatprep.mubr.f32.mxu0 0.0
        %1998 = vmatmul.mubr.f32.gmra.mrb[0].mxu0 %v1926
        %v1999 = vpop.f32.mrb[0].mxu0
        %v2000 = vadd.f32 %v1920, %v1999
        %v2001 = vpop.f32.mrb[0].mxu0
        %2002 = vdwg.mxu0
        %v2003 = vmul.f32 %v1995, %v1995
        %v2004 = vmul.f32 %v2000, %v2000
        %v2005 = vmul.f32 %v1995, %v2003
        %v2006 = vmul.f32 %v2000, %v2004
        %v2007 = vmul.f32 %v2005, 0.044715
        %v2008 = vmul.f32 %v2006, 0.044715
        %v2009 = vadd.f32 %v1995, %v2007
        %v2010 = vadd.f32 %v2000, %v2008
        %v2011 = vmul.f32 %v2009, 0.7978846
        %v2012 = vmul.f32 %v2010, 0.7978846
        %v2013 = vtanh.pop %v2011
        %v2014 = vtanh.pop %v2012
        %v2015 = vadd.f32 %v2013, 1.0
        %v2016 = vadd.f32 %v2014, 1.0
        %v2017 = vmul.f32 %v2015, 0.5
        %v2018 = vmul.f32 %v2016, 0.5
        %v2019 = vmul.f32 %v1995, %v2017
        %v2020 = vmul.f32 %v2000, %v2018
        %v2021 = vld [vmem:[%s14] sm:$0xff]
        %v2022 = vld [vmem:[%s14 + $0x8] sm:$0xff]
        %v2023 = vld [vmem:[%s14 + $0x10] sm:$0xff]
        %v2024 = vld [vmem:[%s14 + $0x18] sm:$0xff]
        %v2025 = vld [vmem:[%s14 + $0x20] sm:$0xff]
        %v2026 = vld [vmem:[%s14 + $0x28] sm:$0xff]
        %v2027 = vld [vmem:[%s14 + $0x30] sm:$0xff]
        %v2028 = vld [vmem:[%s14 + $0x38] sm:$0xff]
        %v2029 = vld [vmem:[%s14 + $0x40] sm:$0xff]
        %v2030 = vld [vmem:[%s14 + $0x48] sm:$0xff]
        %v2031 = vld [vmem:[%s14 + $0x50] sm:$0xff]
        %v2032 = vld [vmem:[%s14 + $0x58] sm:$0xff]
        %v2033 = vld [vmem:[%s14 + $0x60] sm:$0xff]
        %v2034 = vld [vmem:[%s14 + $0x68] sm:$0xff]
        %v2035 = vld [vmem:[%s14 + $0x70] sm:$0xff]
        %v2036 = vld [vmem:[%s14 + $0x78] sm:$0xff]
        %v2037 = vld [vmem:[%s15] sm:$0x1]
        %v2039 = vlaneseq
        %v2040 = vshrl.u32 %v2039, 7
        %v2041 = vsub.s32 0, %v2040
        %v2042 = vrot.slane %v2037, %v2041
        %2044 = vmatprep.subr.mxu0 0.0
        %2045 = vmatpush1.msra.mxu0 %v2021
        %2046 = vmatprep.subr.mxu0 0.0
        %2047 = vmatpush1.msra.mxu0 %v2022
        %2048 = vmatprep.subr.mxu0 0.0
        %2049 = vmatpush1.msra.mxu0 %v2023
        %2050 = vmatprep.subr.mxu0 0.0
        %2051 = vmatpush1.msra.mxu0 %v2024
        %2052 = vmatprep.subr.mxu0 0.0
        %2053 = vmatpush1.msra.mxu0 %v2025
        %2054 = vmatprep.subr.mxu0 0.0
        %2055 = vmatpush1.msra.mxu0 %v2026
        %2056 = vmatprep.subr.mxu0 0.0
        %2057 = vmatpush1.msra.mxu0 %v2027
        %2058 = vmatprep.subr.mxu0 0.0
        %2059 = vmatpush1.msra.mxu0 %v2028
        %2060 = vmatprep.subr.mxu0 0.0
        %2061 = vmatpush1.msra.mxu0 %v2029
        %2062 = vmatprep.subr.mxu0 0.0
        %2063 = vmatpush1.msra.mxu0 %v2030
        %2064 = vmatprep.subr.mxu0 0.0
        %2065 = vmatpush1.msra.mxu0 %v2031
        %2066 = vmatprep.subr.mxu0 0.0
        %2067 = vmatpush1.msra.mxu0 %v2032
        %2068 = vmatprep.subr.mxu0 0.0
        %2069 = vmatpush1.msra.mxu0 %v2033
        %2070 = vmatprep.subr.mxu0 0.0
        %2071 = vmatpush1.msra.mxu0 %v2034
        %2072 = vmatprep.subr.mxu0 0.0
        %2073 = vmatpush1.msra.mxu0 %v2035
        %2074 = vmatprep.subr.mxu0 0.0
        %2075 = vmatpush1.msra.mxu0 %v2036
        %2076 = vmatprep.subr.mxu0 0.0
        %2077 = vmatpush1.msra.mxu0 0.0
        %2078 = vmatprep.subr.mxu0 0.0
        %2079 = vmatpush1.msra.mxu0 0.0
        %2080 = vmatprep.subr.mxu0 0.0
        %2081 = vmatpush1.msra.mxu0 0.0
        %2082 = vmatprep.subr.mxu0 0.0
        %2083 = vmatpush1.msra.mxu0 0.0
        %2084 = vmatprep.subr.mxu0 0.0
        %2085 = vmatpush1.msra.mxu0 0.0
        %2086 = vmatprep.subr.mxu0 0.0
        %2087 = vmatpush1.msra.mxu0 0.0
        %2088 = vmatprep.subr.mxu0 0.0
        %2089 = vmatpush1.msra.mxu0 0.0
        %2090 = vmatprep.subr.mxu0 0.0
        %2091 = vmatpush1.msra.mxu0 0.0
        %2092 = vmatprep.subr.mxu0 0.0
        %2093 = vmatpush1.msra.mxu0 0.0
        %2094 = vmatprep.subr.mxu0 0.0
        %2095 = vmatpush1.msra.mxu0 0.0
        %2096 = vmatprep.subr.mxu0 0.0
        %2097 = vmatpush1.msra.mxu0 0.0
        %2098 = vmatprep.subr.mxu0 0.0
        %2099 = vmatpush1.msra.mxu0 0.0
        %2100 = vmatprep.subr.mxu0 0.0
        %2101 = vmatpush1.msra.mxu0 0.0
        %2102 = vmatprep.subr.mxu0 0.0
        %2103 = vmatpush1.msra.mxu0 0.0
        %2104 = vmatprep.subr.mxu0 0.0
        %2105 = vmatpush1.msra.mxu0 0.0
        %2106 = vmatprep.subr.mxu0 0.0
        %2107 = vmatpush1.msra.mxu0 0.0
        %2108 = vmatprep.mubr.f32.mxu0 0.0
        %2109 = vmatmul.mubr.f32.gmra.mrb[0].mxu0 %v2019
        %v2110 = vpop.f32.mrb[0].mxu0
        %v2111 = vadd.f32 %v2042, %v2110
        %v2112 = vpop.f32.mrb[0].mxu0
        %2113 = vmatprep.mubr.f32.mxu0 0.0
        %2114 = vmatmul.mubr.f32.gmra.mrb[0].mxu0 %v2020
        %v2115 = vpop.f32.mrb[0].mxu0
        %v2116 = vadd.f32 %v2042, %v2115
        %v2117 = vpop.f32.mrb[0].mxu0
        %2118 = vdwg.mxu0
        %v2119 = vadd.f32 %v2111, %v1909
        %v2120 = vadd.f32 %v2116, %v1910
        %v2121 = vld [vmem:[%s16] sm:$0x1]
        %v2122 = vld [vmem:[%s17] sm:$0x1]
        %v2123 = vsel %vm785, %v2119, 0.0
        %2124 = vadd.xlane.f32.xlu0 %v2123
        %v2125 = vpop.xlane.xlu0 %2124
        %v2126 = vsel %vm785, %v2120, 0.0
        %2127 = vadd.xlane.f32.xlu0 %v2126
        %v2128 = vpop.xlane.xlu0 %2127
        %v2129 = vmul.f32 %v2125, %v792
        %v2130 = vmul.f32 %v2128, %v792
        %v2131 = vsub.f32 %v2119, %v2129
        %v2132 = vsub.f32 %v2120, %v2130
        %v2133 = vmul.f32 %v2131, %v2131
        %v2134 = vmul.f32 %v2132, %v2132
        %v2135 = vsel %vm785, %v2133, 0.0
        %2136 = vadd.xlane.f32.xlu0 %v2135
        %v2137 = vpop.xlane.xlu0 %2136
        %v2138 = vsel %vm785, %v2134, 0.0
        %2139 = vadd.xlane.f32.xlu0 %v2138
        %v2140 = vpop.xlane.xlu0 %2139
        %v2141 = vmul.f32 %v2137, %v792
        %v2142 = vmul.f32 %v2140, %v792
        %v2143 = vadd.f32 %v2141, 1e-12
        %v2144 = vadd.f32 %v2142, 1e-12
        %v2145 = vrsqrt.pop %v2143
        %v2146 = vrsqrt.pop %v2144
        %v2147 = vmul.f32 %v2131, %v2145
        %v2148 = vmul.f32 %v2132, %v2146
        %v2150 = vlaneseq
        %v2151 = vshrl.u32 %v2150, 7
        %v2152 = vsub.s32 0, %v2151
        %v2153 = vrot.slane %v2121, %v2152
        %v2155 = vmul.f32 %v2147, %v2153
        %v2156 = vmul.f32 %v2148, %v2153
        %v2158 = vlaneseq
        %v2159 = vshrl.u32 %v2158, 7
        %v2160 = vsub.s32 0, %v2159
        %v2161 = vrot.slane %v2122, %v2160
        %v2163 = vadd.f32 %v2155, %v2161
        %v2164 = vadd.f32 %v2156, %v2161
        %s2165 = scalar_lea.vmem [#allocation7], 32
        %v2166 = vld [vmem:[%s2165] sm:$0xff]
        %v2167 = vld [vmem:[%s2165 + $0x8] sm:$0xff]
        %v2168 = vld [vmem:[%s2165 + $0x10] sm:$0xff]
        %v2169 = vld [vmem:[%s2165 + $0x18] sm:$0xff]
        %s2170 = scalar_lea.vmem %s7, 1
        %v2171 = vld [vmem:[%s2170] sm:$0x1]
        %v2173 = vlaneseq
        %v2174 = vshrl.u32 %v2173, 7
        %v2175 = vsub.s32 0, %v2174
        %v2176 = vrot.slane %v2171, %v2175
        %v2179 = vsel %vm785, %v2163, 0
        %v2182 = vsel %vm785, %v2164, 0
        %2184 = vmatprep.subr.mxu0 0.0
        %2185 = vmatpush1.msra.mxu0 %v2166
        %2186 = vmatprep.subr.mxu0 0.0
        %2187 = vmatpush1.msra.mxu0 %v2167
        %2188 = vmatprep.subr.mxu0 0.0
        %2189 = vmatpush1.msra.mxu0 %v2168
        %2190 = vmatprep.subr.mxu0 0.0
        %2191 = vmatpush1.msra.mxu0 %v2169
        %2192 = vmatprep.subr.mxu0 0.0
        %2193 = vmatpush1.msra.mxu0 0.0
        %2194 = vmatprep.subr.mxu0 0.0
        %2195 = vmatpush1.msra.mxu0 0.0
        %2196 = vmatprep.subr.mxu0 0.0
        %2197 = vmatpush1.msra.mxu0 0.0
        %2198 = vmatprep.subr.mxu0 0.0
        %2199 = vmatpush1.msra.mxu0 0.0
        %2200 = vmatprep.subr.mxu0 0.0
        %2201 = vmatpush1.msra.mxu0 0.0
        %2202 = vmatprep.subr.mxu0 0.0
        %2203 = vmatpush1.msra.mxu0 0.0
        %2204 = vmatprep.subr.mxu0 0.0
        %2205 = vmatpush1.msra.mxu0 0.0
        %2206 = vmatprep.subr.mxu0 0.0
        %2207 = vmatpush1.msra.mxu0 0.0
        %2208 = vmatprep.subr.mxu0 0.0
        %2209 = vmatpush1.msra.mxu0 0.0
        %2210 = vmatprep.subr.mxu0 0.0
        %2211 = vmatpush1.msra.mxu0 0.0
        %2212 = vmatprep.subr.mxu0 0.0
        %2213 = vmatpush1.msra.mxu0 0.0
        %2214 = vmatprep.subr.mxu0 0.0
        %2215 = vmatpush1.msra.mxu0 0.0
        %2216 = vmatprep.subr.mxu0 0.0
        %2217 = vmatpush1.msra.mxu0 0.0
        %2218 = vmatprep.subr.mxu0 0.0
        %2219 = vmatpush1.msra.mxu0 0.0
        %2220 = vmatprep.subr.mxu0 0.0
        %2221 = vmatpush1.msra.mxu0 0.0
        %2222 = vmatprep.subr.mxu0 0.0
        %2223 = vmatpush1.msra.mxu0 0.0
        %2224 = vmatprep.subr.mxu0 0.0
        %2225 = vmatpush1.msra.mxu0 0.0
        %2226 = vmatprep.subr.mxu0 0.0
        %2227 = vmatpush1.msra.mxu0 0.0
        %2228 = vmatprep.subr.mxu0 0.0
        %2229 = vmatpush1.msra.mxu0 0.0
        %2230 = vmatprep.subr.mxu0 0.0
        %2231 = vmatpush1.msra.mxu0 0.0
        %2232 = vmatprep.subr.mxu0 0.0
        %2233 = vmatpush1.msra.mxu0 0.0
        %2234 = vmatprep.subr.mxu0 0.0
        %2235 = vmatpush1.msra.mxu0 0.0
        %2236 = vmatprep.subr.mxu0 0.0
        %2237 = vmatpush1.msra.mxu0 0.0
        %2238 = vmatprep.subr.mxu0 0.0
        %2239 = vmatpush1.msra.mxu0 0.0
        %2240 = vmatprep.subr.mxu0 0.0
        %2241 = vmatpush1.msra.mxu0 0.0
        %2242 = vmatprep.subr.mxu0 0.0
        %2243 = vmatpush1.msra.mxu0 0.0
        %2244 = vmatprep.subr.mxu0 0.0
        %2245 = vmatpush1.msra.mxu0 0.0
        %2246 = vmatprep.subr.mxu0 0.0
        %2247 = vmatpush1.msra.mxu0 0.0
        %2248 = vmatprep.mubr.f32.mxu0 0.0
        %2249 = vmatmul.mubr.f32.gmra.mrb[0].mxu0 %v2179
        %v2250 = vpop.f32.mrb[0].mxu0
        %v2251 = vadd.f32 %v2176, %v2250
        %v2252 = vpop.f32.mrb[0].mxu0
        %2253 = vmatprep.mubr.f32.mxu0 0.0
        %2254 = vmatmul.mubr.f32.gmra.mrb[0].mxu0 %v2182
        %v2255 = vpop.f32.mrb[0].mxu0
        %v2256 = vadd.f32 %v2176, %v2255
        %v2257 = vpop.f32.mrb[0].mxu0
        %2258 = vdwg.mxu0
        %2261 = vrot.lane.b32.xlu0 %v2251, 96
        %v2262 = vpop.permute.xlu0 %2261
        %2263 = vrot.lane.b32.xlu0 %v2256, 96
        %v2264 = vpop.permute.xlu0 %2263
        %v2265 = vsel %vm927, %v2251, 0
        %v2267 = vsel %vm927, %v2256, 0
        %v2269 = vsel %vm927, %v2262, 0
        %v2271 = vsel %vm927, %v2264, 0
        %2273 = vmatprep.subr.mxu0 0.0
        %2274 = vmatpush1.xpose.msra.mxu0 %v2269
        %2275 = vmatprep.subr.mxu0 0.0
        %2276 = vmatpush1.xpose.msra.mxu0 %v2271
        %2277 = vmatprep.subr.mxu0 0.0
        %2278 = vmatpush1.xpose.msra.mxu0 0.0
        %2279 = vmatprep.subr.mxu0 0.0
        %2280 = vmatpush1.xpose.msra.mxu0 0.0
        %2281 = vmatprep.subr.mxu0 0.0
        %2282 = vmatpush1.xpose.msra.mxu0 0.0
        %2283 = vmatprep.subr.mxu0 0.0
        %2284 = vmatpush1.xpose.msra.mxu0 0.0
        %2285 = vmatprep.subr.mxu0 0.0
        %2286 = vmatpush1.xpose.msra.mxu0 0.0
        %2287 = vmatprep.subr.mxu0 0.0
        %2288 = vmatpush1.xpose.msra.mxu0 0.0
        %2289 = vmatprep.subr.mxu0 0.0
        %2290 = vmatpush1.xpose.msra.mxu0 0.0
        %2291 = vmatprep.subr.mxu0 0.0
        %2292 = vmatpush1.xpose.msra.mxu0 0.0
        %2293 = vmatprep.subr.mxu0 0.0
        %2294 = vmatpush1.xpose.msra.mxu0 0.0
        %2295 = vmatprep.subr.mxu0 0.0
        %2296 = vmatpush1.xpose.msra.mxu0 0.0
        %2297 = vmatprep.subr.mxu0 0.0
        %2298 = vmatpush1.xpose.msra.mxu0 0.0
        %2299 = vmatprep.subr.mxu0 0.0
        %2300 = vmatpush1.xpose.msra.mxu0 0.0
        %2301 = vmatprep.subr.mxu0 0.0
        %2302 = vmatpush1.xpose.msra.mxu0 0.0
        %2303 = vmatprep.subr.mxu0 0.0
        %2304 = vmatpush1.xpose.msra.mxu0 0.0
        %2305 = vmatprep.subr.mxu0 0.0
        %2306 = vmatpush1.xpose.msra.mxu0 0.0
        %2307 = vmatprep.subr.mxu0 0.0
        %2308 = vmatpush1.xpose.msra.mxu0 0.0
        %2309 = vmatprep.subr.mxu0 0.0
        %2310 = vmatpush1.xpose.msra.mxu0 0.0
        %2311 = vmatprep.subr.mxu0 0.0
        %2312 = vmatpush1.xpose.msra.mxu0 0.0
        %2313 = vmatprep.subr.mxu0 0.0
        %2314 = vmatpush1.xpose.msra.mxu0 0.0
        %2315 = vmatprep.subr.mxu0 0.0
        %2316 = vmatpush1.xpose.msra.mxu0 0.0
        %2317 = vmatprep.subr.mxu0 0.0
        %2318 = vmatpush1.xpose.msra.mxu0 0.0
        %2319 = vmatprep.subr.mxu0 0.0
        %2320 = vmatpush1.xpose.msra.mxu0 0.0
        %2321 = vmatprep.subr.mxu0 0.0
        %2322 = vmatpush1.xpose.msra.mxu0 0.0
        %2323 = vmatprep.subr.mxu0 0.0
        %2324 = vmatpush1.xpose.msra.mxu0 0.0
        %2325 = vmatprep.subr.mxu0 0.0
        %2326 = vmatpush1.xpose.msra.mxu0 0.0
        %2327 = vmatprep.subr.mxu0 0.0
        %2328 = vmatpush1.xpose.msra.mxu0 0.0
        %2329 = vmatprep.subr.mxu0 0.0
        %2330 = vmatpush1.xpose.msra.mxu0 0.0
        %2331 = vmatprep.subr.mxu0 0.0
        %2332 = vmatpush1.xpose.msra.mxu0 0.0
        %2333 = vmatprep.subr.mxu0 0.0
        %2334 = vmatpush1.xpose.msra.mxu0 0.0
        %2335 = vmatprep.subr.mxu0 0.0
        %2336 = vmatpush1.xpose.msra.mxu0 0.0
        %2337 = vmatprep.mubr.f32.mxu0 0.0
        %2338 = vmatmul.mubr.f32.gmra.mrb[0].mxu0 %v2265
        %v2339 = vpop.f32.mrb[0].mxu0
        %v2340 = vadd.f32 0.0, %v2339
        %v2341 = vpop.f32.mrb[0].mxu0
        %2342 = vmatprep.mubr.f32.mxu0 0.0
        %2343 = vmatmul.mubr.f32.gmra.mrb[0].mxu0 %v2267
        %v2344 = vpop.f32.mrb[0].mxu0
        %v2345 = vadd.f32 0.0, %v2344
        %v2346 = vpop.f32.mrb[0].mxu0
        %2347 = vdwg.mxu0
        %v2348 = vmul.f32 %v2340, 0.35355338
        %v2349 = vmul.f32 %v2345, 0.35355338
        %v2350 = vadd.f32 %v2348, %v695
        %v2351 = vadd.f32 %v2349, %v695
        %v2352 = vsel %vm701, %v2350, -inf
        %2353 = vmax.xlane.f32.xlu0 %v2352
        %v2354 = vpop.xlane.xlu0 %2353
        %v2355 = vsel %vm701, %v2351, -inf
        %2356 = vmax.xlane.f32.xlu0 %v2355
        %v2357 = vpop.xlane.xlu0 %2356
        %v2358 = vsub.f32 %v2350, %v2354
        %v2359 = vsub.f32 %v2351, %v2357
        %v2360 = vmul.f32 %v2358, 1.442695
        %v2361 = vpow.pop %v2360
        %v2362 = vmul.f32 %v2359, 1.442695
        %v2363 = vpow.pop %v2362
        %v2364 = vsel %vm701, %v2361, 0.0
        %2365 = vadd.xlane.f32.xlu0 %v2364
        %v2366 = vpop.xlane.xlu0 %2365
        %v2367 = vsel %vm701, %v2363, 0.0
        %2368 = vadd.xlane.f32.xlu0 %v2367
        %v2369 = vpop.xlane.xlu0 %2368
        %v2370 = vrcp.pop %v2366
        %v2371 = vrcp.pop %v2369
        %v2372 = vmul.f32 %v2361, %v2370
        %v2373 = vmul.f32 %v2363, %v2371
        %2374 = vrot.lane.b32.xlu0 %v2251, 64
        %v2375 = vpop.permute.xlu0 %2374
        %2376 = vrot.lane.b32.xlu0 %v2256, 64
        %v2377 = vpop.permute.xlu0 %2376
        %v2381 = vsel %vm701, %v2372, 0
        %v2384 = vsel %vm701, %v2373, 0
        %2386 = vmatprep.subr.mxu0 0.0
        %2387 = vmatpush1.msra.mxu0 %v2375
        %2388 = vmatprep.subr.mxu0 0.0
        %2389 = vmatpush1.msra.mxu0 %v2377
        %2390 = vmatprep.subr.mxu0 0.0
        %2391 = vmatpush1.msra.mxu0 0.0
        %2392 = vmatprep.subr.mxu0 0.0
        %2393 = vmatpush1.msra.mxu0 0.0
        %2394 = vmatprep.subr.mxu0 0.0
        %2395 = vmatpush1.msra.mxu0 0.0
        %2396 = vmatprep.subr.mxu0 0.0
        %2397 = vmatpush1.msra.mxu0 0.0
        %2398 = vmatprep.subr.mxu0 0.0
        %2399 = vmatpush1.msra.mxu0 0.0
        %2400 = vmatprep.subr.mxu0 0.0
        %2401 = vmatpush1.msra.mxu0 0.0
        %2402 = vmatprep.subr.mxu0 0.0
        %2403 = vmatpush1.msra.mxu0 0.0
        %2404 = vmatprep.subr.mxu0 0.0
        %2405 = vmatpush1.msra.mxu0 0.0
        %2406 = vmatprep.subr.mxu0 0.0
        %2407 = vmatpush1.msra.mxu0 0.0
        %2408 = vmatprep.subr.mxu0 0.0
        %2409 = vmatpush1.msra.mxu0 0.0
        %2410 = vmatprep.subr.mxu0 0.0
        %2411 = vmatpush1.msra.mxu0 0.0
        %2412 = vmatprep.subr.mxu0 0.0
        %2413 = vmatpush1.msra.mxu0 0.0
        %2414 = vmatprep.subr.mxu0 0.0
        %2415 = vmatpush1.msra.mxu0 0.0
        %2416 = vmatprep.subr.mxu0 0.0
        %2417 = vmatpush1.msra.mxu0 0.0
        %2418 = vmatprep.subr.mxu0 0.0
        %2419 = vmatpush1.msra.mxu0 0.0
        %2420 = vmatprep.subr.mxu0 0.0
        %2421 = vmatpush1.msra.mxu0 0.0
        %2422 = vmatprep.subr.mxu0 0.0
        %2423 = vmatpush1.msra.mxu0 0.0
        %2424 = vmatprep.subr.mxu0 0.0
        %2425 = vmatpush1.msra.mxu0 0.0
        %2426 = vmatprep.subr.mxu0 0.0
        %2427 = vmatpush1.msra.mxu0 0.0
        %2428 = vmatprep.subr.mxu0 0.0
        %2429 = vmatpush1.msra.mxu0 0.0
        %2430 = vmatprep.subr.mxu0 0.0
        %2431 = vmatpush1.msra.mxu0 0.0
        %2432 = vmatprep.subr.mxu0 0.0
        %2433 = vmatpush1.msra.mxu0 0.0
        %2434 = vmatprep.subr.mxu0 0.0
        %2435 = vmatpush1.msra.mxu0 0.0
        %2436 = vmatprep.subr.mxu0 0.0
        %2437 = vmatpush1.msra.mxu0 0.0
        %2438 = vmatprep.subr.mxu0 0.0
        %2439 = vmatpush1.msra.mxu0 0.0
        %2440 = vmatprep.subr.mxu0 0.0
        %2441 = vmatpush1.msra.mxu0 0.0
        %2442 = vmatprep.subr.mxu0 0.0
        %2443 = vmatpush1.msra.mxu0 0.0
        %2444 = vmatprep.subr.mxu0 0.0
        %2445 = vmatpush1.msra.mxu0 0.0
        %2446 = vmatprep.subr.mxu0 0.0
        %2447 = vmatpush1.msra.mxu0 0.0
        %2448 = vmatprep.subr.mxu0 0.0
        %2449 = vmatpush1.msra.mxu0 0.0
        %2450 = vmatprep.mubr.f32.mxu0 0.0
        %2451 = vmatmul.mubr.f32.gmra.mrb[0].mxu0 %v2381
        %v2452 = vpop.f32.mrb[0].mxu0
        %v2453 = vadd.f32 0.0, %v2452
        %v2454 = vpop.f32.mrb[0].mxu0
        %2455 = vmatprep.mubr.f32.mxu0 0.0
        %2456 = vmatmul.mubr.f32.gmra.mrb[0].mxu0 %v2384
        %v2457 = vpop.f32.mrb[0].mxu0
        %v2458 = vadd.f32 0.0, %v2457
        %v2459 = vpop.f32.mrb[0].mxu0
        %2460 = vdwg.mxu0
        %2461 = vst.msk [vmem:[#allocation2] sm:$0xff] %vm927, %v2453
        %2462 = vst.msk [vmem:[#allocation2 + $0x8] sm:$0xff] %vm927, %v2458
        %2463 = vrot.lane.b32.xlu0 %v2251, 120
        %v2464 = vpop.permute.xlu0 %2463
        %2465 = vrot.lane.b32.xlu0 %v2256, 120
        %v2466 = vpop.permute.xlu0 %2465
        %2467 = vrot.lane.b32.xlu0 %v2251, 88
        %v2468 = vpop.permute.xlu0 %2467
        %2469 = vrot.lane.b32.xlu0 %v2256, 88
        %v2470 = vpop.permute.xlu0 %2469
        %v2471 = vsel %vm927, %v2464, 0
        %v2473 = vsel %vm927, %v2466, 0
        %v2475 = vsel %vm927, %v2468, 0
        %v2477 = vsel %vm927, %v2470, 0
        %2479 = vmatprep.subr.mxu0 0.0
        %2480 = vmatpush1.xpose.msra.mxu0 %v2475
        %2481 = vmatprep.subr.mxu0 0.0
        %2482 = vmatpush1.xpose.msra.mxu0 %v2477
        %2483 = vmatprep.subr.mxu0 0.0
        %2484 = vmatpush1.xpose.msra.mxu0 0.0
        %2485 = vmatprep.subr.mxu0 0.0
        %2486 = vmatpush1.xpose.msra.mxu0 0.0
        %2487 = vmatprep.subr.mxu0 0.0
        %2488 = vmatpush1.xpose.msra.mxu0 0.0
        %2489 = vmatprep.subr.mxu0 0.0
        %2490 = vmatpush1.xpose.msra.mxu0 0.0
        %2491 = vmatprep.subr.mxu0 0.0
        %2492 = vmatpush1.xpose.msra.mxu0 0.0
        %2493 = vmatprep.subr.mxu0 0.0
        %2494 = vmatpush1.xpose.msra.mxu0 0.0
        %2495 = vmatprep.subr.mxu0 0.0
        %2496 = vmatpush1.xpose.msra.mxu0 0.0
        %2497 = vmatprep.subr.mxu0 0.0
        %2498 = vmatpush1.xpose.msra.mxu0 0.0
        %2499 = vmatprep.subr.mxu0 0.0
        %2500 = vmatpush1.xpose.msra.mxu0 0.0
        %2501 = vmatprep.subr.mxu0 0.0
        %2502 = vmatpush1.xpose.msra.mxu0 0.0
        %2503 = vmatprep.subr.mxu0 0.0
        %2504 = vmatpush1.xpose.msra.mxu0 0.0
        %2505 = vmatprep.subr.mxu0 0.0
        %2506 = vmatpush1.xpose.msra.mxu0 0.0
        %2507 = vmatprep.subr.mxu0 0.0
        %2508 = vmatpush1.xpose.msra.mxu0 0.0
        %2509 = vmatprep.subr.mxu0 0.0
        %2510 = vmatpush1.xpose.msra.mxu0 0.0
        %2511 = vmatprep.subr.mxu0 0.0
        %2512 = vmatpush1.xpose.msra.mxu0 0.0
        %2513 = vmatprep.subr.mxu0 0.0
        %2514 = vmatpush1.xpose.msra.mxu0 0.0
        %2515 = vmatprep.subr.mxu0 0.0
        %2516 = vmatpush1.xpose.msra.mxu0 0.0
        %2517 = vmatprep.subr.mxu0 0.0
        %2518 = vmatpush1.xpose.msra.mxu0 0.0
        %2519 = vmatprep.subr.mxu0 0.0
        %2520 = vmatpush1.xpose.msra.mxu0 0.0
        %2521 = vmatprep.subr.mxu0 0.0
        %2522 = vmatpush1.xpose.msra.mxu0 0.0
        %2523 = vmatprep.subr.mxu0 0.0
        %2524 = vmatpush1.xpose.msra.mxu0 0.0
        %2525 = vmatprep.subr.mxu0 0.0
        %2526 = vmatpush1.xpose.msra.mxu0 0.0
        %2527 = vmatprep.subr.mxu0 0.0
        %2528 = vmatpush1.xpose.msra.mxu0 0.0
        %2529 = vmatprep.subr.mxu0 0.0
        %2530 = vmatpush1.xpose.msra.mxu0 0.0
        %2531 = vmatprep.subr.mxu0 0.0
        %2532 = vmatpush1.xpose.msra.mxu0 0.0
        %2533 = vmatprep.subr.mxu0 0.0
        %2534 = vmatpush1.xpose.msra.mxu0 0.0
        %2535 = vmatprep.subr.mxu0 0.0
        %2536 = vmatpush1.xpose.msra.mxu0 0.0
        %2537 = vmatprep.subr.mxu0 0.0
        %2538 = vmatpush1.xpose.msra.mxu0 0.0
        %2539 = vmatprep.subr.mxu0 0.0
        %2540 = vmatpush1.xpose.msra.mxu0 0.0
        %2541 = vmatprep.subr.mxu0 0.0
        %2542 = vmatpush1.xpose.msra.mxu0 0.0
        %2543 = vmatprep.mubr.f32.mxu0 0.0
        %2544 = vmatmul.mubr.f32.gmra.mrb[0].mxu0 %v2471
        %v2545 = vpop.f32.mrb[0].mxu0
        %v2546 = vadd.f32 0.0, %v2545
        %v2547 = vpop.f32.mrb[0].mxu0
        %2548 = vmatprep.mubr.f32.mxu0 0.0
        %2549 = vmatmul.mubr.f32.gmra.mrb[0].mxu0 %v2473
        %v2550 = vpop.f32.mrb[0].mxu0
        %v2551 = vadd.f32 0.0, %v2550
        %v2552 = vpop.f32.mrb[0].mxu0
        %2553 = vdwg.mxu0
        %v2554 = vmul.f32 %v2546, 0.35355338
        %v2555 = vmul.f32 %v2551, 0.35355338
        %v2556 = vadd.f32 %v2554, %v695
        %v2557 = vadd.f32 %v2555, %v695
        %v2558 = vsel %vm701, %v2556, -inf
        %2559 = vmax.xlane.f32.xlu0 %v2558
        %v2560 = vpop.xlane.xlu0 %2559
        %v2561 = vsel %vm701, %v2557, -inf
        %2562 = vmax.xlane.f32.xlu0 %v2561
        %v2563 = vpop.xlane.xlu0 %2562
        %v2564 = vsub.f32 %v2556, %v2560
        %v2565 = vsub.f32 %v2557, %v2563
        %v2566 = vmul.f32 %v2564, 1.442695
        %v2567 = vpow.pop %v2566
        %v2568 = vmul.f32 %v2565, 1.442695
        %v2569 = vpow.pop %v2568
        %v2570 = vsel %vm701, %v2567, 0.0
        %2571 = vadd.xlane.f32.xlu0 %v2570
        %v2572 = vpop.xlane.xlu0 %2571
        %v2573 = vsel %vm701, %v2569, 0.0
        %2574 = vadd.xlane.f32.xlu0 %v2573
        %v2575 = vpop.xlane.xlu0 %2574
        %v2576 = vrcp.pop %v2572
        %v2577 = vrcp.pop %v2575
        %v2578 = vmul.f32 %v2567, %v2576
        %v2579 = vmul.f32 %v2569, %v2577
        %2580 = vrot.lane.b32.xlu0 %v2251, 56
        %v2581 = vpop.permute.xlu0 %2580
        %2582 = vrot.lane.b32.xlu0 %v2256, 56
        %v2583 = vpop.permute.xlu0 %2582
        %v2587 = vsel %vm701, %v2578, 0
        %v2590 = vsel %vm701, %v2579, 0
        %2592 = vmatprep.subr.mxu0 0.0
        %2593 = vmatpush1.msra.mxu0 %v2581
        %2594 = vmatprep.subr.mxu0 0.0
        %2595 = vmatpush1.msra.mxu0 %v2583
        %2596 = vmatprep.subr.mxu0 0.0
        %2597 = vmatpush1.msra.mxu0 0.0
        %2598 = vmatprep.subr.mxu0 0.0
        %2599 = vmatpush1.msra.mxu0 0.0
        %2600 = vmatprep.subr.mxu0 0.0
        %2601 = vmatpush1.msra.mxu0 0.0
        %2602 = vmatprep.subr.mxu0 0.0
        %2603 = vmatpush1.msra.mxu0 0.0
        %2604 = vmatprep.subr.mxu0 0.0
        %2605 = vmatpush1.msra.mxu0 0.0
        %2606 = vmatprep.subr.mxu0 0.0
        %2607 = vmatpush1.msra.mxu0 0.0
        %2608 = vmatprep.subr.mxu0 0.0
        %2609 = vmatpush1.msra.mxu0 0.0
        %2610 = vmatprep.subr.mxu0 0.0
        %2611 = vmatpush1.msra.mxu0 0.0
        %2612 = vmatprep.subr.mxu0 0.0
        %2613 = vmatpush1.msra.mxu0 0.0
        %2614 = vmatprep.subr.mxu0 0.0
        %2615 = vmatpush1.msra.mxu0 0.0
        %2616 = vmatprep.subr.mxu0 0.0
        %2617 = vmatpush1.msra.mxu0 0.0
        %2618 = vmatprep.subr.mxu0 0.0
        %2619 = vmatpush1.msra.mxu0 0.0
        %2620 = vmatprep.subr.mxu0 0.0
        %2621 = vmatpush1.msra.mxu0 0.0
        %2622 = vmatprep.subr.mxu0 0.0
        %2623 = vmatpush1.msra.mxu0 0.0
        %2624 = vmatprep.subr.mxu0 0.0
        %2625 = vmatpush1.msra.mxu0 0.0
        %2626 = vmatprep.subr.mxu0 0.0
        %2627 = vmatpush1.msra.mxu0 0.0
        %2628 = vmatprep.subr.mxu0 0.0
        %2629 = vmatpush1.msra.mxu0 0.0
        %2630 = vmatprep.subr.mxu0 0.0
        %2631 = vmatpush1.msra.mxu0 0.0
        %2632 = vmatprep.subr.mxu0 0.0
        %2633 = vmatpush1.msra.mxu0 0.0
        %2634 = vmatprep.subr.mxu0 0.0
        %2635 = vmatpush1.msra.mxu0 0.0
        %2636 = vmatprep.subr.mxu0 0.0
        %2637 = vmatpush1.msra.mxu0 0.0
        %2638 = vmatprep.subr.mxu0 0.0
        %2639 = vmatpush1.msra.mxu0 0.0
        %2640 = vmatprep.subr.mxu0 0.0
        %2641 = vmatpush1.msra.mxu0 0.0
        %2642 = vmatprep.subr.mxu0 0.0
        %2643 = vmatpush1.msra.mxu0 0.0
        %2644 = vmatprep.subr.mxu0 0.0
        %2645 = vmatpush1.msra.mxu0 0.0
        %2646 = vmatprep.subr.mxu0 0.0
        %2647 = vmatpush1.msra.mxu0 0.0
        %2648 = vmatprep.subr.mxu0 0.0
        %2649 = vmatpush1.msra.mxu0 0.0
        %2650 = vmatprep.subr.mxu0 0.0
        %2651 = vmatpush1.msra.mxu0 0.0
        %2652 = vmatprep.subr.mxu0 0.0
        %2653 = vmatpush1.msra.mxu0 0.0
        %2654 = vmatprep.subr.mxu0 0.0
        %2655 = vmatpush1.msra.mxu0 0.0
        %2656 = vmatprep.mubr.f32.mxu0 0.0
        %2657 = vmatmul.mubr.f32.gmra.mrb[0].mxu0 %v2587
        %v2658 = vpop.f32.mrb[0].mxu0
        %v2659 = vadd.f32 0.0, %v2658
        %v2660 = vpop.f32.mrb[0].mxu0
        %2661 = vmatprep.mubr.f32.mxu0 0.0
        %2662 = vmatmul.mubr.f32.gmra.mrb[0].mxu0 %v2590
        %v2663 = vpop.f32.mrb[0].mxu0
        %v2664 = vadd.f32 0.0, %v2663
        %v2665 = vpop.f32.mrb[0].mxu0
        %2666 = vdwg.mxu0
        %2669 = vrot.lane.b32.xlu0 %v2659, 8
        %v2670 = vpop.permute.xlu0 %2669
        %2671 = vrot.lane.b32.xlu0 %v2664, 8
        %v2672 = vpop.permute.xlu0 %2671
        %2675 = vst.msk [vmem:[#allocation2] sm:$0xff] %vm1338, %v2670
        %2676 = vst.msk [vmem:[#allocation2 + $0x8] sm:$0xff] %vm1338, %v2672
        %2677 = vrot.lane.b32.xlu0 %v2251, 112
        %v2678 = vpop.permute.xlu0 %2677
        %2679 = vrot.lane.b32.xlu0 %v2256, 112
        %v2680 = vpop.permute.xlu0 %2679
        %2681 = vrot.lane.b32.xlu0 %v2251, 80
        %v2682 = vpop.permute.xlu0 %2681
        %2683 = vrot.lane.b32.xlu0 %v2256, 80
        %v2684 = vpop.permute.xlu0 %2683
        %v2685 = vsel %vm927, %v2678, 0
        %v2687 = vsel %vm927, %v2680, 0
        %v2689 = vsel %vm927, %v2682, 0
        %v2691 = vsel %vm927, %v2684, 0
        %2693 = vmatprep.subr.mxu0 0.0
        %2694 = vmatpush1.xpose.msra.mxu0 %v2689
        %2695 = vmatprep.subr.mxu0 0.0
        %2696 = vmatpush1.xpose.msra.mxu0 %v2691
        %2697 = vmatprep.subr.mxu0 0.0
        %2698 = vmatpush1.xpose.msra.mxu0 0.0
        %2699 = vmatprep.subr.mxu0 0.0
        %2700 = vmatpush1.xpose.msra.mxu0 0.0
        %2701 = vmatprep.subr.mxu0 0.0
        %2702 = vmatpush1.xpose.msra.mxu0 0.0
        %2703 = vmatprep.subr.mxu0 0.0
        %2704 = vmatpush1.xpose.msra.mxu0 0.0
        %2705 = vmatprep.subr.mxu0 0.0
        %2706 = vmatpush1.xpose.msra.mxu0 0.0
        %2707 = vmatprep.subr.mxu0 0.0
        %2708 = vmatpush1.xpose.msra.mxu0 0.0
        %2709 = vmatprep.subr.mxu0 0.0
        %2710 = vmatpush1.xpose.msra.mxu0 0.0
        %2711 = vmatprep.subr.mxu0 0.0
        %2712 = vmatpush1.xpose.msra.mxu0 0.0
        %2713 = vmatprep.subr.mxu0 0.0
        %2714 = vmatpush1.xpose.msra.mxu0 0.0
        %2715 = vmatprep.subr.mxu0 0.0
        %2716 = vmatpush1.xpose.msra.mxu0 0.0
        %2717 = vmatprep.subr.mxu0 0.0
        %2718 = vmatpush1.xpose.msra.mxu0 0.0
        %2719 = vmatprep.subr.mxu0 0.0
        %2720 = vmatpush1.xpose.msra.mxu0 0.0
        %2721 = vmatprep.subr.mxu0 0.0
        %2722 = vmatpush1.xpose.msra.mxu0 0.0
        %2723 = vmatprep.subr.mxu0 0.0
        %2724 = vmatpush1.xpose.msra.mxu0 0.0
        %2725 = vmatprep.subr.mxu0 0.0
        %2726 = vmatpush1.xpose.msra.mxu0 0.0
        %2727 = vmatprep.subr.mxu0 0.0
        %2728 = vmatpush1.xpose.msra.mxu0 0.0
        %2729 = vmatprep.subr.mxu0 0.0
        %2730 = vmatpush1.xpose.msra.mxu0 0.0
        %2731 = vmatprep.subr.mxu0 0.0
        %2732 = vmatpush1.xpose.msra.mxu0 0.0
        %2733 = vmatprep.subr.mxu0 0.0
        %2734 = vmatpush1.xpose.msra.mxu0 0.0
        %2735 = vmatprep.subr.mxu0 0.0
        %2736 = vmatpush1.xpose.msra.mxu0 0.0
        %2737 = vmatprep.subr.mxu0 0.0
        %2738 = vmatpush1.xpose.msra.mxu0 0.0
        %2739 = vmatprep.subr.mxu0 0.0
        %2740 = vmatpush1.xpose.msra.mxu0 0.0
        %2741 = vmatprep.subr.mxu0 0.0
        %2742 = vmatpush1.xpose.msra.mxu0 0.0
        %2743 = vmatprep.subr.mxu0 0.0
        %2744 = vmatpush1.xpose.msra.mxu0 0.0
        %2745 = vmatprep.subr.mxu0 0.0
        %2746 = vmatpush1.xpose.msra.mxu0 0.0
        %2747 = vmatprep.subr.mxu0 0.0
        %2748 = vmatpush1.xpose.msra.mxu0 0.0
        %2749 = vmatprep.subr.mxu0 0.0
        %2750 = vmatpush1.xpose.msra.mxu0 0.0
        %2751 = vmatprep.subr.mxu0 0.0
        %2752 = vmatpush1.xpose.msra.mxu0 0.0
        %2753 = vmatprep.subr.mxu0 0.0
        %2754 = vmatpush1.xpose.msra.mxu0 0.0
        %2755 = vmatprep.subr.mxu0 0.0
        %2756 = vmatpush1.xpose.msra.mxu0 0.0
        %2757 = vmatprep.mubr.f32.mxu0 0.0
        %2758 = vmatmul.mubr.f32.gmra.mrb[0].mxu0 %v2685
        %v2759 = vpop.f32.mrb[0].mxu0
        %v2760 = vadd.f32 0.0, %v2759
        %v2761 = vpop.f32.mrb[0].mxu0
        %2762 = vmatprep.mubr.f32.mxu0 0.0
        %2763 = vmatmul.mubr.f32.gmra.mrb[0].mxu0 %v2687
        %v2764 = vpop.f32.mrb[0].mxu0
        %v2765 = vadd.f32 0.0, %v2764
        %v2766 = vpop.f32.mrb[0].mxu0
        %2767 = vdwg.mxu0
        %v2768 = vmul.f32 %v2760, 0.35355338
        %v2769 = vmul.f32 %v2765, 0.35355338
        %v2770 = vadd.f32 %v2768, %v695
        %v2771 = vadd.f32 %v2769, %v695
        %v2772 = vsel %vm701, %v2770, -inf
        %2773 = vmax.xlane.f32.xlu0 %v2772
        %v2774 = vpop.xlane.xlu0 %2773
        %v2775 = vsel %vm701, %v2771, -inf
        %2776 = vmax.xlane.f32.xlu0 %v2775
        %v2777 = vpop.xlane.xlu0 %2776
        %v2778 = vsub.f32 %v2770, %v2774
        %v2779 = vsub.f32 %v2771, %v2777
        %v2780 = vmul.f32 %v2778, 1.442695
        %v2781 = vpow.pop %v2780
        %v2782 = vmul.f32 %v2779, 1.442695
        %v2783 = vpow.pop %v2782
        %v2784 = vsel %vm701, %v2781, 0.0
        %2785 = vadd.xlane.f32.xlu0 %v2784
        %v2786 = vpop.xlane.xlu0 %2785
        %v2787 = vsel %vm701, %v2783, 0.0
        %2788 = vadd.xlane.f32.xlu0 %v2787
        %v2789 = vpop.xlane.xlu0 %2788
        %v2790 = vrcp.pop %v2786
        %v2791 = vrcp.pop %v2789
        %v2792 = vmul.f32 %v2781, %v2790
        %v2793 = vmul.f32 %v2783, %v2791
        %2794 = vrot.lane.b32.xlu0 %v2251, 48
        %v2795 = vpop.permute.xlu0 %2794
        %2796 = vrot.lane.b32.xlu0 %v2256, 48
        %v2797 = vpop.permute.xlu0 %2796
        %v2801 = vsel %vm701, %v2792, 0
        %v2804 = vsel %vm701, %v2793, 0
        %2806 = vmatprep.subr.mxu0 0.0
        %2807 = vmatpush1.msra.mxu0 %v2795
        %2808 = vmatprep.subr.mxu0 0.0
        %2809 = vmatpush1.msra.mxu0 %v2797
        %2810 = vmatprep.subr.mxu0 0.0
        %2811 = vmatpush1.msra.mxu0 0.0
        %2812 = vmatprep.subr.mxu0 0.0
        %2813 = vmatpush1.msra.mxu0 0.0
        %2814 = vmatprep.subr.mxu0 0.0
        %2815 = vmatpush1.msra.mxu0 0.0
        %2816 = vmatprep.subr.mxu0 0.0
        %2817 = vmatpush1.msra.mxu0 0.0
        %2818 = vmatprep.subr.mxu0 0.0
        %2819 = vmatpush1.msra.mxu0 0.0
        %2820 = vmatprep.subr.mxu0 0.0
        %2821 = vmatpush1.msra.mxu0 0.0
        %2822 = vmatprep.subr.mxu0 0.0
        %2823 = vmatpush1.msra.mxu0 0.0
        %2824 = vmatprep.subr.mxu0 0.0
        %2825 = vmatpush1.msra.mxu0 0.0
        %2826 = vmatprep.subr.mxu0 0.0
        %2827 = vmatpush1.msra.mxu0 0.0
        %2828 = vmatprep.subr.mxu0 0.0
        %2829 = vmatpush1.msra.mxu0 0.0
        %2830 = vmatprep.subr.mxu0 0.0
        %2831 = vmatpush1.msra.mxu0 0.0
        %2832 = vmatprep.subr.mxu0 0.0
        %2833 = vmatpush1.msra.mxu0 0.0
        %2834 = vmatprep.subr.mxu0 0.0
        %2835 = vmatpush1.msra.mxu0 0.0
        %2836 = vmatprep.subr.mxu0 0.0
        %2837 = vmatpush1.msra.mxu0 0.0
        %2838 = vmatprep.subr.mxu0 0.0
        %2839 = vmatpush1.msra.mxu0 0.0
        %2840 = vmatprep.subr.mxu0 0.0
        %2841 = vmatpush1.msra.mxu0 0.0
        %2842 = vmatprep.subr.mxu0 0.0
        %2843 = vmatpush1.msra.mxu0 0.0
        %2844 = vmatprep.subr.mxu0 0.0
        %2845 = vmatpush1.msra.mxu0 0.0
        %2846 = vmatprep.subr.mxu0 0.0
        %2847 = vmatpush1.msra.mxu0 0.0
        %2848 = vmatprep.subr.mxu0 0.0
        %2849 = vmatpush1.msra.mxu0 0.0
        %2850 = vmatprep.subr.mxu0 0.0
        %2851 = vmatpush1.msra.mxu0 0.0
        %2852 = vmatprep.subr.mxu0 0.0
        %2853 = vmatpush1.msra.mxu0 0.0
        %2854 = vmatprep.subr.mxu0 0.0
        %2855 = vmatpush1.msra.mxu0 0.0
        %2856 = vmatprep.subr.mxu0 0.0
        %2857 = vmatpush1.msra.mxu0 0.0
        %2858 = vmatprep.subr.mxu0 0.0
        %2859 = vmatpush1.msra.mxu0 0.0
        %2860 = vmatprep.subr.mxu0 0.0
        %2861 = vmatpush1.msra.mxu0 0.0
        %2862 = vmatprep.subr.mxu0 0.0
        %2863 = vmatpush1.msra.mxu0 0.0
        %2864 = vmatprep.subr.mxu0 0.0
        %2865 = vmatpush1.msra.mxu0 0.0
        %2866 = vmatprep.subr.mxu0 0.0
        %2867 = vmatpush1.msra.mxu0 0.0
        %2868 = vmatprep.subr.mxu0 0.0
        %2869 = vmatpush1.msra.mxu0 0.0
        %2870 = vmatprep.mubr.f32.mxu0 0.0
        %2871 = vmatmul.mubr.f32.gmra.mrb[0].mxu0 %v2801
        %v2872 = vpop.f32.mrb[0].mxu0
        %v2873 = vadd.f32 0.0, %v2872
        %v2874 = vpop.f32.mrb[0].mxu0
        %2875 = vmatprep.mubr.f32.mxu0 0.0
        %2876 = vmatmul.mubr.f32.gmra.mrb[0].mxu0 %v2804
        %v2877 = vpop.f32.mrb[0].mxu0
        %v2878 = vadd.f32 0.0, %v2877
        %v2879 = vpop.f32.mrb[0].mxu0
        %2880 = vdwg.mxu0
        %2883 = vrot.lane.b32.xlu0 %v2873, 16
        %v2884 = vpop.permute.xlu0 %2883
        %2885 = vrot.lane.b32.xlu0 %v2878, 16
        %v2886 = vpop.permute.xlu0 %2885
        %2889 = vst.msk [vmem:[#allocation2] sm:$0xff] %vm1553, %v2884
        %2890 = vst.msk [vmem:[#allocation2 + $0x8] sm:$0xff] %vm1553, %v2886
        %2891 = vrot.lane.b32.xlu0 %v2251, 104
        %v2892 = vpop.permute.xlu0 %2891
        %2893 = vrot.lane.b32.xlu0 %v2256, 104
        %v2894 = vpop.permute.xlu0 %2893
        %2895 = vrot.lane.b32.xlu0 %v2251, 72
        %v2896 = vpop.permute.xlu0 %2895
        %2897 = vrot.lane.b32.xlu0 %v2256, 72
        %v2898 = vpop.permute.xlu0 %2897
        %v2899 = vsel %vm927, %v2892, 0
        %v2901 = vsel %vm927, %v2894, 0
        %v2903 = vsel %vm927, %v2896, 0
        %v2905 = vsel %vm927, %v2898, 0
        %2907 = vmatprep.subr.mxu0 0.0
        %2908 = vmatpush1.xpose.msra.mxu0 %v2903
        %2909 = vmatprep.subr.mxu0 0.0
        %2910 = vmatpush1.xpose.msra.mxu0 %v2905
        %2911 = vmatprep.subr.mxu0 0.0
        %2912 = vmatpush1.xpose.msra.mxu0 0.0
        %2913 = vmatprep.subr.mxu0 0.0
        %2914 = vmatpush1.xpose.msra.mxu0 0.0
        %2915 = vmatprep.subr.mxu0 0.0
        %2916 = vmatpush1.xpose.msra.mxu0 0.0
        %2917 = vmatprep.subr.mxu0 0.0
        %2918 = vmatpush1.xpose.msra.mxu0 0.0
        %2919 = vmatprep.subr.mxu0 0.0
        %2920 = vmatpush1.xpose.msra.mxu0 0.0
        %2921 = vmatprep.subr.mxu0 0.0
        %2922 = vmatpush1.xpose.msra.mxu0 0.0
        %2923 = vmatprep.subr.mxu0 0.0
        %2924 = vmatpush1.xpose.msra.mxu0 0.0
        %2925 = vmatprep.subr.mxu0 0.0
        %2926 = vmatpush1.xpose.msra.mxu0 0.0
        %2927 = vmatprep.subr.mxu0 0.0
        %2928 = vmatpush1.xpose.msra.mxu0 0.0
        %2929 = vmatprep.subr.mxu0 0.0
        %2930 = vmatpush1.xpose.msra.mxu0 0.0
        %2931 = vmatprep.subr.mxu0 0.0
        %2932 = vmatpush1.xpose.msra.mxu0 0.0
        %2933 = vmatprep.subr.mxu0 0.0
        %2934 = vmatpush1.xpose.msra.mxu0 0.0
        %2935 = vmatprep.subr.mxu0 0.0
        %2936 = vmatpush1.xpose.msra.mxu0 0.0
        %2937 = vmatprep.subr.mxu0 0.0
        %2938 = vmatpush1.xpose.msra.mxu0 0.0
        %2939 = vmatprep.subr.mxu0 0.0
        %2940 = vmatpush1.xpose.msra.mxu0 0.0
        %2941 = vmatprep.subr.mxu0 0.0
        %2942 = vmatpush1.xpose.msra.mxu0 0.0
        %2943 = vmatprep.subr.mxu0 0.0
        %2944 = vmatpush1.xpose.msra.mxu0 0.0
        %2945 = vmatprep.subr.mxu0 0.0
        %2946 = vmatpush1.xpose.msra.mxu0 0.0
        %2947 = vmatprep.subr.mxu0 0.0
        %2948 = vmatpush1.xpose.msra.mxu0 0.0
        %2949 = vmatprep.subr.mxu0 0.0
        %2950 = vmatpush1.xpose.msra.mxu0 0.0
        %2951 = vmatprep.subr.mxu0 0.0
        %2952 = vmatpush1.xpose.msra.mxu0 0.0
        %2953 = vmatprep.subr.mxu0 0.0
        %2954 = vmatpush1.xpose.msra.mxu0 0.0
        %2955 = vmatprep.subr.mxu0 0.0
        %2956 = vmatpush1.xpose.msra.mxu0 0.0
        %2957 = vmatprep.subr.mxu0 0.0
        %2958 = vmatpush1.xpose.msra.mxu0 0.0
        %2959 = vmatprep.subr.mxu0 0.0
        %2960 = vmatpush1.xpose.msra.mxu0 0.0
        %2961 = vmatprep.subr.mxu0 0.0
        %2962 = vmatpush1.xpose.msra.mxu0 0.0
        %2963 = vmatprep.subr.mxu0 0.0
        %2964 = vmatpush1.xpose.msra.mxu0 0.0
        %2965 = vmatprep.subr.mxu0 0.0
        %2966 = vmatpush1.xpose.msra.mxu0 0.0
        %2967 = vmatprep.subr.mxu0 0.0
        %2968 = vmatpush1.xpose.msra.mxu0 0.0
        %2969 = vmatprep.subr.mxu0 0.0
        %2970 = vmatpush1.xpose.msra.mxu0 0.0
        %2971 = vmatprep.mubr.f32.mxu0 0.0
        %2972 = vmatmul.mubr.f32.gmra.mrb[0].mxu0 %v2899
        %v2973 = vpop.f32.mrb[0].mxu0
        %v2974 = vadd.f32 0.0, %v2973
        %v2975 = vpop.f32.mrb[0].mxu0
        %2976 = vmatprep.mubr.f32.mxu0 0.0
        %2977 = vmatmul.mubr.f32.gmra.mrb[0].mxu0 %v2901
        %v2978 = vpop.f32.mrb[0].mxu0
        %v2979 = vadd.f32 0.0, %v2978
        %v2980 = vpop.f32.mrb[0].mxu0
        %2981 = vdwg.mxu0
        %v2982 = vmul.f32 %v2974, 0.35355338
        %v2983 = vmul.f32 %v2979, 0.35355338
        %v2984 = vadd.f32 %v2982, %v695
        %v2985 = vadd.f32 %v2983, %v695
        %v2986 = vsel %vm701, %v2984, -inf
        %2987 = vmax.xlane.f32.xlu0 %v2986
        %v2988 = vpop.xlane.xlu0 %2987
        %v2989 = vsel %vm701, %v2985, -inf
        %2990 = vmax.xlane.f32.xlu0 %v2989
        %v2991 = vpop.xlane.xlu0 %2990
        %v2992 = vsub.f32 %v2984, %v2988
        %v2993 = vsub.f32 %v2985, %v2991
        %v2994 = vmul.f32 %v2992, 1.442695
        %v2995 = vpow.pop %v2994
        %v2996 = vmul.f32 %v2993, 1.442695
        %v2997 = vpow.pop %v2996
        %v2998 = vsel %vm701, %v2995, 0.0
        %2999 = vadd.xlane.f32.xlu0 %v2998
        %v3000 = vpop.xlane.xlu0 %2999
        %v3001 = vsel %vm701, %v2997, 0.0
        %3002 = vadd.xlane.f32.xlu0 %v3001
        %v3003 = vpop.xlane.xlu0 %3002
        %v3004 = vrcp.pop %v3000
        %v3005 = vrcp.pop %v3003
        %v3006 = vmul.f32 %v2995, %v3004
        %v3007 = vmul.f32 %v2997, %v3005
        %3008 = vrot.lane.b32.xlu0 %v2251, 40
        %v3009 = vpop.permute.xlu0 %3008
        %3010 = vrot.lane.b32.xlu0 %v2256, 40
        %v3011 = vpop.permute.xlu0 %3010
        %v3015 = vsel %vm701, %v3006, 0
        %v3018 = vsel %vm701, %v3007, 0
        %3020 = vmatprep.subr.mxu0 0.0
        %3021 = vmatpush1.msra.mxu0 %v3009
        %3022 = vmatprep.subr.mxu0 0.0
        %3023 = vmatpush1.msra.mxu0 %v3011
        %3024 = vmatprep.subr.mxu0 0.0
        %3025 = vmatpush1.msra.mxu0 0.0
        %3026 = vmatprep.subr.mxu0 0.0
        %3027 = vmatpush1.msra.mxu0 0.0
        %3028 = vmatprep.subr.mxu0 0.0
        %3029 = vmatpush1.msra.mxu0 0.0
        %3030 = vmatprep.subr.mxu0 0.0
        %3031 = vmatpush1.msra.mxu0 0.0
        %3032 = vmatprep.subr.mxu0 0.0
        %3033 = vmatpush1.msra.mxu0 0.0
        %3034 = vmatprep.subr.mxu0 0.0
        %3035 = vmatpush1.msra.mxu0 0.0
        %3036 = vmatprep.subr.mxu0 0.0
        %3037 = vmatpush1.msra.mxu0 0.0
        %3038 = vmatprep.subr.mxu0 0.0
        %3039 = vmatpush1.msra.mxu0 0.0
        %3040 = vmatprep.subr.mxu0 0.0
        %3041 = vmatpush1.msra.mxu0 0.0
        %3042 = vmatprep.subr.mxu0 0.0
        %3043 = vmatpush1.msra.mxu0 0.0
        %3044 = vmatprep.subr.mxu0 0.0
        %3045 = vmatpush1.msra.mxu0 0.0
        %3046 = vmatprep.subr.mxu0 0.0
        %3047 = vmatpush1.msra.mxu0 0.0
        %3048 = vmatprep.subr.mxu0 0.0
        %3049 = vmatpush1.msra.mxu0 0.0
        %3050 = vmatprep.subr.mxu0 0.0
        %3051 = vmatpush1.msra.mxu0 0.0
        %3052 = vmatprep.subr.mxu0 0.0
        %3053 = vmatpush1.msra.mxu0 0.0
        %3054 = vmatprep.subr.mxu0 0.0
        %3055 = vmatpush1.msra.mxu0 0.0
        %3056 = vmatprep.subr.mxu0 0.0
        %3057 = vmatpush1.msra.mxu0 0.0
        %3058 = vmatprep.subr.mxu0 0.0
        %3059 = vmatpush1.msra.mxu0 0.0
        %3060 = vmatprep.subr.mxu0 0.0
        %3061 = vmatpush1.msra.mxu0 0.0
        %3062 = vmatprep.subr.mxu0 0.0
        %3063 = vmatpush1.msra.mxu0 0.0
        %3064 = vmatprep.subr.mxu0 0.0
        %3065 = vmatpush1.msra.mxu0 0.0
        %3066 = vmatprep.subr.mxu0 0.0
        %3067 = vmatpush1.msra.mxu0 0.0
        %3068 = vmatprep.subr.mxu0 0.0
        %3069 = vmatpush1.msra.mxu0 0.0
        %3070 = vmatprep.subr.mxu0 0.0
        %3071 = vmatpush1.msra.mxu0 0.0
        %3072 = vmatprep.subr.mxu0 0.0
        %3073 = vmatpush1.msra.mxu0 0.0
        %3074 = vmatprep.subr.mxu0 0.0
        %3075 = vmatpush1.msra.mxu0 0.0
        %3076 = vmatprep.subr.mxu0 0.0
        %3077 = vmatpush1.msra.mxu0 0.0
        %3078 = vmatprep.subr.mxu0 0.0
        %3079 = vmatpush1.msra.mxu0 0.0
        %3080 = vmatprep.subr.mxu0 0.0
        %3081 = vmatpush1.msra.mxu0 0.0
        %3082 = vmatprep.subr.mxu0 0.0
        %3083 = vmatpush1.msra.mxu0 0.0
        %3084 = vmatprep.mubr.f32.mxu0 0.0
        %3085 = vmatmul.mubr.f32.gmra.mrb[0].mxu0 %v3015
        %v3086 = vpop.f32.mrb[0].mxu0
        %v3087 = vadd.f32 0.0, %v3086
        %v3088 = vpop.f32.mrb[0].mxu0
        %3089 = vmatprep.mubr.f32.mxu0 0.0
        %3090 = vmatmul.mubr.f32.gmra.mrb[0].mxu0 %v3018
        %v3091 = vpop.f32.mrb[0].mxu0
        %v3092 = vadd.f32 0.0, %v3091
        %v3093 = vpop.f32.mrb[0].mxu0
        %3094 = vdwg.mxu0
        %3097 = vrot.lane.b32.xlu0 %v3087, 24
        %v3098 = vpop.permute.xlu0 %3097
        %3099 = vrot.lane.b32.xlu0 %v3092, 24
        %v3100 = vpop.permute.xlu0 %3099
        %3103 = vst.msk [vmem:[#allocation2] sm:$0xff] %vm1768, %v3098
        %3104 = vst.msk [vmem:[#allocation2 + $0x8] sm:$0xff] %vm1768, %v3100
        %v3105 = vld [vmem:[#allocation2] sm:$0xff]
        %v3106 = vld [vmem:[#allocation2 + $0x8] sm:$0xff]
        %s3107 = scalar_lea.vmem %s8, 32
        %v3108 = vld [vmem:[%s3107] sm:$0xff]
        %v3109 = vld [vmem:[%s3107 + $0x8] sm:$0xff]
        %v3110 = vld [vmem:[%s3107 + $0x10] sm:$0xff]
        %v3111 = vld [vmem:[%s3107 + $0x18] sm:$0xff]
        %s3112 = scalar_lea.vmem %s9, 1
        %v3113 = vld [vmem:[%s3112] sm:$0x1]
        %v3115 = vlaneseq
        %v3116 = vshrl.u32 %v3115, 7
        %v3117 = vsub.s32 0, %v3116
        %v3118 = vrot.slane %v3113, %v3117
        %v3121 = vsel %vm785, %v3105, 0
        %v3124 = vsel %vm785, %v3106, 0
        %3126 = vmatprep.subr.mxu0 0.0
        %3127 = vmatpush1.msra.mxu0 %v3108
        %3128 = vmatprep.subr.mxu0 0.0
        %3129 = vmatpush1.msra.mxu0 %v3109
        %3130 = vmatprep.subr.mxu0 0.0
        %3131 = vmatpush1.msra.mxu0 %v3110
        %3132 = vmatprep.subr.mxu0 0.0
        %3133 = vmatpush1.msra.mxu0 %v3111
        %3134 = vmatprep.subr.mxu0 0.0
        %3135 = vmatpush1.msra.mxu0 0.0
        %3136 = vmatprep.subr.mxu0 0.0
        %3137 = vmatpush1.msra.mxu0 0.0
        %3138 = vmatprep.subr.mxu0 0.0
        %3139 = vmatpush1.msra.mxu0 0.0
        %3140 = vmatprep.subr.mxu0 0.0
        %3141 = vmatpush1.msra.mxu0 0.0
        %3142 = vmatprep.subr.mxu0 0.0
        %3143 = vmatpush1.msra.mxu0 0.0
        %3144 = vmatprep.subr.mxu0 0.0
        %3145 = vmatpush1.msra.mxu0 0.0
        %3146 = vmatprep.subr.mxu0 0.0
        %3147 = vmatpush1.msra.mxu0 0.0
        %3148 = vmatprep.subr.mxu0 0.0
        %3149 = vmatpush1.msra.mxu0 0.0
        %3150 = vmatprep.subr.mxu0 0.0
        %3151 = vmatpush1.msra.mxu0 0.0
        %3152 = vmatprep.subr.mxu0 0.0
        %3153 = vmatpush1.msra.mxu0 0.0
        %3154 = vmatprep.subr.mxu0 0.0
        %3155 = vmatpush1.msra.mxu0 0.0
        %3156 = vmatprep.subr.mxu0 0.0
        %3157 = vmatpush1.msra.mxu0 0.0
        %3158 = vmatprep.subr.mxu0 0.0
        %3159 = vmatpush1.msra.mxu0 0.0
        %3160 = vmatprep.subr.mxu0 0.0
        %3161 = vmatpush1.msra.mxu0 0.0
        %3162 = vmatprep.subr.mxu0 0.0
        %3163 = vmatpush1.msra.mxu0 0.0
        %3164 = vmatprep.subr.mxu0 0.0
        %3165 = vmatpush1.msra.mxu0 0.0
        %3166 = vmatprep.subr.mxu0 0.0
        %3167 = vmatpush1.msra.mxu0 0.0
        %3168 = vmatprep.subr.mxu0 0.0
        %3169 = vmatpush1.msra.mxu0 0.0
        %3170 = vmatprep.subr.mxu0 0.0
        %3171 = vmatpush1.msra.mxu0 0.0
        %3172 = vmatprep.subr.mxu0 0.0
        %3173 = vmatpush1.msra.mxu0 0.0
        %3174 = vmatprep.subr.mxu0 0.0
        %3175 = vmatpush1.msra.mxu0 0.0
        %3176 = vmatprep.subr.mxu0 0.0
        %3177 = vmatpush1.msra.mxu0 0.0
        %3178 = vmatprep.subr.mxu0 0.0
        %3179 = vmatpush1.msra.mxu0 0.0
        %3180 = vmatprep.subr.mxu0 0.0
        %3181 = vmatpush1.msra.mxu0 0.0
        %3182 = vmatprep.subr.mxu0 0.0
        %3183 = vmatpush1.msra.mxu0 0.0
        %3184 = vmatprep.subr.mxu0 0.0
        %3185 = vmatpush1.msra.mxu0 0.0
        %3186 = vmatprep.subr.mxu0 0.0
        %3187 = vmatpush1.msra.mxu0 0.0
        %3188 = vmatprep.subr.mxu0 0.0
        %3189 = vmatpush1.msra.mxu0 0.0
        %3190 = vmatprep.mubr.f32.mxu0 0.0
        %3191 = vmatmul.mubr.f32.gmra.mrb[0].mxu0 %v3121
        %v3192 = vpop.f32.mrb[0].mxu0
        %v3193 = vadd.f32 %v3118, %v3192
        %v3194 = vpop.f32.mrb[0].mxu0
        %3195 = vmatprep.mubr.f32.mxu0 0.0
        %3196 = vmatmul.mubr.f32.gmra.mrb[0].mxu0 %v3124
        %v3197 = vpop.f32.mrb[0].mxu0
        %v3198 = vadd.f32 %v3118, %v3197
        %v3199 = vpop.f32.mrb[0].mxu0
        %3200 = vdwg.mxu0
        %v3201 = vadd.f32 %v3193, %v2163
        %v3202 = vadd.f32 %v3198, %v2164
        %s3203 = scalar_lea.vmem %s10, 1
        %v3204 = vld [vmem:[%s3203] sm:$0x1]
        %s3205 = scalar_lea.vmem %s11, 1
        %v3206 = vld [vmem:[%s3205] sm:$0x1]
        %v3207 = vsel %vm785, %v3201, 0.0
        %3208 = vadd.xlane.f32.xlu0 %v3207
        %v3209 = vpop.xlane.xlu0 %3208
        %v3210 = vsel %vm785, %v3202, 0.0
        %3211 = vadd.xlane.f32.xlu0 %v3210
        %v3212 = vpop.xlane.xlu0 %3211
        %v3213 = vmul.f32 %v3209, %v792
        %v3214 = vmul.f32 %v3212, %v792
        %v3215 = vsub.f32 %v3201, %v3213
        %v3216 = vsub.f32 %v3202, %v3214
        %v3217 = vmul.f32 %v3215, %v3215
        %v3218 = vmul.f32 %v3216, %v3216
        %v3219 = vsel %vm785, %v3217, 0.0
        %3220 = vadd.xlane.f32.xlu0 %v3219
        %v3221 = vpop.xlane.xlu0 %3220
        %v3222 = vsel %vm785, %v3218, 0.0
        %3223 = vadd.xlane.f32.xlu0 %v3222
        %v3224 = vpop.xlane.xlu0 %3223
        %v3225 = vmul.f32 %v3221, %v792
        %v3226 = vmul.f32 %v3224, %v792
        %v3227 = vadd.f32 %v3225, 1e-12
        %v3228 = vadd.f32 %v3226, 1e-12
        %v3229 = vrsqrt.pop %v3227
        %v3230 = vrsqrt.pop %v3228
        %v3231 = vmul.f32 %v3215, %v3229
        %v3232 = vmul.f32 %v3216, %v3230
        %v3234 = vlaneseq
        %v3235 = vshrl.u32 %v3234, 7
        %v3236 = vsub.s32 0, %v3235
        %v3237 = vrot.slane %v3204, %v3236
        %v3239 = vmul.f32 %v3231, %v3237
        %v3240 = vmul.f32 %v3232, %v3237
        %v3242 = vlaneseq
        %v3243 = vshrl.u32 %v3242, 7
        %v3244 = vsub.s32 0, %v3243
        %v3245 = vrot.slane %v3206, %v3244
        %v3247 = vadd.f32 %v3239, %v3245
        %v3248 = vadd.f32 %v3240, %v3245
        %s3249 = scalar_lea.vmem %s12, 32
        %v3250 = vld [vmem:[%s3249] sm:$0xff]
        %v3251 = vld [vmem:[%s3249 + $0x8] sm:$0xff]
        %v3252 = vld [vmem:[%s3249 + $0x10] sm:$0xff]
        %v3253 = vld [vmem:[%s3249 + $0x18] sm:$0xff]
        %s3254 = scalar_lea.vmem %s13, 1
        %v3255 = vld [vmem:[%s3254] sm:$0x1]
        %v3257 = vlaneseq
        %v3258 = vshrl.u32 %v3257, 7
        %v3259 = vsub.s32 0, %v3258
        %v3260 = vrot.slane %v3255, %v3259
        %v3263 = vsel %vm785, %v3247, 0
        %v3266 = vsel %vm785, %v3248, 0
        %3268 = vmatprep.subr.mxu0 0.0
        %3269 = vmatpush1.msra.mxu0 %v3250
        %3270 = vmatprep.subr.mxu0 0.0
        %3271 = vmatpush1.msra.mxu0 %v3251
        %3272 = vmatprep.subr.mxu0 0.0
        %3273 = vmatpush1.msra.mxu0 %v3252
        %3274 = vmatprep.subr.mxu0 0.0
        %3275 = vmatpush1.msra.mxu0 %v3253
        %3276 = vmatprep.subr.mxu0 0.0
        %3277 = vmatpush1.msra.mxu0 0.0
        %3278 = vmatprep.subr.mxu0 0.0
        %3279 = vmatpush1.msra.mxu0 0.0
        %3280 = vmatprep.subr.mxu0 0.0
        %3281 = vmatpush1.msra.mxu0 0.0
        %3282 = vmatprep.subr.mxu0 0.0
        %3283 = vmatpush1.msra.mxu0 0.0
        %3284 = vmatprep.subr.mxu0 0.0
        %3285 = vmatpush1.msra.mxu0 0.0
        %3286 = vmatprep.subr.mxu0 0.0
        %3287 = vmatpush1.msra.mxu0 0.0
        %3288 = vmatprep.subr.mxu0 0.0
        %3289 = vmatpush1.msra.mxu0 0.0
        %3290 = vmatprep.subr.mxu0 0.0
        %3291 = vmatpush1.msra.mxu0 0.0
        %3292 = vmatprep.subr.mxu0 0.0
        %3293 = vmatpush1.msra.mxu0 0.0
        %3294 = vmatprep.subr.mxu0 0.0
        %3295 = vmatpush1.msra.mxu0 0.0
        %3296 = vmatprep.subr.mxu0 0.0
        %3297 = vmatpush1.msra.mxu0 0.0
        %3298 = vmatprep.subr.mxu0 0.0
        %3299 = vmatpush1.msra.mxu0 0.0
        %3300 = vmatprep.subr.mxu0 0.0
        %3301 = vmatpush1.msra.mxu0 0.0
        %3302 = vmatprep.subr.mxu0 0.0
        %3303 = vmatpush1.msra.mxu0 0.0
        %3304 = vmatprep.subr.mxu0 0.0
        %3305 = vmatpush1.msra.mxu0 0.0
        %3306 = vmatprep.subr.mxu0 0.0
        %3307 = vmatpush1.msra.mxu0 0.0
        %3308 = vmatprep.subr.mxu0 0.0
        %3309 = vmatpush1.msra.mxu0 0.0
        %3310 = vmatprep.subr.mxu0 0.0
        %3311 = vmatpush1.msra.mxu0 0.0
        %3312 = vmatprep.subr.mxu0 0.0
        %3313 = vmatpush1.msra.mxu0 0.0
        %3314 = vmatprep.subr.mxu0 0.0
        %3315 = vmatpush1.msra.mxu0 0.0
        %3316 = vmatprep.subr.mxu0 0.0
        %3317 = vmatpush1.msra.mxu0 0.0
        %3318 = vmatprep.subr.mxu0 0.0
        %3319 = vmatpush1.msra.mxu0 0.0
        %3320 = vmatprep.subr.mxu0 0.0
        %3321 = vmatpush1.msra.mxu0 0.0
        %3322 = vmatprep.subr.mxu0 0.0
        %3323 = vmatpush1.msra.mxu0 0.0
        %3324 = vmatprep.subr.mxu0 0.0
        %3325 = vmatpush1.msra.mxu0 0.0
        %3326 = vmatprep.subr.mxu0 0.0
        %3327 = vmatpush1.msra.mxu0 0.0
        %3328 = vmatprep.subr.mxu0 0.0
        %3329 = vmatpush1.msra.mxu0 0.0
        %3330 = vmatprep.subr.mxu0 0.0
        %3331 = vmatpush1.msra.mxu0 0.0
        %3332 = vmatprep.mubr.f32.mxu0 0.0
        %3333 = vmatmul.mubr.f32.gmra.mrb[0].mxu0 %v3263
        %v3334 = vpop.f32.mrb[0].mxu0
        %v3335 = vadd.f32 %v3260, %v3334
        %v3336 = vpop.f32.mrb[0].mxu0
        %3337 = vmatprep.mubr.f32.mxu0 0.0
        %3338 = vmatmul.mubr.f32.gmra.mrb[0].mxu0 %v3266
        %v3339 = vpop.f32.mrb[0].mxu0
        %v3340 = vadd.f32 %v3260, %v3339
        %v3341 = vpop.f32.mrb[0].mxu0
        %3342 = vdwg.mxu0
        %v3343 = vmul.f32 %v3335, %v3335
        %v3344 = vmul.f32 %v3340, %v3340
        %v3345 = vmul.f32 %v3335, %v3343
        %v3346 = vmul.f32 %v3340, %v3344
        %v3347 = vmul.f32 %v3345, 0.044715
        %v3348 = vmul.f32 %v3346, 0.044715
        %v3349 = vadd.f32 %v3335, %v3347
        %v3350 = vadd.f32 %v3340, %v3348
        %v3351 = vmul.f32 %v3349, 0.7978846
        %v3352 = vmul.f32 %v3350, 0.7978846
        %v3353 = vtanh.pop %v3351
        %v3354 = vtanh.pop %v3352
        %v3355 = vadd.f32 %v3353, 1.0
        %v3356 = vadd.f32 %v3354, 1.0
        %v3357 = vmul.f32 %v3355, 0.5
        %v3358 = vmul.f32 %v3356, 0.5
        %v3359 = vmul.f32 %v3335, %v3357
        %v3360 = vmul.f32 %v3340, %v3358
        %s3361 = scalar_lea.vmem %s14, 128
        %v3362 = vld [vmem:[%s3361] sm:$0xff]
        %v3363 = vld [vmem:[%s3361 + $0x8] sm:$0xff]
        %v3364 = vld [vmem:[%s3361 + $0x10] sm:$0xff]
        %v3365 = vld [vmem:[%s3361 + $0x18] sm:$0xff]
        %v3366 = vld [vmem:[%s3361 + $0x20] sm:$0xff]
        %v3367 = vld [vmem:[%s3361 + $0x28] sm:$0xff]
        %v3368 = vld [vmem:[%s3361 + $0x30] sm:$0xff]
        %v3369 = vld [vmem:[%s3361 + $0x38] sm:$0xff]
        %v3370 = vld [vmem:[%s3361 + $0x40] sm:$0xff]
        %v3371 = vld [vmem:[%s3361 + $0x48] sm:$0xff]
        %v3372 = vld [vmem:[%s3361 + $0x50] sm:$0xff]
        %v3373 = vld [vmem:[%s3361 + $0x58] sm:$0xff]
        %v3374 = vld [vmem:[%s3361 + $0x60] sm:$0xff]
        %v3375 = vld [vmem:[%s3361 + $0x68] sm:$0xff]
        %v3376 = vld [vmem:[%s3361 + $0x70] sm:$0xff]
        %v3377 = vld [vmem:[%s3361 + $0x78] sm:$0xff]
        %s3378 = scalar_lea.vmem %s15, 1
        %v3379 = vld [vmem:[%s3378] sm:$0x1]
        %v3381 = vlaneseq
        %v3382 = vshrl.u32 %v3381, 7
        %v3383 = vsub.s32 0, %v3382
        %v3384 = vrot.slane %v3379, %v3383
        %3386 = vmatprep.subr.mxu0 0.0
        %3387 = vmatpush1.msra.mxu0 %v3362
        %3388 = vmatprep.subr.mxu0 0.0
        %3389 = vmatpush1.msra.mxu0 %v3363
        %3390 = vmatprep.subr.mxu0 0.0
        %3391 = vmatpush1.msra.mxu0 %v3364
        %3392 = vmatprep.subr.mxu0 0.0
        %3393 = vmatpush1.msra.mxu0 %v3365
        %3394 = vmatprep.subr.mxu0 0.0
        %3395 = vmatpush1.msra.mxu0 %v3366
        %3396 = vmatprep.subr.mxu0 0.0
        %3397 = vmatpush1.msra.mxu0 %v3367
        %3398 = vmatprep.subr.mxu0 0.0
        %3399 = vmatpush1.msra.mxu0 %v3368
        %3400 = vmatprep.subr.mxu0 0.0
        %3401 = vmatpush1.msra.mxu0 %v3369
        %3402 = vmatprep.subr.mxu0 0.0
        %3403 = vmatpush1.msra.mxu0 %v3370
        %3404 = vmatprep.subr.mxu0 0.0
        %3405 = vmatpush1.msra.mxu0 %v3371
        %3406 = vmatprep.subr.mxu0 0.0
        %3407 = vmatpush1.msra.mxu0 %v3372
        %3408 = vmatprep.subr.mxu0 0.0
        %3409 = vmatpush1.msra.mxu0 %v3373
        %3410 = vmatprep.subr.mxu0 0.0
        %3411 = vmatpush1.msra.mxu0 %v3374
        %3412 = vmatprep.subr.mxu0 0.0
        %3413 = vmatpush1.msra.mxu0 %v3375
        %3414 = vmatprep.subr.mxu0 0.0
        %3415 = vmatpush1.msra.mxu0 %v3376
        %3416 = vmatprep.subr.mxu0 0.0
        %3417 = vmatpush1.msra.mxu0 %v3377
        %3418 = vmatprep.subr.mxu0 0.0
        %3419 = vmatpush1.msra.mxu0 0.0
        %3420 = vmatprep.subr.mxu0 0.0
        %3421 = vmatpush1.msra.mxu0 0.0
        %3422 = vmatprep.subr.mxu0 0.0
        %3423 = vmatpush1.msra.mxu0 0.0
        %3424 = vmatprep.subr.mxu0 0.0
        %3425 = vmatpush1.msra.mxu0 0.0
        %3426 = vmatprep.subr.mxu0 0.0
        %3427 = vmatpush1.msra.mxu0 0.0
        %3428 = vmatprep.subr.mxu0 0.0
        %3429 = vmatpush1.msra.mxu0 0.0
        %3430 = vmatprep.subr.mxu0 0.0
        %3431 = vmatpush1.msra.mxu0 0.0
        %3432 = vmatprep.subr.mxu0 0.0
        %3433 = vmatpush1.msra.mxu0 0.0
        %3434 = vmatprep.subr.mxu0 0.0
        %3435 = vmatpush1.msra.mxu0 0.0
        %3436 = vmatprep.subr.mxu0 0.0
        %3437 = vmatpush1.msra.mxu0 0.0
        %3438 = vmatprep.subr.mxu0 0.0
        %3439 = vmatpush1.msra.mxu0 0.0
        %3440 = vmatprep.subr.mxu0 0.0
        %3441 = vmatpush1.msra.mxu0 0.0
        %3442 = vmatprep.subr.mxu0 0.0
        %3443 = vmatpush1.msra.mxu0 0.0
        %3444 = vmatprep.subr.mxu0 0.0
        %3445 = vmatpush1.msra.mxu0 0.0
        %3446 = vmatprep.subr.mxu0 0.0
        %3447 = vmatpush1.msra.mxu0 0.0
        %3448 = vmatprep.subr.mxu0 0.0
        %3449 = vmatpush1.msra.mxu0 0.0
        %3450 = vmatprep.mubr.f32.mxu0 0.0
        %3451 = vmatmul.mubr.f32.gmra.mrb[0].mxu0 %v3359
        %v3452 = vpop.f32.mrb[0].mxu0
        %v3453 = vadd.f32 %v3384, %v3452
        %v3454 = vpop.f32.mrb[0].mxu0
        %3455 = vmatprep.mubr.f32.mxu0 0.0
        %3456 = vmatmul.mubr.f32.gmra.mrb[0].mxu0 %v3360
        %v3457 = vpop.f32.mrb[0].mxu0
        %v3458 = vadd.f32 %v3384, %v3457
        %v3459 = vpop.f32.mrb[0].mxu0
        %3460 = vdwg.mxu0
        %v3461 = vadd.f32 %v3453, %v3247
        %v3462 = vadd.f32 %v3458, %v3248
        %s3463 = scalar_lea.vmem %s16, 1
        %v3464 = vld [vmem:[%s3463] sm:$0x1]
        %s3465 = scalar_lea.vmem %s17, 1
        %v3466 = vld [vmem:[%s3465] sm:$0x1]
        %v3467 = vsel %vm785, %v3461, 0.0
        %3468 = vadd.xlane.f32.xlu0 %v3467
        %v3469 = vpop.xlane.xlu0 %3468
        %v3470 = vsel %vm785, %v3462, 0.0
        %3471 = vadd.xlane.f32.xlu0 %v3470
        %v3472 = vpop.xlane.xlu0 %3471
        %v3473 = vmul.f32 %v3469, %v792
        %v3474 = vmul.f32 %v3472, %v792
        %v3475 = vsub.f32 %v3461, %v3473
        %v3476 = vsub.f32 %v3462, %v3474
        %v3477 = vmul.f32 %v3475, %v3475
        %v3478 = vmul.f32 %v3476, %v3476
        %v3479 = vsel %vm785, %v3477, 0.0
        %3480 = vadd.xlane.f32.xlu0 %v3479
        %v3481 = vpop.xlane.xlu0 %3480
        %v3482 = vsel %vm785, %v3478, 0.0
        %3483 = vadd.xlane.f32.xlu0 %v3482
        %v3484 = vpop.xlane.xlu0 %3483
        %v3485 = vmul.f32 %v3481, %v792
        %v3486 = vmul.f32 %v3484, %v792
        %v3487 = vadd.f32 %v3485, 1e-12
        %v3488 = vadd.f32 %v3486, 1e-12
        %v3489 = vrsqrt.pop %v3487
        %v3490 = vrsqrt.pop %v3488
        %v3491 = vmul.f32 %v3475, %v3489
        %v3492 = vmul.f32 %v3476, %v3490
        %v3494 = vlaneseq
        %v3495 = vshrl.u32 %v3494, 7
        %v3496 = vsub.s32 0, %v3495
        %v3497 = vrot.slane %v3464, %v3496
        %v3499 = vmul.f32 %v3491, %v3497
        %v3500 = vmul.f32 %v3492, %v3497
        %v3502 = vlaneseq
        %v3503 = vshrl.u32 %v3502, 7
        %v3504 = vsub.s32 0, %v3503
        %v3505 = vrot.slane %v3466, %v3504
        %v3507 = vadd.f32 %v3499, %v3505
        %v3508 = vadd.f32 %v3500, %v3505
        %v3509 = vld [vmem:[%s18] sm:$0xff]
        %v3510 = vld [vmem:[%s18 + $0x8] sm:$0xff]
        %v3511 = vld [vmem:[%s18 + $0x10] sm:$0xff]
        %v3512 = vld [vmem:[%s18 + $0x18] sm:$0xff]
        %v3513 = vld [vmem:[%s19] sm:$0x1]
        %v3515 = vlaneseq
        %v3516 = vshrl.u32 %v3515, 7
        %v3517 = vsub.s32 0, %v3516
        %v3518 = vrot.slane %v3513, %v3517
        %v3521 = vsel %vm785, %v3507, 0
        %v3524 = vsel %vm785, %v3508, 0
        %3526 = vmatprep.subr.mxu0 0.0
        %3527 = vmatpush1.msra.mxu0 %v3509
        %3528 = vmatprep.subr.mxu0 0.0
        %3529 = vmatpush1.msra.mxu0 %v3510
        %3530 = vmatprep.subr.mxu0 0.0
        %3531 = vmatpush1.msra.mxu0 %v3511
        %3532 = vmatprep.subr.mxu0 0.0
        %3533 = vmatpush1.msra.mxu0 %v3512
        %3534 = vmatprep.subr.mxu0 0.0
        %3535 = vmatpush1.msra.mxu0 0.0
        %3536 = vmatprep.subr.mxu0 0.0
        %3537 = vmatpush1.msra.mxu0 0.0
        %3538 = vmatprep.subr.mxu0 0.0
        %3539 = vmatpush1.msra.mxu0 0.0
        %3540 = vmatprep.subr.mxu0 0.0
        %3541 = vmatpush1.msra.mxu0 0.0
        %3542 = vmatprep.subr.mxu0 0.0
        %3543 = vmatpush1.msra.mxu0 0.0
        %3544 = vmatprep.subr.mxu0 0.0
        %3545 = vmatpush1.msra.mxu0 0.0
        %3546 = vmatprep.subr.mxu0 0.0
        %3547 = vmatpush1.msra.mxu0 0.0
        %3548 = vmatprep.subr.mxu0 0.0
        %3549 = vmatpush1.msra.mxu0 0.0
        %3550 = vmatprep.subr.mxu0 0.0
        %3551 = vmatpush1.msra.mxu0 0.0
        %3552 = vmatprep.subr.mxu0 0.0
        %3553 = vmatpush1.msra.mxu0 0.0
        %3554 = vmatprep.subr.mxu0 0.0
        %3555 = vmatpush1.msra.mxu0 0.0
        %3556 = vmatprep.subr.mxu0 0.0
        %3557 = vmatpush1.msra.mxu0 0.0
        %3558 = vmatprep.subr.mxu0 0.0
        %3559 = vmatpush1.msra.mxu0 0.0
        %3560 = vmatprep.subr.mxu0 0.0
        %3561 = vmatpush1.msra.mxu0 0.0
        %3562 = vmatprep.subr.mxu0 0.0
        %3563 = vmatpush1.msra.mxu0 0.0
        %3564 = vmatprep.subr.mxu0 0.0
        %3565 = vmatpush1.msra.mxu0 0.0
        %3566 = vmatprep.subr.mxu0 0.0
        %3567 = vmatpush1.msra.mxu0 0.0
        %3568 = vmatprep.subr.mxu0 0.0
        %3569 = vmatpush1.msra.mxu0 0.0
        %3570 = vmatprep.subr.mxu0 0.0
        %3571 = vmatpush1.msra.mxu0 0.0
        %3572 = vmatprep.subr.mxu0 0.0
        %3573 = vmatpush1.msra.mxu0 0.0
        %3574 = vmatprep.subr.mxu0 0.0
        %3575 = vmatpush1.msra.mxu0 0.0
        %3576 = vmatprep.subr.mxu0 0.0
        %3577 = vmatpush1.msra.mxu0 0.0
        %3578 = vmatprep.subr.mxu0 0.0
        %3579 = vmatpush1.msra.mxu0 0.0
        %3580 = vmatprep.subr.mxu0 0.0
        %3581 = vmatpush1.msra.mxu0 0.0
        %3582 = vmatprep.subr.mxu0 0.0
        %3583 = vmatpush1.msra.mxu0 0.0
        %3584 = vmatprep.subr.mxu0 0.0
        %3585 = vmatpush1.msra.mxu0 0.0
        %3586 = vmatprep.subr.mxu0 0.0
        %3587 = vmatpush1.msra.mxu0 0.0
        %3588 = vmatprep.subr.mxu0 0.0
        %3589 = vmatpush1.msra.mxu0 0.0
        %3590 = vmatprep.mubr.f32.mxu0 0.0
        %3591 = vmatmul.mubr.f32.gmra.mrb[0].mxu0 %v3521
        %v3592 = vpop.f32.mrb[0].mxu0
        %v3593 = vadd.f32 %v3518, %v3592
        %v3594 = vpop.f32.mrb[0].mxu0
        %3595 = vmatprep.mubr.f32.mxu0 0.0
        %3596 = vmatmul.mubr.f32.gmra.mrb[0].mxu0 %v3524
        %v3597 = vpop.f32.mrb[0].mxu0
        %v3598 = vadd.f32 %v3518, %v3597
        %v3599 = vpop.f32.mrb[0].mxu0
        %3600 = vdwg.mxu0
        %3601 = vst [vmem:[%s687] sm:$0xff] %v3593
        %3602 = vst [vmem:[%s687 + $0x8] sm:$0xff] %v3598
        %p3603 = scmp.lt.s32.totalorder %s33, 1
        %s3604 = scalar_select %p3603, %s33, 1
        %s3605 = smul.addr %s3604, 2
        %s3606 = smul.addr %s3605, 8
        %s3607 = scalar_lea.vmem %s20, %s3606
        // Predicated region
        $region113: #{transformer_motion_forward.1} parent=99 // pred_check
          %p3608 = pneg %p481
        $region114: #{transformer_motion_forward.1} parent=99 // pred_check_branch
          %3610 = sbr.rel (%p3608) target = $region116
        $region115: #{transformer_motion_forward.1} parent=99 // pred_region
          _
        $region116: #{transformer_motion_forward.1} parent=99 // pred_fallthru
          _
      $region100: #{transformer_motion_forward.1} parent=5 // pred_fallthru
        _
      %p3611 = scmp.le.s32.totalorder 2, %s28
      // Predicated region
      $region117: #{transformer_motion_forward.1} parent=5 // pred_check
        %p3612 = pneg %p3611
      $region118: #{transformer_motion_forward.1} parent=5 // pred_check_branch
        %3614 = sbr.rel (%p3612) target = $region120
      $region119: #{transformer_motion_forward.1} parent=5 // pred_region
        %s3615 = ssub.s32 %s28, 2
        // Predicated region
        $region121: #{transformer_motion_forward.1} parent=119 // pred_check
          %p3616 = pneg %p487
        $region122: #{transformer_motion_forward.1} parent=119 // pred_check_branch
          %3618 = sbr.rel (%p3616) target = $region124
        $region123: #{transformer_motion_forward.1} parent=119 // pred_region
          %p3619 = scmp.lt.s32.totalorder %s34, 1
          %s3620 = scalar_select %p3619, %s34, 1
          %s3621 = smul.addr %s3620, 2
          %s3622 = smul.addr %s3621, 8
          %s3623 = scalar_lea.vmem %s20, %s3622
        $region124: #{transformer_motion_forward.1} parent=119 // pred_fallthru
          _
      $region120: #{transformer_motion_forward.1} parent=5 // pred_fallthru
        _
    $region6: #{transformer_motion_forward.1} parent=1 // loop_footer
      %s32 = sadd.s32 1, %s28
    $region7: #{transformer_motion_forward.1} parent=1 // loop_footer_branch
      %27 = sbr.rel target = $region3
    $region8: #{transformer_motion_forward.1} parent=1 // loop_exit
      _
    %3624 = vsyncpa [#allocation4], 1
    %s3625 = scalar_lea.sflag [#allocation4], 1
    %3626 = vsyncpa %s3625, 1
    %3627 = vsyncpa [#allocation6], 1

</llo_original>
